<compile_context>
chip_gen: v7x
topology: tpu7x:2x2x1
jax: 0.10.0
libtpu: 0.0.40
codegen_flags: <defaults>
</compile_context>

<pallas_src>
import numpy as np
from math import exp

import jax
import jax.numpy as jnp
from jax import lax
from jax.experimental import pallas as pl
from jax.experimental.pallas import tpu as pltpu


# ----------------------------------------------------------------------------------
# Gaussian window / Toeplitz construction (compile-time, numpy)
# ----------------------------------------------------------------------------------
def _gaussian_1d(window_size: int, sigma: float) -> np.ndarray:
    g = np.array(
        [exp(-((x - window_size // 2) ** 2) / float(2 * sigma ** 2)) for x in range(window_size)],
        dtype=np.float64,
    )
    g = g / g.sum()
    return g.astype(np.float32)


def _gaussian_toeplitz(n: int, window_size: int, sigma: float) -> np.ndarray:
    """Banded symmetric (n, n) matrix T with T[j, x] = w1d[j - x + pad] for |j - x| <= pad.

    Column x holds the 1-D Gaussian weights for output position x; the zero padding of
    F.conv2d(padding=window_size//2) is folded in by clipping the band at the edges.
    """
    w1d = _gaussian_1d(window_size, sigma).astype(np.float64)
    pad = window_size // 2
    T = np.zeros((n, n), dtype=np.float64)
    for x in range(n):
        for d in range(-pad, pad + 1):
            j = x + d
            if 0 <= j < n:
                T[j, x] = w1d[d + pad]
    return T.astype(np.float32)


_C1 = 0.01 ** 2
_C2 = 0.03 ** 2
# Conservative, always-supported matmul precision for the f32 Toeplitz passes.
# TODO(synk): switch to lax.Precision.HIGH (bf16x3) after hardware validation of the
# sigma = E[x^2] - mu^2 cancellation (review item 4).
_PREC = lax.Precision.HIGHEST


# ----------------------------------------------------------------------------------
# Pallas kernel
# ----------------------------------------------------------------------------------
def _make_ssim_kernel(H: int, KCW: int, fold_rows: bool):
    def kernel(tv_ref, thb_ref, x1_ref, x2_ref, out_ref, slab_ref):
        # Image blocks: (H, KCW) with Kc planes lane-packed (or a single plane).
        p1 = x1_ref[...].astype(jnp.float32)
        p2 = x2_ref[...].astype(jnp.float32)

        # Build the 5-map slab (p1, p2, p1*p1, p2*p2, p1*p2) directly in VMEM scratch
        # (no jnp.concatenate copy; review item 8).
        slab_ref[0 * H:1 * H, :] = p1
        slab_ref[1 * H:2 * H, :] = p2
        slab_ref[2 * H:3 * H, :] = p1 * p1
        slab_ref[3 * H:4 * H, :] = p2 * p2
        slab_ref[4 * H:5 * H, :] = p1 * p2

        # Horizontal Gaussian pass: one MXU matmul; the (block-diagonal) Th stays
        # weight-stationary across all 5*H slab rows.
        hc = jnp.dot(slab_ref[...], thb_ref[...],
                     preferred_element_type=jnp.float32, precision=_PREC)

        # Vertical Gaussian pass: five plain 2-D matmuls sharing the same (H, H) Tv.
        # No materialized (5K, H, H) broadcast, no batched einsum (review item 2).
        tv = tv_ref[...]

        def vpass(m):
            return jnp.dot(tv, hc[m * H:(m + 1) * H, :],
                           preferred_element_type=jnp.float32, precision=_PREC)

        mu1 = vpass(0)
        mu2 = vpass(1)
        s11 = vpass(2)
        s22 = vpass(3)
        s12 = vpass(4)

        mu1_sq = mu1 * mu1
        mu2_sq = mu2 * mu2
        mu1_mu2 = mu1 * mu2
        sigma1_sq = s11 - mu1_sq
        sigma2_sq = s22 - mu2_sq
        sigma12 = s12 - mu1_mu2

        ssim_map = ((2.0 * mu1_mu2 + _C1) * (2.0 * sigma12 + _C2)) / (
            (mu1_sq + mu2_sq + _C1) * (sigma1_sq + sigma2_sq + _C2)
        )

        if fold_rows:
            # Fold H rows down to 8 sublanes before the output DMA: pure sublane-strided
            # VPU adds, lane-dense store, writeback shrunk by H/8 (review item 9).
            out_ref[...] = jnp.sum(ssim_map.reshape(H // 8, 8, KCW), axis=0)
        else:
            out_ref[...] = ssim_map

    return kernel


# ----------------------------------------------------------------------------------
# Wrapper: plane-packing selection + pallas_call
# ----------------------------------------------------------------------------------
def _vmem_bytes_estimate(H: int, kcw: int, in_itemsize: int, rows_out: int) -> int:
    f32 = 4
    return (2 * 2 * H * kcw * in_itemsize     # two inputs, double-buffered, native dtype
            + 5 * H * kcw * f32               # slab scratch
            + 15 * H * kcw * f32              # hconv + 5 vertical maps + elementwise temps
            + 2 * kcw * kcw * f32             # Th block-diag (double-buffered)
            + 2 * H * H * f32                 # Tv (double-buffered)
            + 2 * rows_out * kcw * f32)       # output block (double-buffered)


def _choose_plane_packing(NC: int, H: int, W: int, in_itemsize: int, budget_bytes: int):
    """Pick how many planes (Kc) are lane-packed per grid step, and the data layout."""
    rows_out = 8 if H % 8 == 0 else H
    candidates = []
    for d in range(1, NC + 1):
        if NC % d:
            continue
        g = NC // d
        kcw = d * W
        if d > 1 and kcw > 256:            # keep kron(I, Th) within one MXU width
            continue
        if g > 1 and kcw % 128 != 0:       # lane block must be 128-aligned unless full
            continue
        if _vmem_bytes_estimate(H, kcw, in_itemsize, rows_out) > budget_bytes:
            continue
        candidates.append(d)

    if candidates:
        # Prefer lane-dense (>=128 lanes) blocks, then an even grid (v7x megacore,
        # review item 7), then the largest plane count per step.
        kc = max(candidates, key=lambda d: (d * W >= 128, (NC // d) % 2 == 0, d))
    else:
        kc = 1  # TODO(synk): band-tiled conv for planes too large for VMEM (item 3).

    if kc == 1 and (H % 8 == 0 or NC == 1):
        return 1, "rows"       # one plane per step, no wrapper repack needed
    if kc == 1 and NC > 1 and W % 128 != 0:
        # Lane layout needs 128-aligned blocks (or a single block); fall back to one
        # grid step holding all planes.  TODO(synk): masked tail blocks (item 11).
        return NC, "lanes"
    return kc, "lanes"


def ssim_pallas(img1, img2, window_size: int = 11, size_average: bool = True, mask=None):
    """SSIM forward pass. img1/img2: NCHW arrays of identical shape."""
    # TODO(synk): mask / size_average=False branches not implemented (default path only).
    assert mask is None, "mask path not implemented"
    assert size_average, "only the default size_average=True path is implemented"
    assert img1.shape == img2.shape and img1.ndim == 4
    N, C, H, W = img1.shape
    NC = N * C

    # Per-generation VMEM budget (review item 1).
    try:
        vmem_cap = int(pltpu.get_tpu_info().vmem_capacity_bytes)
    except Exception:
        vmem_cap = 64 * 1024 * 1024
    budget = int(vmem_cap * 0.6)
    vmem_limit = min(int(vmem_cap * 0.85), 100 * 1024 * 1024)

    in_itemsize = np.dtype(img1.dtype).itemsize
    kc, layout = _choose_plane_packing(NC, H, W, in_itemsize, budget)
    g = NC // kc
    kcw = kc * W
    fold_rows = (H % 8 == 0)
    rows_out = 8 if fold_rows else H

    # Toeplitz factors of the separable Gaussian window (zero padding folded in).
    tv = jnp.asarray(_gaussian_toeplitz(H, window_size, 1.5))              # (H, H)
    th = _gaussian_toeplitz(W, window_size, 1.5)                           # (W, W)
    thb = jnp.asarray(np.kron(np.eye(kc, dtype=np.float32), th))           # (kcw, kcw)

    # DMA the images in their native dtype; the kernel casts on load (review item 5).
    x1 = img1.reshape(NC, H, W)
    x2 = img2.reshape(NC, H, W)
    if layout == "lanes":
        # Lane-pack kc planes side by side (wrapper-side layout plumbing, review item 10).
        x1 = jnp.transpose(x1, (1, 0, 2)).reshape(H, NC * W)
        x2 = jnp.transpose(x2, (1, 0, 2)).reshape(H, NC * W)
        img_spec = pl.BlockSpec((H, kcw), lambda i: (0, i))
        out_spec = pl.BlockSpec((rows_out, kcw), lambda i: (0, i))
        out_shape = jax.ShapeDtypeStruct((rows_out, g * kcw), jnp.float32)
    else:  # "rows": one plane per grid step, planes stacked along sublanes
        x1 = x1.reshape(NC * H, W)
        x2 = x2.reshape(NC * H, W)
        img_spec = pl.BlockSpec((H, kcw), lambda i: (i, 0))
        out_spec = pl.BlockSpec((rows_out, kcw), lambda i: (i, 0))
        out_shape = jax.ShapeDtypeStruct((g * rows_out, kcw), jnp.float32)

    kernel = _make_ssim_kernel(H, kcw, fold_rows)

    partials = pl.pallas_call(
        kernel,
        out_shape=out_shape,
        grid_spec=pltpu.PrefetchScalarGridSpec(
            num_scalar_prefetch=0,
            grid=(g,),
            in_specs=[
                # TODO(synk): pipeline_mode=pl.Buffered(1) on the two constants (item 6).
                pl.BlockSpec((H, H), lambda i: (0, 0)),        # Tv, resident across grid
                pl.BlockSpec((kcw, kcw), lambda i: (0, 0)),    # Th block-diag, resident
                img_spec,                                      # kc planes of img1
                img_spec,                                      # kc planes of img2
            ],
            out_specs=out_spec,
            scratch_shapes=[pltpu.VMEM((5 * H, kcw), jnp.float32)],  # 5-map slab
        ),
        compiler_params=pltpu.CompilerParams(
            dimension_semantics=("parallel",),   # no carried state -> megacore-shardable
            vmem_limit_bytes=vmem_limit,
        ),
    )(tv, thb, x1, x2)

    return jnp.sum(partials) / float(NC * H * W)


# ----------------------------------------------------------------------------------
# Pure-JAX reference (matches F.conv2d groups=channel with zero padding)
# ----------------------------------------------------------------------------------
def _ssim_reference(img1, img2, window_size: int = 11):
    N, C, H, W = img1.shape
    pad = window_size // 2
    w1d = jnp.asarray(_gaussian_1d(window_size, 1.5))
    w2d = jnp.outer(w1d, w1d)
    window = jnp.broadcast_to(w2d, (C, 1, window_size, window_size))

    def conv(x):
        return lax.conv_general_dilated(
            x, window, window_strides=(1, 1), padding=[(pad, pad), (pad, pad)],
            dimension_numbers=("NCHW", "OIHW", "NCHW"), feature_group_count=C,
            precision=lax.Precision.HIGHEST,
        )

    mu1, mu2 = conv(img1), conv(img2)
    mu1_sq, mu2_sq, mu1_mu2 = mu1 * mu1, mu2 * mu2, mu1 * mu2
    sigma1_sq = conv(img1 * img1) - mu1_sq
    sigma2_sq = conv(img2 * img2) - mu2_sq
    sigma12 = conv(img1 * img2) - mu1_mu2
    ssim_map = ((2 * mu1_mu2 + _C1) * (2 * sigma12 + _C2)) / (
        (mu1_sq + mu2_sq + _C1) * (sigma1_sq + sigma2_sq + _C2)
    )
    return jnp.mean(ssim_map)


if __name__ == "__main__":
    key = jax.random.PRNGKey(0)
    k1, k2 = jax.random.split(key)
    N, C, H, W = 2, 4, 16, 16
    img1 = jax.random.uniform(k1, (N, C, H, W), dtype=jnp.float32)
    img2 = jnp.clip(img1 + 0.1 * jax.random.normal(k2, (N, C, H, W), dtype=jnp.float32), 0.0, 1.0)

    out = jax.block_until_ready(ssim_pallas(img1, img2))
    ref = jax.block_until_ready(_ssim_reference(img1, img2))
    np.testing.assert_allclose(np.asarray(out), np.asarray(ref), rtol=1e-3, atol=1e-5)

    print("KERNEL_OK")
</pallas_src>

<mosaic_0001>
module attributes {stable_mosaic.version = 11 : i64} {
  func.func @kernel(%arg0: i32, %arg1: memref<16x16xf32, #tpu.memory_space<vmem>>, %arg2: memref<128x128xf32, #tpu.memory_space<vmem>>, %arg3: memref<16x128xf32, #tpu.memory_space<vmem>>, %arg4: memref<16x128xf32, #tpu.memory_space<vmem>>, %arg5: memref<8x128xf32, #tpu.memory_space<vmem>>, %arg6: memref<80x128xf32, #tpu.memory_space<vmem>>) attributes {dimension_semantics = [#tpu.dimension_semantics<parallel>], iteration_bounds = array<i64: 1>, scalar_prefetch = 0 : i64, scratch_operands = 1 : i64, tpu.core_type = #tpu.core_type<tc>, window_params = [{pipeline_mode = #tpu.pipeline_mode<synchronous>, transform_indices = @transform_0, window_bounds = array<i64: 16, 16>}, {pipeline_mode = #tpu.pipeline_mode<synchronous>, transform_indices = @transform_1, window_bounds = array<i64: 128, 128>}, {transform_indices = @transform_2, window_bounds = array<i64: 16, 128>}, {transform_indices = @transform_3, window_bounds = array<i64: 16, 128>}, {transform_indices = @transform_4, window_bounds = array<i64: 8, 128>}]} {
    %c0 = arith.constant 0 : index
    %c0_0 = arith.constant 0 : index
    %0 = vector.load %arg3[%c0, %c0_0] : memref<16x128xf32, #tpu.memory_space<vmem>>, vector<16x128xf32>
    %c0_1 = arith.constant 0 : index
    %c0_2 = arith.constant 0 : index
    %1 = vector.load %arg4[%c0_1, %c0_2] : memref<16x128xf32, #tpu.memory_space<vmem>>, vector<16x128xf32>
    %c0_3 = arith.constant 0 : index
    %c0_4 = arith.constant 0 : index
    %2 = vector.load %arg6[%c0_3, %c0_4] : memref<80x128xf32, #tpu.memory_space<vmem>>, vector<16x128xf32>
    tpu.vector_store %arg6[%c0_3, %c0_4], %0 {strides = array<i32>} : memref<80x128xf32, #tpu.memory_space<vmem>>, vector<16x128xf32>,
    %c16 = arith.constant 16 : index
    %c0_5 = arith.constant 0 : index
    %3 = vector.load %arg6[%c16, %c0_5] : memref<80x128xf32, #tpu.memory_space<vmem>>, vector<16x128xf32>
    tpu.vector_store %arg6[%c16, %c0_5], %1 {strides = array<i32>} : memref<80x128xf32, #tpu.memory_space<vmem>>, vector<16x128xf32>,
    %4 = arith.mulf %0, %0 : vector<16x128xf32>
    %c32 = arith.constant 32 : index
    %c0_6 = arith.constant 0 : index
    %5 = vector.load %arg6[%c32, %c0_6] : memref<80x128xf32, #tpu.memory_space<vmem>>, vector<16x128xf32>
    tpu.vector_store %arg6[%c32, %c0_6], %4 {strides = array<i32>} : memref<80x128xf32, #tpu.memory_space<vmem>>, vector<16x128xf32>,
    %6 = arith.mulf %1, %1 : vector<16x128xf32>
    %c48 = arith.constant 48 : index
    %c0_7 = arith.constant 0 : index
    %7 = vector.load %arg6[%c48, %c0_7] : memref<80x128xf32, #tpu.memory_space<vmem>>, vector<16x128xf32>
    tpu.vector_store %arg6[%c48, %c0_7], %6 {strides = array<i32>} : memref<80x128xf32, #tpu.memory_space<vmem>>, vector<16x128xf32>,
    %8 = arith.mulf %0, %1 : vector<16x128xf32>
    %c64 = arith.constant 64 : index
    %c0_8 = arith.constant 0 : index
    %9 = vector.load %arg6[%c64, %c0_8] : memref<80x128xf32, #tpu.memory_space<vmem>>, vector<16x128xf32>
    tpu.vector_store %arg6[%c64, %c0_8], %8 {strides = array<i32>} : memref<80x128xf32, #tpu.memory_space<vmem>>, vector<16x128xf32>,
    %c0_9 = arith.constant 0 : index
    %c0_10 = arith.constant 0 : index
    %10 = vector.load %arg6[%c0_9, %c0_10] : memref<80x128xf32, #tpu.memory_space<vmem>>, vector<80x128xf32>
    %c0_11 = arith.constant 0 : index
    %c0_12 = arith.constant 0 : index
    %11 = vector.load %arg2[%c0_11, %c0_12] : memref<128x128xf32, #tpu.memory_space<vmem>>, vector<128x128xf32>
    %cst = arith.constant dense<0.000000e+00> : vector<80x128xf32>
    %12 = tpu.matmul %10, %11, %cst {dimension_numbers = #tpu.dot_dimension_numbers<[1], [0], [0], [1], [0, 0, 1, 1], [], []>, precision = #tpu.contract_precision<fp32>} : vector<80x128xf32>, vector<128x128xf32>, vector<80x128xf32> -> vector<80x128xf32>
    %c0_13 = arith.constant 0 : index
    %c0_14 = arith.constant 0 : index
    %13 = vector.load %arg1[%c0_13, %c0_14] : memref<16x16xf32, #tpu.memory_space<vmem>>, vector<16x16xf32>
    %14 = vector.extract_strided_slice %12 {offsets = [0, 0], sizes = [16, 128], strides = [1, 1]} : vector<80x128xf32> to vector<16x128xf32>
    %cst_15 = arith.constant dense<0.000000e+00> : vector<16x128xf32>
    %15 = tpu.matmul %13, %14, %cst_15 {dimension_numbers = #tpu.dot_dimension_numbers<[1], [0], [0], [1], [0, 0, 1, 1], [], []>, precision = #tpu.contract_precision<fp32>} : vector<16x16xf32>, vector<16x128xf32>, vector<16x128xf32> -> vector<16x128xf32>
    %16 = vector.extract_strided_slice %12 {offsets = [16, 0], sizes = [16, 128], strides = [1, 1]} : vector<80x128xf32> to vector<16x128xf32>
    %cst_16 = arith.constant dense<0.000000e+00> : vector<16x128xf32>
    %17 = tpu.matmul %13, %16, %cst_16 {dimension_numbers = #tpu.dot_dimension_numbers<[1], [0], [0], [1], [0, 0, 1, 1], [], []>, precision = #tpu.contract_precision<fp32>} : vector<16x16xf32>, vector<16x128xf32>, vector<16x128xf32> -> vector<16x128xf32>
    %18 = vector.extract_strided_slice %12 {offsets = [32, 0], sizes = [16, 128], strides = [1, 1]} : vector<80x128xf32> to vector<16x128xf32>
    %cst_17 = arith.constant dense<0.000000e+00> : vector<16x128xf32>
    %19 = tpu.matmul %13, %18, %cst_17 {dimension_numbers = #tpu.dot_dimension_numbers<[1], [0], [0], [1], [0, 0, 1, 1], [], []>, precision = #tpu.contract_precision<fp32>} : vector<16x16xf32>, vector<16x128xf32>, vector<16x128xf32> -> vector<16x128xf32>
    %20 = vector.extract_strided_slice %12 {offsets = [48, 0], sizes = [16, 128], strides = [1, 1]} : vector<80x128xf32> to vector<16x128xf32>
    %cst_18 = arith.constant dense<0.000000e+00> : vector<16x128xf32>
    %21 = tpu.matmul %13, %20, %cst_18 {dimension_numbers = #tpu.dot_dimension_numbers<[1], [0], [0], [1], [0, 0, 1, 1], [], []>, precision = #tpu.contract_precision<fp32>} : vector<16x16xf32>, vector<16x128xf32>, vector<16x128xf32> -> vector<16x128xf32>
    %22 = vector.extract_strided_slice %12 {offsets = [64, 0], sizes = [16, 128], strides = [1, 1]} : vector<80x128xf32> to vector<16x128xf32>
    %cst_19 = arith.constant dense<0.000000e+00> : vector<16x128xf32>
    %23 = tpu.matmul %13, %22, %cst_19 {dimension_numbers = #tpu.dot_dimension_numbers<[1], [0], [0], [1], [0, 0, 1, 1], [], []>, precision = #tpu.contract_precision<fp32>} : vector<16x16xf32>, vector<16x128xf32>, vector<16x128xf32> -> vector<16x128xf32>
    %24 = arith.mulf %15, %15 : vector<16x128xf32>
    %25 = arith.mulf %17, %17 : vector<16x128xf32>
    %26 = arith.mulf %15, %17 : vector<16x128xf32>
    %27 = arith.subf %19, %24 : vector<16x128xf32>
    %28 = arith.subf %21, %25 : vector<16x128xf32>
    %29 = arith.subf %23, %26 : vector<16x128xf32>
    %cst_20 = arith.constant 2.000000e+00 : f32
    %30 = vector.broadcast %cst_20 : f32 to vector<16x128xf32>
    %31 = arith.mulf %30, %26 : vector<16x128xf32>
    %cst_21 = arith.constant 9.99999974E-5 : f32
    %32 = vector.broadcast %cst_21 : f32 to vector<16x128xf32>
    %33 = arith.addf %31, %32 : vector<16x128xf32>
    %cst_22 = arith.constant 2.000000e+00 : f32
    %34 = vector.broadcast %cst_22 : f32 to vector<16x128xf32>
    %35 = arith.mulf %34, %29 : vector<16x128xf32>
    %cst_23 = arith.constant 8.99999984E-4 : f32
    %36 = vector.broadcast %cst_23 : f32 to vector<16x128xf32>
    %37 = arith.addf %35, %36 : vector<16x128xf32>
    %38 = arith.mulf %33, %37 : vector<16x128xf32>
    %39 = arith.addf %24, %25 : vector<16x128xf32>
    %cst_24 = arith.constant 9.99999974E-5 : f32
    %40 = vector.broadcast %cst_24 : f32 to vector<16x128xf32>
    %41 = arith.addf %39, %40 : vector<16x128xf32>
    %42 = arith.addf %27, %28 : vector<16x128xf32>
    %cst_25 = arith.constant 8.99999984E-4 : f32
    %43 = vector.broadcast %cst_25 : f32 to vector<16x128xf32>
    %44 = arith.addf %42, %43 : vector<16x128xf32>
    %45 = arith.mulf %41, %44 : vector<16x128xf32>
    %46 = arith.divf %38, %45 : vector<16x128xf32>
    %47 = vector.shape_cast %46 : vector<16x128xf32> to vector<2x8x128xf32>
    %cst_26 = arith.constant dense<0.000000e+00> : vector<8x128xf32>
    %48 = vector.multi_reduction <add>, %47, %cst_26 [0] : vector<2x8x128xf32> to vector<8x128xf32>
    %c0_27 = arith.constant 0 : index
    %c0_28 = arith.constant 0 : index
    %49 = vector.load %arg5[%c0_27, %c0_28] : memref<8x128xf32, #tpu.memory_space<vmem>>, vector<8x128xf32>
    tpu.vector_store %arg5[%c0_27, %c0_28], %48 {strides = array<i32>} : memref<8x128xf32, #tpu.memory_space<vmem>>, vector<8x128xf32>,
    return
  }
  func.func @transform_0(%arg0: i32) -> (i32, i32) {
    %c0_i32 = arith.constant 0 : i32
    %c0_i32_0 = arith.constant 0 : i32
    %c0_i32_1 = arith.constant 0 : i32
    return %c0_i32, %c0_i32_0 : i32, i32
  }
  func.func @transform_1(%arg0: i32) -> (i32, i32) {
    %c0_i32 = arith.constant 0 : i32
    %c0_i32_0 = arith.constant 0 : i32
    %c0_i32_1 = arith.constant 0 : i32
    return %c0_i32, %c0_i32_0 : i32, i32
  }
  func.func @transform_2(%arg0: i32) -> (i32, i32) {
    %c0_i32 = arith.constant 0 : i32
    %c0_i32_0 = arith.constant 0 : i32
    return %c0_i32, %arg0 : i32, i32
  }
  func.func @transform_3(%arg0: i32) -> (i32, i32) {
    %c0_i32 = arith.constant 0 : i32
    %c0_i32_0 = arith.constant 0 : i32
    return %c0_i32, %arg0 : i32, i32
  }
  func.func @transform_4(%arg0: i32) -> (i32, i32) {
    %c0_i32 = arith.constant 0 : i32
    %c0_i32_0 = arith.constant 0 : i32
    return %c0_i32, %arg0 : i32, i32
  }
}

</mosaic_0001>

<llo_original>
// kernel: tpu_custom_call.1
$region0: #{tpu_custom_call.1}
  #allocation0 [shape = 'u32[]', space=smem, size = 0x4, offset = 0x4, fixed_abs, tag = 'smem constant byte address 0x4 - core index']
  #allocation1 [shape = 'u32[144,128]{1,0:T(1,128)}', space=vmem, size = 0x12000, scoped, tag = 'internal scratch']
  #allocation2 [shape = 'f32[80,128]{1,0:T(8,128)}', space=vmem, size = 0xa000, scoped, tag = 'scratch operand']
  %s0 = inlined_call_operand.hbm [shape: f32[16,16], index: 0, kind: input, shape index: {}]
  %s1 = inlined_call_operand.hbm [shape: f32[128,128], index: 1, kind: input, shape index: {}]
  %s2 = inlined_call_operand.hbm [shape: f32[16,128], index: 2, kind: input, shape index: {}]
  %s3 = inlined_call_operand.hbm [shape: f32[16,128], index: 3, kind: input, shape index: {}]
  %s4 = inlined_call_operand.hbm [shape: f32[8,128], index: 4, kind: output, shape index: {}]
  %s5 = sld [smem:[#allocation0]]
  $region42: #{tpu_custom_call.1} parent=0
    _
  %s7 = ssub.s32 1, %s5
  %s8 = scalar_select 0, %s7, %s5
  $region1: #{tpu_custom_call.1} parent=0
    #allocation3 [shape = 'u8[8192]{0}', space=vmem, size = 0x2000, scoped, tag = 'input window, operand 0, single buffered']
    #allocation4 [shape = 's32[1]{0}', space=sflag, size = 0x4, scoped, tag = 'scoped memory for tpu_custom_call.1']
    #allocation5 [shape = 's32[1]{0}', space=sflag, size = 0x4, scoped, tag = 'scoped memory for tpu_custom_call.1']
    #allocation6 [shape = 'u8[65536]{0}', space=vmem, size = 0x10000, scoped, tag = 'input window, operand 1, single buffered']
    #allocation7 [shape = 's32[1]{0}', space=sflag, size = 0x4, scoped, tag = 'scoped memory for tpu_custom_call.1']
    #allocation8 [shape = 'u8[8192]{0}', space=vmem, size = 0x2000, scoped, tag = 'input window, operand 2, single buffered']
    #allocation9 [shape = 'u8[8192]{0}', space=vmem, size = 0x2000, scoped, tag = 'input window, operand 3, single buffered']
    #allocation10 [shape = 's32[1]{0}', space=sflag, size = 0x4, scoped, tag = 'scoped memory for tpu_custom_call.1']
    #allocation11 [shape = 'u8[4096]{0}', space=vmem, size = 0x1000, scoped, tag = 'output window, operand 0, single buffered']
    %9 = vsyncpa [#allocation4], 0
    %10 = vsyncpa [#allocation7], 0
    %11 = vsyncpa [#allocation10], 0
    %12 = vsyncpa [#allocation5], 0
    // Predicated region
    $region2: #{tpu_custom_call.1} parent=1 // pred_check
      _
    $region3: #{tpu_custom_call.1} parent=1 // pred_check_branch
      %14 = sbr.rel (0) target = $region5
    $region4: #{tpu_custom_call.1} parent=1 // pred_region
      %s16 = ssub.s32 256, 256
      %17 = vsyncadd [#allocation4], %s16
      %s18 = sshll.u32 [#allocation3], 4
      %s19 = int_to_ptr.vmem [resolvable:$true] %s18
      %24 = dma.hbm_to_vmem [thread:$0]  %s0, 256, %s19, [#allocation4], 128, 128, 8
    $region5: #{tpu_custom_call.1} parent=1 // pred_fallthru
      _
    // Predicated region
    $region6: #{tpu_custom_call.1} parent=1 // pred_check
      _
    $region7: #{tpu_custom_call.1} parent=1 // pred_check_branch
      %26 = sbr.rel (0) target = $region9
    $region8: #{tpu_custom_call.1} parent=1 // pred_region
      %s28 = ssub.s32 2048, 2048
      %29 = vsyncadd [#allocation7], %s28
      %s30 = sshll.u32 [#allocation6], 4
      %s31 = int_to_ptr.vmem [resolvable:$true] %s30
      %36 = dma.hbm_to_vmem [thread:$0]  %s1, 2048, %s31, [#allocation7], 128, 128, 8
    $region9: #{tpu_custom_call.1} parent=1 // pred_fallthru
      _
    // Predicated region
    $region10: #{tpu_custom_call.1} parent=1 // pred_check
      _
    $region11: #{tpu_custom_call.1} parent=1 // pred_check_branch
      %38 = sbr.rel (0) target = $region13
    $region12: #{tpu_custom_call.1} parent=1 // pred_region
      %s40 = ssub.s32 256, 256
      %41 = vsyncadd [#allocation7], %s40
      %s42 = sshll.u32 [#allocation8], 4
      %s43 = int_to_ptr.vmem [resolvable:$true] %s42
      %48 = dma.hbm_to_vmem [thread:$0]  %s2, 256, %s43, [#allocation7], 128, 128, 8
    $region13: #{tpu_custom_call.1} parent=1 // pred_fallthru
      _
    // Predicated region
    $region14: #{tpu_custom_call.1} parent=1 // pred_check
      _
    $region15: #{tpu_custom_call.1} parent=1 // pred_check_branch
      %50 = sbr.rel (0) target = $region17
    $region16: #{tpu_custom_call.1} parent=1 // pred_region
      %s52 = ssub.s32 256, 256
      %53 = vsyncadd [#allocation10], %s52
      %s54 = sshll.u32 [#allocation9], 4
      %s55 = int_to_ptr.vmem [resolvable:$true] %s54
      %60 = dma.hbm_to_vmem [thread:$0]  %s3, 256, %s55, [#allocation10], 128, 128, 8
    $region17: #{tpu_custom_call.1} parent=1 // pred_fallthru
      _
    // Predicated region
    $region18: #{tpu_custom_call.1} parent=1 // pred_check
      _
    $region19: #{tpu_custom_call.1} parent=1 // pred_check_branch
      %62 = sbr.rel (0) target = $region21
    $region20: #{tpu_custom_call.1} parent=1 // pred_region
      %63 = dma.done [#allocation4], 256
    $region21: #{tpu_custom_call.1} parent=1 // pred_fallthru
      _
    // Predicated region
    $region22: #{tpu_custom_call.1} parent=1 // pred_check
      _
    $region23: #{tpu_custom_call.1} parent=1 // pred_check_branch
      %65 = sbr.rel (0) target = $region25
    $region24: #{tpu_custom_call.1} parent=1 // pred_region
      %66 = dma.done [#allocation7], 2048
    $region25: #{tpu_custom_call.1} parent=1 // pred_fallthru
      _
    // Predicated region
    $region26: #{tpu_custom_call.1} parent=1 // pred_check
      _
    $region27: #{tpu_custom_call.1} parent=1 // pred_check_branch
      %68 = sbr.rel (0) target = $region29
    $region28: #{tpu_custom_call.1} parent=1 // pred_region
      %69 = dma.done [#allocation7], 256
    $region29: #{tpu_custom_call.1} parent=1 // pred_fallthru
      _
    // Predicated region
    $region30: #{tpu_custom_call.1} parent=1 // pred_check
      _
    $region31: #{tpu_custom_call.1} parent=1 // pred_check_branch
      %71 = sbr.rel (0) target = $region33
    $region32: #{tpu_custom_call.1} parent=1 // pred_region
      %72 = dma.done [#allocation10], 256
    $region33: #{tpu_custom_call.1} parent=1 // pred_fallthru
      _
    %v73 = vld [vmem:[#allocation8] sm:$0xff]
    %v74 = vld [vmem:[#allocation8 + $0x8] sm:$0xff]
    %v75 = vld [vmem:[#allocation9] sm:$0xff]
    %v76 = vld [vmem:[#allocation9 + $0x8] sm:$0xff]
    %77 = vst [vmem:[#allocation2] sm:$0xff] %v73
    %78 = vst [vmem:[#allocation2 + $0x8] sm:$0xff] %v74
    %79 = vst [vmem:[#allocation2 + $0x10] sm:$0xff] %v75
    %80 = vst [vmem:[#allocation2 + $0x18] sm:$0xff] %v76
    %v81 = vmul.f32 %v73, %v73
    %v82 = vmul.f32 %v74, %v74
    %83 = vst [vmem:[#allocation2 + $0x20] sm:$0xff] %v81
    %84 = vst [vmem:[#allocation2 + $0x28] sm:$0xff] %v82
    %v85 = vmul.f32 %v75, %v75
    %v86 = vmul.f32 %v76, %v76
    %87 = vst [vmem:[#allocation2 + $0x30] sm:$0xff] %v85
    %88 = vst [vmem:[#allocation2 + $0x38] sm:$0xff] %v86
    %v89 = vmul.f32 %v73, %v75
    %v90 = vmul.f32 %v74, %v76
    %91 = vst [vmem:[#allocation2 + $0x40] sm:$0xff] %v89
    %92 = vst [vmem:[#allocation2 + $0x48] sm:$0xff] %v90
    %v93 = vld [vmem:[#allocation2] sm:$0xff]
    %v94 = vld [vmem:[#allocation2 + $0x8] sm:$0xff]
    %v95 = vld [vmem:[#allocation2 + $0x10] sm:$0xff]
    %v96 = vld [vmem:[#allocation2 + $0x18] sm:$0xff]
    %v97 = vld [vmem:[#allocation2 + $0x20] sm:$0xff]
    %v98 = vld [vmem:[#allocation2 + $0x28] sm:$0xff]
    %v99 = vld [vmem:[#allocation2 + $0x30] sm:$0xff]
    %v100 = vld [vmem:[#allocation2 + $0x38] sm:$0xff]
    %v101 = vld [vmem:[#allocation2 + $0x40] sm:$0xff]
    %v102 = vld [vmem:[#allocation2 + $0x48] sm:$0xff]
    %v103 = vld [vmem:[#allocation6] sm:$0xff]
    %v104 = vld [vmem:[#allocation6 + $0x8] sm:$0xff]
    %v105 = vld [vmem:[#allocation6 + $0x10] sm:$0xff]
    %v106 = vld [vmem:[#allocation6 + $0x18] sm:$0xff]
    %v107 = vld [vmem:[#allocation6 + $0x20] sm:$0xff]
    %v108 = vld [vmem:[#allocation6 + $0x28] sm:$0xff]
    %v109 = vld [vmem:[#allocation6 + $0x30] sm:$0xff]
    %v110 = vld [vmem:[#allocation6 + $0x38] sm:$0xff]
    %v111 = vld [vmem:[#allocation6 + $0x40] sm:$0xff]
    %v112 = vld [vmem:[#allocation6 + $0x48] sm:$0xff]
    %v113 = vld [vmem:[#allocation6 + $0x50] sm:$0xff]
    %v114 = vld [vmem:[#allocation6 + $0x58] sm:$0xff]
    %v115 = vld [vmem:[#allocation6 + $0x60] sm:$0xff]
    %v116 = vld [vmem:[#allocation6 + $0x68] sm:$0xff]
    %v117 = vld [vmem:[#allocation6 + $0x70] sm:$0xff]
    %v118 = vld [vmem:[#allocation6 + $0x78] sm:$0xff]
    %119 = vmatprep.subr.mxu0 0.0
    %v120 = vand.u32 %v103, 4294901760
    %121 = vmatpush1.msra.mxu0 %v120
    %122 = vmatprep.subr.mxu0 0.0
    %v123 = vand.u32 %v104, 4294901760
    %124 = vmatpush1.msra.mxu0 %v123
    %125 = vmatprep.subr.mxu0 0.0
    %v126 = vand.u32 %v105, 4294901760
    %127 = vmatpush1.msra.mxu0 %v126
    %128 = vmatprep.subr.mxu0 0.0
    %v129 = vand.u32 %v106, 4294901760
    %130 = vmatpush1.msra.mxu0 %v129
    %131 = vmatprep.subr.mxu0 0.0
    %v132 = vand.u32 %v107, 4294901760
    %133 = vmatpush1.msra.mxu0 %v132
    %134 = vmatprep.subr.mxu0 0.0
    %v135 = vand.u32 %v108, 4294901760
    %136 = vmatpush1.msra.mxu0 %v135
    %137 = vmatprep.subr.mxu0 0.0
    %v138 = vand.u32 %v109, 4294901760
    %139 = vmatpush1.msra.mxu0 %v138
    %140 = vmatprep.subr.mxu0 0.0
    %v141 = vand.u32 %v110, 4294901760
    %142 = vmatpush1.msra.mxu0 %v141
    %143 = vmatprep.subr.mxu0 0.0
    %v144 = vand.u32 %v111, 4294901760
    %145 = vmatpush1.msra.mxu0 %v144
    %146 = vmatprep.subr.mxu0 0.0
    %v147 = vand.u32 %v112, 4294901760
    %148 = vmatpush1.msra.mxu0 %v147
    %149 = vmatprep.subr.mxu0 0.0
    %v150 = vand.u32 %v113, 4294901760
    %151 = vmatpush1.msra.mxu0 %v150
    %152 = vmatprep.subr.mxu0 0.0
    %v153 = vand.u32 %v114, 4294901760
    %154 = vmatpush1.msra.mxu0 %v153
    %155 = vmatprep.subr.mxu0 0.0
    %v156 = vand.u32 %v115, 4294901760
    %157 = vmatpush1.msra.mxu0 %v156
    %158 = vmatprep.subr.mxu0 0.0
    %v159 = vand.u32 %v116, 4294901760
    %160 = vmatpush1.msra.mxu0 %v159
    %161 = vmatprep.subr.mxu0 0.0
    %v162 = vand.u32 %v117, 4294901760
    %163 = vmatpush1.msra.mxu0 %v162
    %164 = vmatprep.subr.mxu0 0.0
    %v165 = vand.u32 %v118, 4294901760
    %166 = vmatpush1.msra.mxu0 %v165
    %167 = vmatprep.subr.mxu0 0.0
    %168 = vmatpush1.msra.mxu0 0.0
    %169 = vmatprep.subr.mxu0 0.0
    %170 = vmatpush1.msra.mxu0 0.0
    %171 = vmatprep.subr.mxu0 0.0
    %172 = vmatpush1.msra.mxu0 0.0
    %173 = vmatprep.subr.mxu0 0.0
    %174 = vmatpush1.msra.mxu0 0.0
    %175 = vmatprep.subr.mxu0 0.0
    %176 = vmatpush1.msra.mxu0 0.0
    %177 = vmatprep.subr.mxu0 0.0
    %178 = vmatpush1.msra.mxu0 0.0
    %179 = vmatprep.subr.mxu0 0.0
    %180 = vmatpush1.msra.mxu0 0.0
    %181 = vmatprep.subr.mxu0 0.0
    %182 = vmatpush1.msra.mxu0 0.0
    %183 = vmatprep.subr.mxu0 0.0
    %184 = vmatpush1.msra.mxu0 0.0
    %185 = vmatprep.subr.mxu0 0.0
    %186 = vmatpush1.msra.mxu0 0.0
    %187 = vmatprep.subr.mxu0 0.0
    %188 = vmatpush1.msra.mxu0 0.0
    %189 = vmatprep.subr.mxu0 0.0
    %190 = vmatpush1.msra.mxu0 0.0
    %191 = vmatprep.subr.mxu0 0.0
    %192 = vmatpush1.msra.mxu0 0.0
    %193 = vmatprep.subr.mxu0 0.0
    %194 = vmatpush1.msra.mxu0 0.0
    %195 = vmatprep.subr.mxu0 0.0
    %196 = vmatpush1.msra.mxu0 0.0
    %197 = vmatprep.subr.mxu0 0.0
    %198 = vmatpush1.msra.mxu0 0.0
    %199 = vmatprep.mubr.f32.mxu0 0.0
    %v200 = vand.u32 %v93, 4294901760
    %v201 = vsub.f32 %v93, %v200
    %v202 = vand.u32 %v201, 4294901760
    %v203 = vsub.f32 %v201, %v202
    %v204 = vand.u32 %v203, 4294901760
    %205 = vmatmul.mubr.f32.gmra.mrb[0].mxu0 %v204
    %v206 = vpop.f32.mrb[0].mxu0
    %v207 = vadd.f32 0.0, %v206
    %v208 = vpop.f32.mrb[0].mxu0
    %209 = vmatprep.mubr.f32.mxu0 0.0
    %v210 = vand.u32 %v94, 4294901760
    %v211 = vsub.f32 %v94, %v210
    %v212 = vand.u32 %v211, 4294901760
    %v213 = vsub.f32 %v211, %v212
    %v214 = vand.u32 %v213, 4294901760
    %215 = vmatmul.mubr.f32.gmra.mrb[0].mxu0 %v214
    %v216 = vpop.f32.mrb[0].mxu0
    %v217 = vadd.f32 0.0, %v216
    %v218 = vpop.f32.mrb[0].mxu0
    %219 = vmatprep.mubr.f32.mxu0 0.0
    %v220 = vand.u32 %v95, 4294901760
    %v221 = vsub.f32 %v95, %v220
    %v222 = vand.u32 %v221, 4294901760
    %v223 = vsub.f32 %v221, %v222
    %v224 = vand.u32 %v223, 4294901760
    %225 = vmatmul.mubr.f32.gmra.mrb[0].mxu0 %v224
    %v226 = vpop.f32.mrb[0].mxu0
    %v227 = vadd.f32 0.0, %v226
    %v228 = vpop.f32.mrb[0].mxu0
    %229 = vmatprep.mubr.f32.mxu0 0.0
    %v230 = vand.u32 %v96, 4294901760
    %v231 = vsub.f32 %v96, %v230
    %v232 = vand.u32 %v231, 4294901760
    %v233 = vsub.f32 %v231, %v232
    %v234 = vand.u32 %v233, 4294901760
    %235 = vmatmul.mubr.f32.gmra.mrb[0].mxu0 %v234
    %v236 = vpop.f32.mrb[0].mxu0
    %v237 = vadd.f32 0.0, %v236
    %v238 = vpop.f32.mrb[0].mxu0
    %239 = vmatprep.mubr.f32.mxu0 0.0
    %v240 = vand.u32 %v97, 4294901760
    %v241 = vsub.f32 %v97, %v240
    %v242 = vand.u32 %v241, 4294901760
    %v243 = vsub.f32 %v241, %v242
    %v244 = vand.u32 %v243, 4294901760
    %245 = vmatmul.mubr.f32.gmra.mrb[0].mxu0 %v244
    %v246 = vpop.f32.mrb[0].mxu0
    %v247 = vadd.f32 0.0, %v246
    %v248 = vpop.f32.mrb[0].mxu0
    %249 = vmatprep.mubr.f32.mxu0 0.0
    %v250 = vand.u32 %v98, 4294901760
    %v251 = vsub.f32 %v98, %v250
    %v252 = vand.u32 %v251, 4294901760
    %v253 = vsub.f32 %v251, %v252
    %v254 = vand.u32 %v253, 4294901760
    %255 = vmatmul.mubr.f32.gmra.mrb[0].mxu0 %v254
    %v256 = vpop.f32.mrb[0].mxu0
    %v257 = vadd.f32 0.0, %v256
    %v258 = vpop.f32.mrb[0].mxu0
    %259 = vmatprep.mubr.f32.mxu0 0.0
    %v260 = vand.u32 %v99, 4294901760
    %v261 = vsub.f32 %v99, %v260
    %v262 = vand.u32 %v261, 4294901760
    %v263 = vsub.f32 %v261, %v262
    %v264 = vand.u32 %v263, 4294901760
    %265 = vmatmul.mubr.f32.gmra.mrb[0].mxu0 %v264
    %v266 = vpop.f32.mrb[0].mxu0
    %v267 = vadd.f32 0.0, %v266
    %v268 = vpop.f32.mrb[0].mxu0
    %269 = vmatprep.mubr.f32.mxu0 0.0
    %v270 = vand.u32 %v100, 4294901760
    %v271 = vsub.f32 %v100, %v270
    %v272 = vand.u32 %v271, 4294901760
    %v273 = vsub.f32 %v271, %v272
    %v274 = vand.u32 %v273, 4294901760
    %275 = vmatmul.mubr.f32.gmra.mrb[0].mxu0 %v274
    %v276 = vpop.f32.mrb[0].mxu0
    %v277 = vadd.f32 0.0, %v276
    %v278 = vpop.f32.mrb[0].mxu0
    %279 = vmatprep.mubr.f32.mxu0 0.0
    %v280 = vand.u32 %v101, 4294901760
    %v281 = vsub.f32 %v101, %v280
    %v282 = vand.u32 %v281, 4294901760
    %v283 = vsub.f32 %v281, %v282
    %v284 = vand.u32 %v283, 4294901760
    %285 = vmatmul.mubr.f32.gmra.mrb[0].mxu0 %v284
    %v286 = vpop.f32.mrb[0].mxu0
    %v287 = vadd.f32 0.0, %v286
    %v288 = vpop.f32.mrb[0].mxu0
    %289 = vmatprep.mubr.f32.mxu0 0.0
    %v290 = vand.u32 %v102, 4294901760
    %v291 = vsub.f32 %v102, %v290
    %v292 = vand.u32 %v291, 4294901760
    %v293 = vsub.f32 %v291, %v292
    %v294 = vand.u32 %v293, 4294901760
    %295 = vmatmul.mubr.f32.gmra.mrb[0].mxu0 %v294
    %v296 = vpop.f32.mrb[0].mxu0
    %v297 = vadd.f32 0.0, %v296
    %v298 = vpop.f32.mrb[0].mxu0
    %299 = vdwg.mxu0
    %300 = vmatprep.subr.mxu0 0.0
    %v301 = vand.u32 %v103, 4294901760
    %v302 = vsub.f32 %v103, %v301
    %v303 = vand.u32 %v302, 4294901760
    %v304 = vsub.f32 %v302, %v303
    %v305 = vand.u32 %v304, 4294901760
    %306 = vmatpush1.msra.mxu0 %v305
    %307 = vmatprep.subr.mxu0 0.0
    %v308 = vand.u32 %v104, 4294901760
    %v309 = vsub.f32 %v104, %v308
    %v310 = vand.u32 %v309, 4294901760
    %v311 = vsub.f32 %v309, %v310
    %v312 = vand.u32 %v311, 4294901760
    %313 = vmatpush1.msra.mxu0 %v312
    %314 = vmatprep.subr.mxu0 0.0
    %v315 = vand.u32 %v105, 4294901760
    %v316 = vsub.f32 %v105, %v315
    %v317 = vand.u32 %v316, 4294901760
    %v318 = vsub.f32 %v316, %v317
    %v319 = vand.u32 %v318, 4294901760
    %320 = vmatpush1.msra.mxu0 %v319
    %321 = vmatprep.subr.mxu0 0.0
    %v322 = vand.u32 %v106, 4294901760
    %v323 = vsub.f32 %v106, %v322
    %v324 = vand.u32 %v323, 4294901760
    %v325 = vsub.f32 %v323, %v324
    %v326 = vand.u32 %v325, 4294901760
    %327 = vmatpush1.msra.mxu0 %v326
    %328 = vmatprep.subr.mxu0 0.0
    %v329 = vand.u32 %v107, 4294901760
    %v330 = vsub.f32 %v107, %v329
    %v331 = vand.u32 %v330, 4294901760
    %v332 = vsub.f32 %v330, %v331
    %v333 = vand.u32 %v332, 4294901760
    %334 = vmatpush1.msra.mxu0 %v333
    %335 = vmatprep.subr.mxu0 0.0
    %v336 = vand.u32 %v108, 4294901760
    %v337 = vsub.f32 %v108, %v336
    %v338 = vand.u32 %v337, 4294901760
    %v339 = vsub.f32 %v337, %v338
    %v340 = vand.u32 %v339, 4294901760
    %341 = vmatpush1.msra.mxu0 %v340
    %342 = vmatprep.subr.mxu0 0.0
    %v343 = vand.u32 %v109, 4294901760
    %v344 = vsub.f32 %v109, %v343
    %v345 = vand.u32 %v344, 4294901760
    %v346 = vsub.f32 %v344, %v345
    %v347 = vand.u32 %v346, 4294901760
    %348 = vmatpush1.msra.mxu0 %v347
    %349 = vmatprep.subr.mxu0 0.0
    %v350 = vand.u32 %v110, 4294901760
    %v351 = vsub.f32 %v110, %v350
    %v352 = vand.u32 %v351, 4294901760
    %v353 = vsub.f32 %v351, %v352
    %v354 = vand.u32 %v353, 4294901760
    %355 = vmatpush1.msra.mxu0 %v354
    %356 = vmatprep.subr.mxu0 0.0
    %v357 = vand.u32 %v111, 4294901760
    %v358 = vsub.f32 %v111, %v357
    %v359 = vand.u32 %v358, 4294901760
    %v360 = vsub.f32 %v358, %v359
    %v361 = vand.u32 %v360, 4294901760
    %362 = vmatpush1.msra.mxu0 %v361
    %363 = vmatprep.subr.mxu0 0.0
    %v364 = vand.u32 %v112, 4294901760
    %v365 = vsub.f32 %v112, %v364
    %v366 = vand.u32 %v365, 4294901760
    %v367 = vsub.f32 %v365, %v366
    %v368 = vand.u32 %v367, 4294901760
    %369 = vmatpush1.msra.mxu0 %v368
    %370 = vmatprep.subr.mxu0 0.0
    %v371 = vand.u32 %v113, 4294901760
    %v372 = vsub.f32 %v113, %v371
    %v373 = vand.u32 %v372, 4294901760
    %v374 = vsub.f32 %v372, %v373
    %v375 = vand.u32 %v374, 4294901760
    %376 = vmatpush1.msra.mxu0 %v375
    %377 = vmatprep.subr.mxu0 0.0
    %v378 = vand.u32 %v114, 4294901760
    %v379 = vsub.f32 %v114, %v378
    %v380 = vand.u32 %v379, 4294901760
    %v381 = vsub.f32 %v379, %v380
    %v382 = vand.u32 %v381, 4294901760
    %383 = vmatpush1.msra.mxu0 %v382
    %384 = vmatprep.subr.mxu0 0.0
    %v385 = vand.u32 %v115, 4294901760
    %v386 = vsub.f32 %v115, %v385
    %v387 = vand.u32 %v386, 4294901760
    %v388 = vsub.f32 %v386, %v387
    %v389 = vand.u32 %v388, 4294901760
    %390 = vmatpush1.msra.mxu0 %v389
    %391 = vmatprep.subr.mxu0 0.0
    %v392 = vand.u32 %v116, 4294901760
    %v393 = vsub.f32 %v116, %v392
    %v394 = vand.u32 %v393, 4294901760
    %v395 = vsub.f32 %v393, %v394
    %v396 = vand.u32 %v395, 4294901760
    %397 = vmatpush1.msra.mxu0 %v396
    %398 = vmatprep.subr.mxu0 0.0
    %v399 = vand.u32 %v117, 4294901760
    %v400 = vsub.f32 %v117, %v399
    %v401 = vand.u32 %v400, 4294901760
    %v402 = vsub.f32 %v400, %v401
    %v403 = vand.u32 %v402, 4294901760
    %404 = vmatpush1.msra.mxu0 %v403
    %405 = vmatprep.subr.mxu0 0.0
    %v406 = vand.u32 %v118, 4294901760
    %v407 = vsub.f32 %v118, %v406
    %v408 = vand.u32 %v407, 4294901760
    %v409 = vsub.f32 %v407, %v408
    %v410 = vand.u32 %v409, 4294901760
    %411 = vmatpush1.msra.mxu0 %v410
    %412 = vmatprep.subr.mxu0 0.0
    %413 = vmatpush1.msra.mxu0 0.0
    %414 = vmatprep.subr.mxu0 0.0
    %415 = vmatpush1.msra.mxu0 0.0
    %416 = vmatprep.subr.mxu0 0.0
    %417 = vmatpush1.msra.mxu0 0.0
    %418 = vmatprep.subr.mxu0 0.0
    %419 = vmatpush1.msra.mxu0 0.0
    %420 = vmatprep.subr.mxu0 0.0
    %421 = vmatpush1.msra.mxu0 0.0
    %422 = vmatprep.subr.mxu0 0.0
    %423 = vmatpush1.msra.mxu0 0.0
    %424 = vmatprep.subr.mxu0 0.0
    %425 = vmatpush1.msra.mxu0 0.0
    %426 = vmatprep.subr.mxu0 0.0
    %427 = vmatpush1.msra.mxu0 0.0
    %428 = vmatprep.subr.mxu0 0.0
    %429 = vmatpush1.msra.mxu0 0.0
    %430 = vmatprep.subr.mxu0 0.0
    %431 = vmatpush1.msra.mxu0 0.0
    %432 = vmatprep.subr.mxu0 0.0
    %433 = vmatpush1.msra.mxu0 0.0
    %434 = vmatprep.subr.mxu0 0.0
    %435 = vmatpush1.msra.mxu0 0.0
    %436 = vmatprep.subr.mxu0 0.0
    %437 = vmatpush1.msra.mxu0 0.0
    %438 = vmatprep.subr.mxu0 0.0
    %439 = vmatpush1.msra.mxu0 0.0
    %440 = vmatprep.subr.mxu0 0.0
    %441 = vmatpush1.msra.mxu0 0.0
    %442 = vmatprep.subr.mxu0 0.0
    %443 = vmatpush1.msra.mxu0 0.0
    %444 = vmatprep.mubr.f32.mxu0 0.0
    %v445 = vand.u32 %v93, 4294901760
    %446 = vmatmul.mubr.f32.gmra.mrb[0].mxu0 %v445
    %v447 = vpop.f32.mrb[0].mxu0
    %v448 = vadd.f32 %v207, %v447
    %v449 = vpop.f32.mrb[0].mxu0
    %450 = vmatprep.mubr.f32.mxu0 0.0
    %v451 = vand.u32 %v94, 4294901760
    %452 = vmatmul.mubr.f32.gmra.mrb[0].mxu0 %v451
    %v453 = vpop.f32.mrb[0].mxu0
    %v454 = vadd.f32 %v217, %v453
    %v455 = vpop.f32.mrb[0].mxu0
    %456 = vmatprep.mubr.f32.mxu0 0.0
    %v457 = vand.u32 %v95, 4294901760
    %458 = vmatmul.mubr.f32.gmra.mrb[0].mxu0 %v457
    %v459 = vpop.f32.mrb[0].mxu0
    %v460 = vadd.f32 %v227, %v459
    %v461 = vpop.f32.mrb[0].mxu0
    %462 = vmatprep.mubr.f32.mxu0 0.0
    %v463 = vand.u32 %v96, 4294901760
    %464 = vmatmul.mubr.f32.gmra.mrb[0].mxu0 %v463
    %v465 = vpop.f32.mrb[0].mxu0
    %v466 = vadd.f32 %v237, %v465
    %v467 = vpop.f32.mrb[0].mxu0
    %468 = vmatprep.mubr.f32.mxu0 0.0
    %v469 = vand.u32 %v97, 4294901760
    %470 = vmatmul.mubr.f32.gmra.mrb[0].mxu0 %v469
    %v471 = vpop.f32.mrb[0].mxu0
    %v472 = vadd.f32 %v247, %v471
    %v473 = vpop.f32.mrb[0].mxu0
    %474 = vmatprep.mubr.f32.mxu0 0.0
    %v475 = vand.u32 %v98, 4294901760
    %476 = vmatmul.mubr.f32.gmra.mrb[0].mxu0 %v475
    %v477 = vpop.f32.mrb[0].mxu0
    %v478 = vadd.f32 %v257, %v477
    %v479 = vpop.f32.mrb[0].mxu0
    %480 = vmatprep.mubr.f32.mxu0 0.0
    %v481 = vand.u32 %v99, 4294901760
    %482 = vmatmul.mubr.f32.gmra.mrb[0].mxu0 %v481
    %v483 = vpop.f32.mrb[0].mxu0
    %v484 = vadd.f32 %v267, %v483
    %v485 = vpop.f32.mrb[0].mxu0
    %486 = vmatprep.mubr.f32.mxu0 0.0
    %v487 = vand.u32 %v100, 4294901760
    %488 = vmatmul.mubr.f32.gmra.mrb[0].mxu0 %v487
    %v489 = vpop.f32.mrb[0].mxu0
    %v490 = vadd.f32 %v277, %v489
    %v491 = vpop.f32.mrb[0].mxu0
    %492 = vmatprep.mubr.f32.mxu0 0.0
    %v493 = vand.u32 %v101, 4294901760
    %494 = vmatmul.mubr.f32.gmra.mrb[0].mxu0 %v493
    %v495 = vpop.f32.mrb[0].mxu0
    %v496 = vadd.f32 %v287, %v495
    %v497 = vpop.f32.mrb[0].mxu0
    %498 = vmatprep.mubr.f32.mxu0 0.0
    %v499 = vand.u32 %v102, 4294901760
    %500 = vmatmul.mubr.f32.gmra.mrb[0].mxu0 %v499
    %v501 = vpop.f32.mrb[0].mxu0
    %v502 = vadd.f32 %v297, %v501
    %v503 = vpop.f32.mrb[0].mxu0
    %504 = vdwg.mxu0
    %505 = vmatprep.subr.mxu0 0.0
    %v506 = vand.u32 %v103, 4294901760
    %v507 = vsub.f32 %v103, %v506
    %508 = vmatpush1.msra.mxu0 %v507
    %509 = vmatprep.subr.mxu0 0.0
    %v510 = vand.u32 %v104, 4294901760
    %v511 = vsub.f32 %v104, %v510
    %512 = vmatpush1.msra.mxu0 %v511
    %513 = vmatprep.subr.mxu0 0.0
    %v514 = vand.u32 %v105, 4294901760
    %v515 = vsub.f32 %v105, %v514
    %516 = vmatpush1.msra.mxu0 %v515
    %517 = vmatprep.subr.mxu0 0.0
    %v518 = vand.u32 %v106, 4294901760
    %v519 = vsub.f32 %v106, %v518
    %520 = vmatpush1.msra.mxu0 %v519
    %521 = vmatprep.subr.mxu0 0.0
    %v522 = vand.u32 %v107, 4294901760
    %v523 = vsub.f32 %v107, %v522
    %524 = vmatpush1.msra.mxu0 %v523
    %525 = vmatprep.subr.mxu0 0.0
    %v526 = vand.u32 %v108, 4294901760
    %v527 = vsub.f32 %v108, %v526
    %528 = vmatpush1.msra.mxu0 %v527
    %529 = vmatprep.subr.mxu0 0.0
    %v530 = vand.u32 %v109, 4294901760
    %v531 = vsub.f32 %v109, %v530
    %532 = vmatpush1.msra.mxu0 %v531
    %533 = vmatprep.subr.mxu0 0.0
    %v534 = vand.u32 %v110, 4294901760
    %v535 = vsub.f32 %v110, %v534
    %536 = vmatpush1.msra.mxu0 %v535
    %537 = vmatprep.subr.mxu0 0.0
    %v538 = vand.u32 %v111, 4294901760
    %v539 = vsub.f32 %v111, %v538
    %540 = vmatpush1.msra.mxu0 %v539
    %541 = vmatprep.subr.mxu0 0.0
    %v542 = vand.u32 %v112, 4294901760
    %v543 = vsub.f32 %v112, %v542
    %544 = vmatpush1.msra.mxu0 %v543
    %545 = vmatprep.subr.mxu0 0.0
    %v546 = vand.u32 %v113, 4294901760
    %v547 = vsub.f32 %v113, %v546
    %548 = vmatpush1.msra.mxu0 %v547
    %549 = vmatprep.subr.mxu0 0.0
    %v550 = vand.u32 %v114, 4294901760
    %v551 = vsub.f32 %v114, %v550
    %552 = vmatpush1.msra.mxu0 %v551
    %553 = vmatprep.subr.mxu0 0.0
    %v554 = vand.u32 %v115, 4294901760
    %v555 = vsub.f32 %v115, %v554
    %556 = vmatpush1.msra.mxu0 %v555
    %557 = vmatprep.subr.mxu0 0.0
    %v558 = vand.u32 %v116, 4294901760
    %v559 = vsub.f32 %v116, %v558
    %560 = vmatpush1.msra.mxu0 %v559
    %561 = vmatprep.subr.mxu0 0.0
    %v562 = vand.u32 %v117, 4294901760
    %v563 = vsub.f32 %v117, %v562
    %564 = vmatpush1.msra.mxu0 %v563
    %565 = vmatprep.subr.mxu0 0.0
    %v566 = vand.u32 %v118, 4294901760
    %v567 = vsub.f32 %v118, %v566
    %568 = vmatpush1.msra.mxu0 %v567
    %569 = vmatprep.subr.mxu0 0.0
    %570 = vmatpush1.msra.mxu0 0.0
    %571 = vmatprep.subr.mxu0 0.0
    %572 = vmatpush1.msra.mxu0 0.0
    %573 = vmatprep.subr.mxu0 0.0
    %574 = vmatpush1.msra.mxu0 0.0
    %575 = vmatprep.subr.mxu0 0.0
    %576 = vmatpush1.msra.mxu0 0.0
    %577 = vmatprep.subr.mxu0 0.0
    %578 = vmatpush1.msra.mxu0 0.0
    %579 = vmatprep.subr.mxu0 0.0
    %580 = vmatpush1.msra.mxu0 0.0
    %581 = vmatprep.subr.mxu0 0.0
    %582 = vmatpush1.msra.mxu0 0.0
    %583 = vmatprep.subr.mxu0 0.0
    %584 = vmatpush1.msra.mxu0 0.0
    %585 = vmatprep.subr.mxu0 0.0
    %586 = vmatpush1.msra.mxu0 0.0
    %587 = vmatprep.subr.mxu0 0.0
    %588 = vmatpush1.msra.mxu0 0.0
    %589 = vmatprep.subr.mxu0 0.0
    %590 = vmatpush1.msra.mxu0 0.0
    %591 = vmatprep.subr.mxu0 0.0
    %592 = vmatpush1.msra.mxu0 0.0
    %593 = vmatprep.subr.mxu0 0.0
    %594 = vmatpush1.msra.mxu0 0.0
    %595 = vmatprep.subr.mxu0 0.0
    %596 = vmatpush1.msra.mxu0 0.0
    %597 = vmatprep.subr.mxu0 0.0
    %598 = vmatpush1.msra.mxu0 0.0
    %599 = vmatprep.subr.mxu0 0.0
    %600 = vmatpush1.msra.mxu0 0.0
    %601 = vmatprep.mubr.f32.mxu0 0.0
    %v602 = vand.u32 %v93, 4294901760
    %v603 = vsub.f32 %v93, %v602
    %604 = vmatmul.mubr.f32.gmra.mrb[0].mxu0 %v603
    %v605 = vpop.f32.mrb[0].mxu0
    %v606 = vadd.f32 %v448, %v605
    %v607 = vpop.f32.mrb[0].mxu0
    %608 = vmatprep.mubr.f32.mxu0 0.0
    %v609 = vand.u32 %v94, 4294901760
    %v610 = vsub.f32 %v94, %v609
    %611 = vmatmul.mubr.f32.gmra.mrb[0].mxu0 %v610
    %v612 = vpop.f32.mrb[0].mxu0
    %v613 = vadd.f32 %v454, %v612
    %v614 = vpop.f32.mrb[0].mxu0
    %615 = vmatprep.mubr.f32.mxu0 0.0
    %v616 = vand.u32 %v95, 4294901760
    %v617 = vsub.f32 %v95, %v616
    %618 = vmatmul.mubr.f32.gmra.mrb[0].mxu0 %v617
    %v619 = vpop.f32.mrb[0].mxu0
    %v620 = vadd.f32 %v460, %v619
    %v621 = vpop.f32.mrb[0].mxu0
    %622 = vmatprep.mubr.f32.mxu0 0.0
    %v623 = vand.u32 %v96, 4294901760
    %v624 = vsub.f32 %v96, %v623
    %625 = vmatmul.mubr.f32.gmra.mrb[0].mxu0 %v624
    %v626 = vpop.f32.mrb[0].mxu0
    %v627 = vadd.f32 %v466, %v626
    %v628 = vpop.f32.mrb[0].mxu0
    %629 = vmatprep.mubr.f32.mxu0 0.0
    %v630 = vand.u32 %v97, 4294901760
    %v631 = vsub.f32 %v97, %v630
    %632 = vmatmul.mubr.f32.gmra.mrb[0].mxu0 %v631
    %v633 = vpop.f32.mrb[0].mxu0
    %v634 = vadd.f32 %v472, %v633
    %v635 = vpop.f32.mrb[0].mxu0
    %636 = vmatprep.mubr.f32.mxu0 0.0
    %v637 = vand.u32 %v98, 4294901760
    %v638 = vsub.f32 %v98, %v637
    %639 = vmatmul.mubr.f32.gmra.mrb[0].mxu0 %v638
    %v640 = vpop.f32.mrb[0].mxu0
    %v641 = vadd.f32 %v478, %v640
    %v642 = vpop.f32.mrb[0].mxu0
    %643 = vmatprep.mubr.f32.mxu0 0.0
    %v644 = vand.u32 %v99, 4294901760
    %v645 = vsub.f32 %v99, %v644
    %646 = vmatmul.mubr.f32.gmra.mrb[0].mxu0 %v645
    %v647 = vpop.f32.mrb[0].mxu0
    %v648 = vadd.f32 %v484, %v647
    %v649 = vpop.f32.mrb[0].mxu0
    %650 = vmatprep.mubr.f32.mxu0 0.0
    %v651 = vand.u32 %v100, 4294901760
    %v652 = vsub.f32 %v100, %v651
    %653 = vmatmul.mubr.f32.gmra.mrb[0].mxu0 %v652
    %v654 = vpop.f32.mrb[0].mxu0
    %v655 = vadd.f32 %v490, %v654
    %v656 = vpop.f32.mrb[0].mxu0
    %657 = vmatprep.mubr.f32.mxu0 0.0
    %v658 = vand.u32 %v101, 4294901760
    %v659 = vsub.f32 %v101, %v658
    %660 = vmatmul.mubr.f32.gmra.mrb[0].mxu0 %v659
    %v661 = vpop.f32.mrb[0].mxu0
    %v662 = vadd.f32 %v496, %v661
    %v663 = vpop.f32.mrb[0].mxu0
    %664 = vmatprep.mubr.f32.mxu0 0.0
    %v665 = vand.u32 %v102, 4294901760
    %v666 = vsub.f32 %v102, %v665
    %667 = vmatmul.mubr.f32.gmra.mrb[0].mxu0 %v666
    %v668 = vpop.f32.mrb[0].mxu0
    %v669 = vadd.f32 %v502, %v668
    %v670 = vpop.f32.mrb[0].mxu0
    %671 = vdwg.mxu0
    %672 = vmatprep.subr.mxu0 0.0
    %v673 = vand.u32 %v103, 4294901760
    %674 = vmatpush1.msra.mxu0 %v673
    %675 = vmatprep.subr.mxu0 0.0
    %v676 = vand.u32 %v104, 4294901760
    %677 = vmatpush1.msra.mxu0 %v676
    %678 = vmatprep.subr.mxu0 0.0
    %v679 = vand.u32 %v105, 4294901760
    %680 = vmatpush1.msra.mxu0 %v679
    %681 = vmatprep.subr.mxu0 0.0
    %v682 = vand.u32 %v106, 4294901760
    %683 = vmatpush1.msra.mxu0 %v682
    %684 = vmatprep.subr.mxu0 0.0
    %v685 = vand.u32 %v107, 4294901760
    %686 = vmatpush1.msra.mxu0 %v685
    %687 = vmatprep.subr.mxu0 0.0
    %v688 = vand.u32 %v108, 4294901760
    %689 = vmatpush1.msra.mxu0 %v688
    %690 = vmatprep.subr.mxu0 0.0
    %v691 = vand.u32 %v109, 4294901760
    %692 = vmatpush1.msra.mxu0 %v691
    %693 = vmatprep.subr.mxu0 0.0
    %v694 = vand.u32 %v110, 4294901760
    %695 = vmatpush1.msra.mxu0 %v694
    %696 = vmatprep.subr.mxu0 0.0
    %v697 = vand.u32 %v111, 4294901760
    %698 = vmatpush1.msra.mxu0 %v697
    %699 = vmatprep.subr.mxu0 0.0
    %v700 = vand.u32 %v112, 4294901760
    %701 = vmatpush1.msra.mxu0 %v700
    %702 = vmatprep.subr.mxu0 0.0
    %v703 = vand.u32 %v113, 4294901760
    %704 = vmatpush1.msra.mxu0 %v703
    %705 = vmatprep.subr.mxu0 0.0
    %v706 = vand.u32 %v114, 4294901760
    %707 = vmatpush1.msra.mxu0 %v706
    %708 = vmatprep.subr.mxu0 0.0
    %v709 = vand.u32 %v115, 4294901760
    %710 = vmatpush1.msra.mxu0 %v709
    %711 = vmatprep.subr.mxu0 0.0
    %v712 = vand.u32 %v116, 4294901760
    %713 = vmatpush1.msra.mxu0 %v712
    %714 = vmatprep.subr.mxu0 0.0
    %v715 = vand.u32 %v117, 4294901760
    %716 = vmatpush1.msra.mxu0 %v715
    %717 = vmatprep.subr.mxu0 0.0
    %v718 = vand.u32 %v118, 4294901760
    %719 = vmatpush1.msra.mxu0 %v718
    %720 = vmatprep.subr.mxu0 0.0
    %721 = vmatpush1.msra.mxu0 0.0
    %722 = vmatprep.subr.mxu0 0.0
    %723 = vmatpush1.msra.mxu0 0.0
    %724 = vmatprep.subr.mxu0 0.0
    %725 = vmatpush1.msra.mxu0 0.0
    %726 = vmatprep.subr.mxu0 0.0
    %727 = vmatpush1.msra.mxu0 0.0
    %728 = vmatprep.subr.mxu0 0.0
    %729 = vmatpush1.msra.mxu0 0.0
    %730 = vmatprep.subr.mxu0 0.0
    %731 = vmatpush1.msra.mxu0 0.0
    %732 = vmatprep.subr.mxu0 0.0
    %733 = vmatpush1.msra.mxu0 0.0
    %734 = vmatprep.subr.mxu0 0.0
    %735 = vmatpush1.msra.mxu0 0.0
    %736 = vmatprep.subr.mxu0 0.0
    %737 = vmatpush1.msra.mxu0 0.0
    %738 = vmatprep.subr.mxu0 0.0
    %739 = vmatpush1.msra.mxu0 0.0
    %740 = vmatprep.subr.mxu0 0.0
    %741 = vmatpush1.msra.mxu0 0.0
    %742 = vmatprep.subr.mxu0 0.0
    %743 = vmatpush1.msra.mxu0 0.0
    %744 = vmatprep.subr.mxu0 0.0
    %745 = vmatpush1.msra.mxu0 0.0
    %746 = vmatprep.subr.mxu0 0.0
    %747 = vmatpush1.msra.mxu0 0.0
    %748 = vmatprep.subr.mxu0 0.0
    %749 = vmatpush1.msra.mxu0 0.0
    %750 = vmatprep.subr.mxu0 0.0
    %751 = vmatpush1.msra.mxu0 0.0
    %752 = vmatprep.mubr.f32.mxu0 0.0
    %v753 = vand.u32 %v93, 4294901760
    %v754 = vsub.f32 %v93, %v753
    %v755 = vand.u32 %v754, 4294901760
    %756 = vmatmul.mubr.f32.gmra.mrb[0].mxu0 %v755
    %v757 = vpop.f32.mrb[0].mxu0
    %v758 = vadd.f32 %v606, %v757
    %v759 = vpop.f32.mrb[0].mxu0
    %760 = vmatprep.mubr.f32.mxu0 0.0
    %v761 = vand.u32 %v94, 4294901760
    %v762 = vsub.f32 %v94, %v761
    %v763 = vand.u32 %v762, 4294901760
    %764 = vmatmul.mubr.f32.gmra.mrb[0].mxu0 %v763
    %v765 = vpop.f32.mrb[0].mxu0
    %v766 = vadd.f32 %v613, %v765
    %v767 = vpop.f32.mrb[0].mxu0
    %768 = vmatprep.mubr.f32.mxu0 0.0
    %v769 = vand.u32 %v95, 4294901760
    %v770 = vsub.f32 %v95, %v769
    %v771 = vand.u32 %v770, 4294901760
    %772 = vmatmul.mubr.f32.gmra.mrb[0].mxu0 %v771
    %v773 = vpop.f32.mrb[0].mxu0
    %v774 = vadd.f32 %v620, %v773
    %v775 = vpop.f32.mrb[0].mxu0
    %776 = vmatprep.mubr.f32.mxu0 0.0
    %v777 = vand.u32 %v96, 4294901760
    %v778 = vsub.f32 %v96, %v777
    %v779 = vand.u32 %v778, 4294901760
    %780 = vmatmul.mubr.f32.gmra.mrb[0].mxu0 %v779
    %v781 = vpop.f32.mrb[0].mxu0
    %v782 = vadd.f32 %v627, %v781
    %v783 = vpop.f32.mrb[0].mxu0
    %784 = vmatprep.mubr.f32.mxu0 0.0
    %v785 = vand.u32 %v97, 4294901760
    %v786 = vsub.f32 %v97, %v785
    %v787 = vand.u32 %v786, 4294901760
    %788 = vmatmul.mubr.f32.gmra.mrb[0].mxu0 %v787
    %v789 = vpop.f32.mrb[0].mxu0
    %v790 = vadd.f32 %v634, %v789
    %v791 = vpop.f32.mrb[0].mxu0
    %792 = vmatprep.mubr.f32.mxu0 0.0
    %v793 = vand.u32 %v98, 4294901760
    %v794 = vsub.f32 %v98, %v793
    %v795 = vand.u32 %v794, 4294901760
    %796 = vmatmul.mubr.f32.gmra.mrb[0].mxu0 %v795
    %v797 = vpop.f32.mrb[0].mxu0
    %v798 = vadd.f32 %v641, %v797
    %v799 = vpop.f32.mrb[0].mxu0
    %800 = vmatprep.mubr.f32.mxu0 0.0
    %v801 = vand.u32 %v99, 4294901760
    %v802 = vsub.f32 %v99, %v801
    %v803 = vand.u32 %v802, 4294901760
    %804 = vmatmul.mubr.f32.gmra.mrb[0].mxu0 %v803
    %v805 = vpop.f32.mrb[0].mxu0
    %v806 = vadd.f32 %v648, %v805
    %v807 = vpop.f32.mrb[0].mxu0
    %808 = vmatprep.mubr.f32.mxu0 0.0
    %v809 = vand.u32 %v100, 4294901760
    %v810 = vsub.f32 %v100, %v809
    %v811 = vand.u32 %v810, 4294901760
    %812 = vmatmul.mubr.f32.gmra.mrb[0].mxu0 %v811
    %v813 = vpop.f32.mrb[0].mxu0
    %v814 = vadd.f32 %v655, %v813
    %v815 = vpop.f32.mrb[0].mxu0
    %816 = vmatprep.mubr.f32.mxu0 0.0
    %v817 = vand.u32 %v101, 4294901760
    %v818 = vsub.f32 %v101, %v817
    %v819 = vand.u32 %v818, 4294901760
    %820 = vmatmul.mubr.f32.gmra.mrb[0].mxu0 %v819
    %v821 = vpop.f32.mrb[0].mxu0
    %v822 = vadd.f32 %v662, %v821
    %v823 = vpop.f32.mrb[0].mxu0
    %824 = vmatprep.mubr.f32.mxu0 0.0
    %v825 = vand.u32 %v102, 4294901760
    %v826 = vsub.f32 %v102, %v825
    %v827 = vand.u32 %v826, 4294901760
    %828 = vmatmul.mubr.f32.gmra.mrb[0].mxu0 %v827
    %v829 = vpop.f32.mrb[0].mxu0
    %v830 = vadd.f32 %v669, %v829
    %v831 = vpop.f32.mrb[0].mxu0
    %832 = vdwg.mxu0
    %833 = vmatprep.subr.mxu0 0.0
    %v834 = vand.u32 %v103, 4294901760
    %v835 = vsub.f32 %v103, %v834
    %v836 = vand.u32 %v835, 4294901760
    %837 = vmatpush1.msra.mxu0 %v836
    %838 = vmatprep.subr.mxu0 0.0
    %v839 = vand.u32 %v104, 4294901760
    %v840 = vsub.f32 %v104, %v839
    %v841 = vand.u32 %v840, 4294901760
    %842 = vmatpush1.msra.mxu0 %v841
    %843 = vmatprep.subr.mxu0 0.0
    %v844 = vand.u32 %v105, 4294901760
    %v845 = vsub.f32 %v105, %v844
    %v846 = vand.u32 %v845, 4294901760
    %847 = vmatpush1.msra.mxu0 %v846
    %848 = vmatprep.subr.mxu0 0.0
    %v849 = vand.u32 %v106, 4294901760
    %v850 = vsub.f32 %v106, %v849
    %v851 = vand.u32 %v850, 4294901760
    %852 = vmatpush1.msra.mxu0 %v851
    %853 = vmatprep.subr.mxu0 0.0
    %v854 = vand.u32 %v107, 4294901760
    %v855 = vsub.f32 %v107, %v854
    %v856 = vand.u32 %v855, 4294901760
    %857 = vmatpush1.msra.mxu0 %v856
    %858 = vmatprep.subr.mxu0 0.0
    %v859 = vand.u32 %v108, 4294901760
    %v860 = vsub.f32 %v108, %v859
    %v861 = vand.u32 %v860, 4294901760
    %862 = vmatpush1.msra.mxu0 %v861
    %863 = vmatprep.subr.mxu0 0.0
    %v864 = vand.u32 %v109, 4294901760
    %v865 = vsub.f32 %v109, %v864
    %v866 = vand.u32 %v865, 4294901760
    %867 = vmatpush1.msra.mxu0 %v866
    %868 = vmatprep.subr.mxu0 0.0
    %v869 = vand.u32 %v110, 4294901760
    %v870 = vsub.f32 %v110, %v869
    %v871 = vand.u32 %v870, 4294901760
    %872 = vmatpush1.msra.mxu0 %v871
    %873 = vmatprep.subr.mxu0 0.0
    %v874 = vand.u32 %v111, 4294901760
    %v875 = vsub.f32 %v111, %v874
    %v876 = vand.u32 %v875, 4294901760
    %877 = vmatpush1.msra.mxu0 %v876
    %878 = vmatprep.subr.mxu0 0.0
    %v879 = vand.u32 %v112, 4294901760
    %v880 = vsub.f32 %v112, %v879
    %v881 = vand.u32 %v880, 4294901760
    %882 = vmatpush1.msra.mxu0 %v881
    %883 = vmatprep.subr.mxu0 0.0
    %v884 = vand.u32 %v113, 4294901760
    %v885 = vsub.f32 %v113, %v884
    %v886 = vand.u32 %v885, 4294901760
    %887 = vmatpush1.msra.mxu0 %v886
    %888 = vmatprep.subr.mxu0 0.0
    %v889 = vand.u32 %v114, 4294901760
    %v890 = vsub.f32 %v114, %v889
    %v891 = vand.u32 %v890, 4294901760
    %892 = vmatpush1.msra.mxu0 %v891
    %893 = vmatprep.subr.mxu0 0.0
    %v894 = vand.u32 %v115, 4294901760
    %v895 = vsub.f32 %v115, %v894
    %v896 = vand.u32 %v895, 4294901760
    %897 = vmatpush1.msra.mxu0 %v896
    %898 = vmatprep.subr.mxu0 0.0
    %v899 = vand.u32 %v116, 4294901760
    %v900 = vsub.f32 %v116, %v899
    %v901 = vand.u32 %v900, 4294901760
    %902 = vmatpush1.msra.mxu0 %v901
    %903 = vmatprep.subr.mxu0 0.0
    %v904 = vand.u32 %v117, 4294901760
    %v905 = vsub.f32 %v117, %v904
    %v906 = vand.u32 %v905, 4294901760
    %907 = vmatpush1.msra.mxu0 %v906
    %908 = vmatprep.subr.mxu0 0.0
    %v909 = vand.u32 %v118, 4294901760
    %v910 = vsub.f32 %v118, %v909
    %v911 = vand.u32 %v910, 4294901760
    %912 = vmatpush1.msra.mxu0 %v911
    %913 = vmatprep.subr.mxu0 0.0
    %914 = vmatpush1.msra.mxu0 0.0
    %915 = vmatprep.subr.mxu0 0.0
    %916 = vmatpush1.msra.mxu0 0.0
    %917 = vmatprep.subr.mxu0 0.0
    %918 = vmatpush1.msra.mxu0 0.0
    %919 = vmatprep.subr.mxu0 0.0
    %920 = vmatpush1.msra.mxu0 0.0
    %921 = vmatprep.subr.mxu0 0.0
    %922 = vmatpush1.msra.mxu0 0.0
    %923 = vmatprep.subr.mxu0 0.0
    %924 = vmatpush1.msra.mxu0 0.0
    %925 = vmatprep.subr.mxu0 0.0
    %926 = vmatpush1.msra.mxu0 0.0
    %927 = vmatprep.subr.mxu0 0.0
    %928 = vmatpush1.msra.mxu0 0.0
    %929 = vmatprep.subr.mxu0 0.0
    %930 = vmatpush1.msra.mxu0 0.0
    %931 = vmatprep.subr.mxu0 0.0
    %932 = vmatpush1.msra.mxu0 0.0
    %933 = vmatprep.subr.mxu0 0.0
    %934 = vmatpush1.msra.mxu0 0.0
    %935 = vmatprep.subr.mxu0 0.0
    %936 = vmatpush1.msra.mxu0 0.0
    %937 = vmatprep.subr.mxu0 0.0
    %938 = vmatpush1.msra.mxu0 0.0
    %939 = vmatprep.subr.mxu0 0.0
    %940 = vmatpush1.msra.mxu0 0.0
    %941 = vmatprep.subr.mxu0 0.0
    %942 = vmatpush1.msra.mxu0 0.0
    %943 = vmatprep.subr.mxu0 0.0
    %944 = vmatpush1.msra.mxu0 0.0
    %945 = vmatprep.mubr.f32.mxu0 0.0
    %v946 = vand.u32 %v93, 4294901760
    %947 = vmatmul.mubr.f32.gmra.mrb[0].mxu0 %v946
    %v948 = vpop.f32.mrb[0].mxu0
    %v949 = vadd.f32 %v758, %v948
    %v950 = vpop.f32.mrb[0].mxu0
    %951 = vmatprep.mubr.f32.mxu0 0.0
    %v952 = vand.u32 %v94, 4294901760
    %953 = vmatmul.mubr.f32.gmra.mrb[0].mxu0 %v952
    %v954 = vpop.f32.mrb[0].mxu0
    %v955 = vadd.f32 %v766, %v954
    %v956 = vpop.f32.mrb[0].mxu0
    %957 = vmatprep.mubr.f32.mxu0 0.0
    %v958 = vand.u32 %v95, 4294901760
    %959 = vmatmul.mubr.f32.gmra.mrb[0].mxu0 %v958
    %v960 = vpop.f32.mrb[0].mxu0
    %v961 = vadd.f32 %v774, %v960
    %v962 = vpop.f32.mrb[0].mxu0
    %963 = vmatprep.mubr.f32.mxu0 0.0
    %v964 = vand.u32 %v96, 4294901760
    %965 = vmatmul.mubr.f32.gmra.mrb[0].mxu0 %v964
    %v966 = vpop.f32.mrb[0].mxu0
    %v967 = vadd.f32 %v782, %v966
    %v968 = vpop.f32.mrb[0].mxu0
    %969 = vmatprep.mubr.f32.mxu0 0.0
    %v970 = vand.u32 %v97, 4294901760
    %971 = vmatmul.mubr.f32.gmra.mrb[0].mxu0 %v970
    %v972 = vpop.f32.mrb[0].mxu0
    %v973 = vadd.f32 %v790, %v972
    %v974 = vpop.f32.mrb[0].mxu0
    %975 = vmatprep.mubr.f32.mxu0 0.0
    %v976 = vand.u32 %v98, 4294901760
    %977 = vmatmul.mubr.f32.gmra.mrb[0].mxu0 %v976
    %v978 = vpop.f32.mrb[0].mxu0
    %v979 = vadd.f32 %v798, %v978
    %v980 = vpop.f32.mrb[0].mxu0
    %981 = vmatprep.mubr.f32.mxu0 0.0
    %v982 = vand.u32 %v99, 4294901760
    %983 = vmatmul.mubr.f32.gmra.mrb[0].mxu0 %v982
    %v984 = vpop.f32.mrb[0].mxu0
    %v985 = vadd.f32 %v806, %v984
    %v986 = vpop.f32.mrb[0].mxu0
    %987 = vmatprep.mubr.f32.mxu0 0.0
    %v988 = vand.u32 %v100, 4294901760
    %989 = vmatmul.mubr.f32.gmra.mrb[0].mxu0 %v988
    %v990 = vpop.f32.mrb[0].mxu0
    %v991 = vadd.f32 %v814, %v990
    %v992 = vpop.f32.mrb[0].mxu0
    %993 = vmatprep.mubr.f32.mxu0 0.0
    %v994 = vand.u32 %v101, 4294901760
    %995 = vmatmul.mubr.f32.gmra.mrb[0].mxu0 %v994
    %v996 = vpop.f32.mrb[0].mxu0
    %v997 = vadd.f32 %v822, %v996
    %v998 = vpop.f32.mrb[0].mxu0
    %999 = vmatprep.mubr.f32.mxu0 0.0
    %v1000 = vand.u32 %v102, 4294901760
    %1001 = vmatmul.mubr.f32.gmra.mrb[0].mxu0 %v1000
    %v1002 = vpop.f32.mrb[0].mxu0
    %v1003 = vadd.f32 %v830, %v1002
    %v1004 = vpop.f32.mrb[0].mxu0
    %1005 = vdwg.mxu0
    %1006 = vmatprep.subr.mxu0 0.0
    %v1007 = vand.u32 %v103, 4294901760
    %1008 = vmatpush1.msra.mxu0 %v1007
    %1009 = vmatprep.subr.mxu0 0.0
    %v1010 = vand.u32 %v104, 4294901760
    %1011 = vmatpush1.msra.mxu0 %v1010
    %1012 = vmatprep.subr.mxu0 0.0
    %v1013 = vand.u32 %v105, 4294901760
    %1014 = vmatpush1.msra.mxu0 %v1013
    %1015 = vmatprep.subr.mxu0 0.0
    %v1016 = vand.u32 %v106, 4294901760
    %1017 = vmatpush1.msra.mxu0 %v1016
    %1018 = vmatprep.subr.mxu0 0.0
    %v1019 = vand.u32 %v107, 4294901760
    %1020 = vmatpush1.msra.mxu0 %v1019
    %1021 = vmatprep.subr.mxu0 0.0
    %v1022 = vand.u32 %v108, 4294901760
    %1023 = vmatpush1.msra.mxu0 %v1022
    %1024 = vmatprep.subr.mxu0 0.0
    %v1025 = vand.u32 %v109, 4294901760
    %1026 = vmatpush1.msra.mxu0 %v1025
    %1027 = vmatprep.subr.mxu0 0.0
    %v1028 = vand.u32 %v110, 4294901760
    %1029 = vmatpush1.msra.mxu0 %v1028
    %1030 = vmatprep.subr.mxu0 0.0
    %v1031 = vand.u32 %v111, 4294901760
    %1032 = vmatpush1.msra.mxu0 %v1031
    %1033 = vmatprep.subr.mxu0 0.0
    %v1034 = vand.u32 %v112, 4294901760
    %1035 = vmatpush1.msra.mxu0 %v1034
    %1036 = vmatprep.subr.mxu0 0.0
    %v1037 = vand.u32 %v113, 4294901760
    %1038 = vmatpush1.msra.mxu0 %v1037
    %1039 = vmatprep.subr.mxu0 0.0
    %v1040 = vand.u32 %v114, 4294901760
    %1041 = vmatpush1.msra.mxu0 %v1040
    %1042 = vmatprep.subr.mxu0 0.0
    %v1043 = vand.u32 %v115, 4294901760
    %1044 = vmatpush1.msra.mxu0 %v1043
    %1045 = vmatprep.subr.mxu0 0.0
    %v1046 = vand.u32 %v116, 4294901760
    %1047 = vmatpush1.msra.mxu0 %v1046
    %1048 = vmatprep.subr.mxu0 0.0
    %v1049 = vand.u32 %v117, 4294901760
    %1050 = vmatpush1.msra.mxu0 %v1049
    %1051 = vmatprep.subr.mxu0 0.0
    %v1052 = vand.u32 %v118, 4294901760
    %1053 = vmatpush1.msra.mxu0 %v1052
    %1054 = vmatprep.subr.mxu0 0.0
    %1055 = vmatpush1.msra.mxu0 0.0
    %1056 = vmatprep.subr.mxu0 0.0
    %1057 = vmatpush1.msra.mxu0 0.0
    %1058 = vmatprep.subr.mxu0 0.0
    %1059 = vmatpush1.msra.mxu0 0.0
    %1060 = vmatprep.subr.mxu0 0.0
    %1061 = vmatpush1.msra.mxu0 0.0
    %1062 = vmatprep.subr.mxu0 0.0
    %1063 = vmatpush1.msra.mxu0 0.0
    %1064 = vmatprep.subr.mxu0 0.0
    %1065 = vmatpush1.msra.mxu0 0.0
    %1066 = vmatprep.subr.mxu0 0.0
    %1067 = vmatpush1.msra.mxu0 0.0
    %1068 = vmatprep.subr.mxu0 0.0
    %1069 = vmatpush1.msra.mxu0 0.0
    %1070 = vmatprep.subr.mxu0 0.0
    %1071 = vmatpush1.msra.mxu0 0.0
    %1072 = vmatprep.subr.mxu0 0.0
    %1073 = vmatpush1.msra.mxu0 0.0
    %1074 = vmatprep.subr.mxu0 0.0
    %1075 = vmatpush1.msra.mxu0 0.0
    %1076 = vmatprep.subr.mxu0 0.0
    %1077 = vmatpush1.msra.mxu0 0.0
    %1078 = vmatprep.subr.mxu0 0.0
    %1079 = vmatpush1.msra.mxu0 0.0
    %1080 = vmatprep.subr.mxu0 0.0
    %1081 = vmatpush1.msra.mxu0 0.0
    %1082 = vmatprep.subr.mxu0 0.0
    %1083 = vmatpush1.msra.mxu0 0.0
    %1084 = vmatprep.subr.mxu0 0.0
    %1085 = vmatpush1.msra.mxu0 0.0
    %1086 = vmatprep.mubr.f32.mxu0 0.0
    %v1087 = vand.u32 %v93, 4294901760
    %1088 = vmatmul.mubr.f32.gmra.mrb[0].mxu0 %v1087
    %v1089 = vpop.f32.mrb[0].mxu0
    %v1090 = vadd.f32 %v949, %v1089
    %v1091 = vpop.f32.mrb[0].mxu0
    %1092 = vmatprep.mubr.f32.mxu0 0.0
    %v1093 = vand.u32 %v94, 4294901760
    %1094 = vmatmul.mubr.f32.gmra.mrb[0].mxu0 %v1093
    %v1095 = vpop.f32.mrb[0].mxu0
    %v1096 = vadd.f32 %v955, %v1095
    %v1097 = vpop.f32.mrb[0].mxu0
    %1098 = vmatprep.mubr.f32.mxu0 0.0
    %v1099 = vand.u32 %v95, 4294901760
    %1100 = vmatmul.mubr.f32.gmra.mrb[0].mxu0 %v1099
    %v1101 = vpop.f32.mrb[0].mxu0
    %v1102 = vadd.f32 %v961, %v1101
    %v1103 = vpop.f32.mrb[0].mxu0
    %1104 = vmatprep.mubr.f32.mxu0 0.0
    %v1105 = vand.u32 %v96, 4294901760
    %1106 = vmatmul.mubr.f32.gmra.mrb[0].mxu0 %v1105
    %v1107 = vpop.f32.mrb[0].mxu0
    %v1108 = vadd.f32 %v967, %v1107
    %v1109 = vpop.f32.mrb[0].mxu0
    %1110 = vmatprep.mubr.f32.mxu0 0.0
    %v1111 = vand.u32 %v97, 4294901760
    %1112 = vmatmul.mubr.f32.gmra.mrb[0].mxu0 %v1111
    %v1113 = vpop.f32.mrb[0].mxu0
    %v1114 = vadd.f32 %v973, %v1113
    %v1115 = vpop.f32.mrb[0].mxu0
    %1116 = vmatprep.mubr.f32.mxu0 0.0
    %v1117 = vand.u32 %v98, 4294901760
    %1118 = vmatmul.mubr.f32.gmra.mrb[0].mxu0 %v1117
    %v1119 = vpop.f32.mrb[0].mxu0
    %v1120 = vadd.f32 %v979, %v1119
    %v1121 = vpop.f32.mrb[0].mxu0
    %1122 = vmatprep.mubr.f32.mxu0 0.0
    %v1123 = vand.u32 %v99, 4294901760
    %1124 = vmatmul.mubr.f32.gmra.mrb[0].mxu0 %v1123
    %v1125 = vpop.f32.mrb[0].mxu0
    %v1126 = vadd.f32 %v985, %v1125
    %v1127 = vpop.f32.mrb[0].mxu0
    %1128 = vmatprep.mubr.f32.mxu0 0.0
    %v1129 = vand.u32 %v100, 4294901760
    %1130 = vmatmul.mubr.f32.gmra.mrb[0].mxu0 %v1129
    %v1131 = vpop.f32.mrb[0].mxu0
    %v1132 = vadd.f32 %v991, %v1131
    %v1133 = vpop.f32.mrb[0].mxu0
    %1134 = vmatprep.mubr.f32.mxu0 0.0
    %v1135 = vand.u32 %v101, 4294901760
    %1136 = vmatmul.mubr.f32.gmra.mrb[0].mxu0 %v1135
    %v1137 = vpop.f32.mrb[0].mxu0
    %v1138 = vadd.f32 %v997, %v1137
    %v1139 = vpop.f32.mrb[0].mxu0
    %1140 = vmatprep.mubr.f32.mxu0 0.0
    %v1141 = vand.u32 %v102, 4294901760
    %1142 = vmatmul.mubr.f32.gmra.mrb[0].mxu0 %v1141
    %v1143 = vpop.f32.mrb[0].mxu0
    %v1144 = vadd.f32 %v1003, %v1143
    %v1145 = vpop.f32.mrb[0].mxu0
    %1146 = vdwg.mxu0
    %v1147 = vld [vmem:[#allocation3] sm:$0xff]
    %v1148 = vld [vmem:[#allocation3 + $0x8] sm:$0xff]
    %vm1149 = vcmask 130048
    %v1151 = vsel %vm1149, %v1147, 0
    %v1154 = vsel %vm1149, %v1148, 0
    %1156 = vmatprep.subr.mxu0 0.0
    %v1157 = vand.u32 %v1090, 4294901760
    %1158 = vmatpush1.msra.mxu0 %v1157
    %1159 = vmatprep.subr.mxu0 0.0
    %v1160 = vand.u32 %v1096, 4294901760
    %1161 = vmatpush1.msra.mxu0 %v1160
    %1162 = vmatprep.subr.mxu0 0.0
    %1163 = vmatpush1.msra.mxu0 0.0
    %1164 = vmatprep.subr.mxu0 0.0
    %1165 = vmatpush1.msra.mxu0 0.0
    %1166 = vmatprep.subr.mxu0 0.0
    %1167 = vmatpush1.msra.mxu0 0.0
    %1168 = vmatprep.subr.mxu0 0.0
    %1169 = vmatpush1.msra.mxu0 0.0
    %1170 = vmatprep.subr.mxu0 0.0
    %1171 = vmatpush1.msra.mxu0 0.0
    %1172 = vmatprep.subr.mxu0 0.0
    %1173 = vmatpush1.msra.mxu0 0.0
    %1174 = vmatprep.subr.mxu0 0.0
    %1175 = vmatpush1.msra.mxu0 0.0
    %1176 = vmatprep.subr.mxu0 0.0
    %1177 = vmatpush1.msra.mxu0 0.0
    %1178 = vmatprep.subr.mxu0 0.0
    %1179 = vmatpush1.msra.mxu0 0.0
    %1180 = vmatprep.subr.mxu0 0.0
    %1181 = vmatpush1.msra.mxu0 0.0
    %1182 = vmatprep.subr.mxu0 0.0
    %1183 = vmatpush1.msra.mxu0 0.0
    %1184 = vmatprep.subr.mxu0 0.0
    %1185 = vmatpush1.msra.mxu0 0.0
    %1186 = vmatprep.subr.mxu0 0.0
    %1187 = vmatpush1.msra.mxu0 0.0
    %1188 = vmatprep.subr.mxu0 0.0
    %1189 = vmatpush1.msra.mxu0 0.0
    %1190 = vmatprep.subr.mxu0 0.0
    %1191 = vmatpush1.msra.mxu0 0.0
    %1192 = vmatprep.subr.mxu0 0.0
    %1193 = vmatpush1.msra.mxu0 0.0
    %1194 = vmatprep.subr.mxu0 0.0
    %1195 = vmatpush1.msra.mxu0 0.0
    %1196 = vmatprep.subr.mxu0 0.0
    %1197 = vmatpush1.msra.mxu0 0.0
    %1198 = vmatprep.subr.mxu0 0.0
    %1199 = vmatpush1.msra.mxu0 0.0
    %1200 = vmatprep.subr.mxu0 0.0
    %1201 = vmatpush1.msra.mxu0 0.0
    %1202 = vmatprep.subr.mxu0 0.0
    %1203 = vmatpush1.msra.mxu0 0.0
    %1204 = vmatprep.subr.mxu0 0.0
    %1205 = vmatpush1.msra.mxu0 0.0
    %1206 = vmatprep.subr.mxu0 0.0
    %1207 = vmatpush1.msra.mxu0 0.0
    %1208 = vmatprep.subr.mxu0 0.0
    %1209 = vmatpush1.msra.mxu0 0.0
    %1210 = vmatprep.subr.mxu0 0.0
    %1211 = vmatpush1.msra.mxu0 0.0
    %1212 = vmatprep.subr.mxu0 0.0
    %1213 = vmatpush1.msra.mxu0 0.0
    %1214 = vmatprep.subr.mxu0 0.0
    %1215 = vmatpush1.msra.mxu0 0.0
    %1216 = vmatprep.subr.mxu0 0.0
    %1217 = vmatpush1.msra.mxu0 0.0
    %1218 = vmatprep.subr.mxu0 0.0
    %1219 = vmatpush1.msra.mxu0 0.0
    %1220 = vmatprep.subr.mxu0 0.0
    %1221 = vmatpush1.msra.mxu0 0.0
    %1222 = vmatprep.mubr.f32.mxu0 0.0
    %v1223 = vand.u32 %v1151, 4294901760
    %v1224 = vsub.f32 %v1151, %v1223
    %v1225 = vand.u32 %v1224, 4294901760
    %v1226 = vsub.f32 %v1224, %v1225
    %v1227 = vand.u32 %v1226, 4294901760
    %1228 = vmatmul.mubr.f32.gmra.mrb[0].mxu0 %v1227
    %v1229 = vpop.f32.mrb[0].mxu0
    %v1230 = vadd.f32 0.0, %v1229
    %v1231 = vpop.f32.mrb[0].mxu0
    %1232 = vmatprep.mubr.f32.mxu0 0.0
    %v1233 = vand.u32 %v1154, 4294901760
    %v1234 = vsub.f32 %v1154, %v1233
    %v1235 = vand.u32 %v1234, 4294901760
    %v1236 = vsub.f32 %v1234, %v1235
    %v1237 = vand.u32 %v1236, 4294901760
    %1238 = vmatmul.mubr.f32.gmra.mrb[0].mxu0 %v1237
    %v1239 = vpop.f32.mrb[0].mxu0
    %v1240 = vadd.f32 0.0, %v1239
    %v1241 = vpop.f32.mrb[0].mxu0
    %1242 = vdwg.mxu0
    %1243 = vmatprep.subr.mxu0 0.0
    %v1244 = vand.u32 %v1090, 4294901760
    %v1245 = vsub.f32 %v1090, %v1244
    %v1246 = vand.u32 %v1245, 4294901760
    %v1247 = vsub.f32 %v1245, %v1246
    %v1248 = vand.u32 %v1247, 4294901760
    %1249 = vmatpush1.msra.mxu0 %v1248
    %1250 = vmatprep.subr.mxu0 0.0
    %v1251 = vand.u32 %v1096, 4294901760
    %v1252 = vsub.f32 %v1096, %v1251
    %v1253 = vand.u32 %v1252, 4294901760
    %v1254 = vsub.f32 %v1252, %v1253
    %v1255 = vand.u32 %v1254, 4294901760
    %1256 = vmatpush1.msra.mxu0 %v1255
    %1257 = vmatprep.subr.mxu0 0.0
    %1258 = vmatpush1.msra.mxu0 0.0
    %1259 = vmatprep.subr.mxu0 0.0
    %1260 = vmatpush1.msra.mxu0 0.0
    %1261 = vmatprep.subr.mxu0 0.0
    %1262 = vmatpush1.msra.mxu0 0.0
    %1263 = vmatprep.subr.mxu0 0.0
    %1264 = vmatpush1.msra.mxu0 0.0
    %1265 = vmatprep.subr.mxu0 0.0
    %1266 = vmatpush1.msra.mxu0 0.0
    %1267 = vmatprep.subr.mxu0 0.0
    %1268 = vmatpush1.msra.mxu0 0.0
    %1269 = vmatprep.subr.mxu0 0.0
    %1270 = vmatpush1.msra.mxu0 0.0
    %1271 = vmatprep.subr.mxu0 0.0
    %1272 = vmatpush1.msra.mxu0 0.0
    %1273 = vmatprep.subr.mxu0 0.0
    %1274 = vmatpush1.msra.mxu0 0.0
    %1275 = vmatprep.subr.mxu0 0.0
    %1276 = vmatpush1.msra.mxu0 0.0
    %1277 = vmatprep.subr.mxu0 0.0
    %1278 = vmatpush1.msra.mxu0 0.0
    %1279 = vmatprep.subr.mxu0 0.0
    %1280 = vmatpush1.msra.mxu0 0.0
    %1281 = vmatprep.subr.mxu0 0.0
    %1282 = vmatpush1.msra.mxu0 0.0
    %1283 = vmatprep.subr.mxu0 0.0
    %1284 = vmatpush1.msra.mxu0 0.0
    %1285 = vmatprep.subr.mxu0 0.0
    %1286 = vmatpush1.msra.mxu0 0.0
    %1287 = vmatprep.subr.mxu0 0.0
    %1288 = vmatpush1.msra.mxu0 0.0
    %1289 = vmatprep.subr.mxu0 0.0
    %1290 = vmatpush1.msra.mxu0 0.0
    %1291 = vmatprep.subr.mxu0 0.0
    %1292 = vmatpush1.msra.mxu0 0.0
    %1293 = vmatprep.subr.mxu0 0.0
    %1294 = vmatpush1.msra.mxu0 0.0
    %1295 = vmatprep.subr.mxu0 0.0
    %1296 = vmatpush1.msra.mxu0 0.0
    %1297 = vmatprep.subr.mxu0 0.0
    %1298 = vmatpush1.msra.mxu0 0.0
    %1299 = vmatprep.subr.mxu0 0.0
    %1300 = vmatpush1.msra.mxu0 0.0
    %1301 = vmatprep.subr.mxu0 0.0
    %1302 = vmatpush1.msra.mxu0 0.0
    %1303 = vmatprep.subr.mxu0 0.0
    %1304 = vmatpush1.msra.mxu0 0.0
    %1305 = vmatprep.subr.mxu0 0.0
    %1306 = vmatpush1.msra.mxu0 0.0
    %1307 = vmatprep.subr.mxu0 0.0
    %1308 = vmatpush1.msra.mxu0 0.0
    %1309 = vmatprep.subr.mxu0 0.0
    %1310 = vmatpush1.msra.mxu0 0.0
    %1311 = vmatprep.subr.mxu0 0.0
    %1312 = vmatpush1.msra.mxu0 0.0
    %1313 = vmatprep.subr.mxu0 0.0
    %1314 = vmatpush1.msra.mxu0 0.0
    %1315 = vmatprep.subr.mxu0 0.0
    %1316 = vmatpush1.msra.mxu0 0.0
    %1317 = vmatprep.mubr.f32.mxu0 0.0
    %v1318 = vand.u32 %v1151, 4294901760
    %1319 = vmatmul.mubr.f32.gmra.mrb[0].mxu0 %v1318
    %v1320 = vpop.f32.mrb[0].mxu0
    %v1321 = vadd.f32 %v1230, %v1320
    %v1322 = vpop.f32.mrb[0].mxu0
    %1323 = vmatprep.mubr.f32.mxu0 0.0
    %v1324 = vand.u32 %v1154, 4294901760
    %1325 = vmatmul.mubr.f32.gmra.mrb[0].mxu0 %v1324
    %v1326 = vpop.f32.mrb[0].mxu0
    %v1327 = vadd.f32 %v1240, %v1326
    %v1328 = vpop.f32.mrb[0].mxu0
    %1329 = vdwg.mxu0
    %1330 = vmatprep.subr.mxu0 0.0
    %v1331 = vand.u32 %v1090, 4294901760
    %v1332 = vsub.f32 %v1090, %v1331
    %1333 = vmatpush1.msra.mxu0 %v1332
    %1334 = vmatprep.subr.mxu0 0.0
    %v1335 = vand.u32 %v1096, 4294901760
    %v1336 = vsub.f32 %v1096, %v1335
    %1337 = vmatpush1.msra.mxu0 %v1336
    %1338 = vmatprep.subr.mxu0 0.0
    %1339 = vmatpush1.msra.mxu0 0.0
    %1340 = vmatprep.subr.mxu0 0.0
    %1341 = vmatpush1.msra.mxu0 0.0
    %1342 = vmatprep.subr.mxu0 0.0
    %1343 = vmatpush1.msra.mxu0 0.0
    %1344 = vmatprep.subr.mxu0 0.0
    %1345 = vmatpush1.msra.mxu0 0.0
    %1346 = vmatprep.subr.mxu0 0.0
    %1347 = vmatpush1.msra.mxu0 0.0
    %1348 = vmatprep.subr.mxu0 0.0
    %1349 = vmatpush1.msra.mxu0 0.0
    %1350 = vmatprep.subr.mxu0 0.0
    %1351 = vmatpush1.msra.mxu0 0.0
    %1352 = vmatprep.subr.mxu0 0.0
    %1353 = vmatpush1.msra.mxu0 0.0
    %1354 = vmatprep.subr.mxu0 0.0
    %1355 = vmatpush1.msra.mxu0 0.0
    %1356 = vmatprep.subr.mxu0 0.0
    %1357 = vmatpush1.msra.mxu0 0.0
    %1358 = vmatprep.subr.mxu0 0.0
    %1359 = vmatpush1.msra.mxu0 0.0
    %1360 = vmatprep.subr.mxu0 0.0
    %1361 = vmatpush1.msra.mxu0 0.0
    %1362 = vmatprep.subr.mxu0 0.0
    %1363 = vmatpush1.msra.mxu0 0.0
    %1364 = vmatprep.subr.mxu0 0.0
    %1365 = vmatpush1.msra.mxu0 0.0
    %1366 = vmatprep.subr.mxu0 0.0
    %1367 = vmatpush1.msra.mxu0 0.0
    %1368 = vmatprep.subr.mxu0 0.0
    %1369 = vmatpush1.msra.mxu0 0.0
    %1370 = vmatprep.subr.mxu0 0.0
    %1371 = vmatpush1.msra.mxu0 0.0
    %1372 = vmatprep.subr.mxu0 0.0
    %1373 = vmatpush1.msra.mxu0 0.0
    %1374 = vmatprep.subr.mxu0 0.0
    %1375 = vmatpush1.msra.mxu0 0.0
    %1376 = vmatprep.subr.mxu0 0.0
    %1377 = vmatpush1.msra.mxu0 0.0
    %1378 = vmatprep.subr.mxu0 0.0
    %1379 = vmatpush1.msra.mxu0 0.0
    %1380 = vmatprep.subr.mxu0 0.0
    %1381 = vmatpush1.msra.mxu0 0.0
    %1382 = vmatprep.subr.mxu0 0.0
    %1383 = vmatpush1.msra.mxu0 0.0
    %1384 = vmatprep.subr.mxu0 0.0
    %1385 = vmatpush1.msra.mxu0 0.0
    %1386 = vmatprep.subr.mxu0 0.0
    %1387 = vmatpush1.msra.mxu0 0.0
    %1388 = vmatprep.subr.mxu0 0.0
    %1389 = vmatpush1.msra.mxu0 0.0
    %1390 = vmatprep.subr.mxu0 0.0
    %1391 = vmatpush1.msra.mxu0 0.0
    %1392 = vmatprep.subr.mxu0 0.0
    %1393 = vmatpush1.msra.mxu0 0.0
    %1394 = vmatprep.subr.mxu0 0.0
    %1395 = vmatpush1.msra.mxu0 0.0
    %1396 = vmatprep.subr.mxu0 0.0
    %1397 = vmatpush1.msra.mxu0 0.0
    %1398 = vmatprep.mubr.f32.mxu0 0.0
    %v1399 = vand.u32 %v1151, 4294901760
    %v1400 = vsub.f32 %v1151, %v1399
    %1401 = vmatmul.mubr.f32.gmra.mrb[0].mxu0 %v1400
    %v1402 = vpop.f32.mrb[0].mxu0
    %v1403 = vadd.f32 %v1321, %v1402
    %v1404 = vpop.f32.mrb[0].mxu0
    %1405 = vmatprep.mubr.f32.mxu0 0.0
    %v1406 = vand.u32 %v1154, 4294901760
    %v1407 = vsub.f32 %v1154, %v1406
    %1408 = vmatmul.mubr.f32.gmra.mrb[0].mxu0 %v1407
    %v1409 = vpop.f32.mrb[0].mxu0
    %v1410 = vadd.f32 %v1327, %v1409
    %v1411 = vpop.f32.mrb[0].mxu0
    %1412 = vdwg.mxu0
    %1413 = vmatprep.subr.mxu0 0.0
    %v1414 = vand.u32 %v1090, 4294901760
    %1415 = vmatpush1.msra.mxu0 %v1414
    %1416 = vmatprep.subr.mxu0 0.0
    %v1417 = vand.u32 %v1096, 4294901760
    %1418 = vmatpush1.msra.mxu0 %v1417
    %1419 = vmatprep.subr.mxu0 0.0
    %1420 = vmatpush1.msra.mxu0 0.0
    %1421 = vmatprep.subr.mxu0 0.0
    %1422 = vmatpush1.msra.mxu0 0.0
    %1423 = vmatprep.subr.mxu0 0.0
    %1424 = vmatpush1.msra.mxu0 0.0
    %1425 = vmatprep.subr.mxu0 0.0
    %1426 = vmatpush1.msra.mxu0 0.0
    %1427 = vmatprep.subr.mxu0 0.0
    %1428 = vmatpush1.msra.mxu0 0.0
    %1429 = vmatprep.subr.mxu0 0.0
    %1430 = vmatpush1.msra.mxu0 0.0
    %1431 = vmatprep.subr.mxu0 0.0
    %1432 = vmatpush1.msra.mxu0 0.0
    %1433 = vmatprep.subr.mxu0 0.0
    %1434 = vmatpush1.msra.mxu0 0.0
    %1435 = vmatprep.subr.mxu0 0.0
    %1436 = vmatpush1.msra.mxu0 0.0
    %1437 = vmatprep.subr.mxu0 0.0
    %1438 = vmatpush1.msra.mxu0 0.0
    %1439 = vmatprep.subr.mxu0 0.0
    %1440 = vmatpush1.msra.mxu0 0.0
    %1441 = vmatprep.subr.mxu0 0.0
    %1442 = vmatpush1.msra.mxu0 0.0
    %1443 = vmatprep.subr.mxu0 0.0
    %1444 = vmatpush1.msra.mxu0 0.0
    %1445 = vmatprep.subr.mxu0 0.0
    %1446 = vmatpush1.msra.mxu0 0.0
    %1447 = vmatprep.subr.mxu0 0.0
    %1448 = vmatpush1.msra.mxu0 0.0
    %1449 = vmatprep.subr.mxu0 0.0
    %1450 = vmatpush1.msra.mxu0 0.0
    %1451 = vmatprep.subr.mxu0 0.0
    %1452 = vmatpush1.msra.mxu0 0.0
    %1453 = vmatprep.subr.mxu0 0.0
    %1454 = vmatpush1.msra.mxu0 0.0
    %1455 = vmatprep.subr.mxu0 0.0
    %1456 = vmatpush1.msra.mxu0 0.0
    %1457 = vmatprep.subr.mxu0 0.0
    %1458 = vmatpush1.msra.mxu0 0.0
    %1459 = vmatprep.subr.mxu0 0.0
    %1460 = vmatpush1.msra.mxu0 0.0
    %1461 = vmatprep.subr.mxu0 0.0
    %1462 = vmatpush1.msra.mxu0 0.0
    %1463 = vmatprep.subr.mxu0 0.0
    %1464 = vmatpush1.msra.mxu0 0.0
    %1465 = vmatprep.subr.mxu0 0.0
    %1466 = vmatpush1.msra.mxu0 0.0
    %1467 = vmatprep.subr.mxu0 0.0
    %1468 = vmatpush1.msra.mxu0 0.0
    %1469 = vmatprep.subr.mxu0 0.0
    %1470 = vmatpush1.msra.mxu0 0.0
    %1471 = vmatprep.subr.mxu0 0.0
    %1472 = vmatpush1.msra.mxu0 0.0
    %1473 = vmatprep.subr.mxu0 0.0
    %1474 = vmatpush1.msra.mxu0 0.0
    %1475 = vmatprep.subr.mxu0 0.0
    %1476 = vmatpush1.msra.mxu0 0.0
    %1477 = vmatprep.subr.mxu0 0.0
    %1478 = vmatpush1.msra.mxu0 0.0
    %1479 = vmatprep.mubr.f32.mxu0 0.0
    %v1480 = vand.u32 %v1151, 4294901760
    %v1481 = vsub.f32 %v1151, %v1480
    %v1482 = vand.u32 %v1481, 4294901760
    %1483 = vmatmul.mubr.f32.gmra.mrb[0].mxu0 %v1482
    %v1484 = vpop.f32.mrb[0].mxu0
    %v1485 = vadd.f32 %v1403, %v1484
    %v1486 = vpop.f32.mrb[0].mxu0
    %1487 = vmatprep.mubr.f32.mxu0 0.0
    %v1488 = vand.u32 %v1154, 4294901760
    %v1489 = vsub.f32 %v1154, %v1488
    %v1490 = vand.u32 %v1489, 4294901760
    %1491 = vmatmul.mubr.f32.gmra.mrb[0].mxu0 %v1490
    %v1492 = vpop.f32.mrb[0].mxu0
    %v1493 = vadd.f32 %v1410, %v1492
    %v1494 = vpop.f32.mrb[0].mxu0
    %1495 = vdwg.mxu0
    %1496 = vmatprep.subr.mxu0 0.0
    %v1497 = vand.u32 %v1090, 4294901760
    %v1498 = vsub.f32 %v1090, %v1497
    %v1499 = vand.u32 %v1498, 4294901760
    %1500 = vmatpush1.msra.mxu0 %v1499
    %1501 = vmatprep.subr.mxu0 0.0
    %v1502 = vand.u32 %v1096, 4294901760
    %v1503 = vsub.f32 %v1096, %v1502
    %v1504 = vand.u32 %v1503, 4294901760
    %1505 = vmatpush1.msra.mxu0 %v1504
    %1506 = vmatprep.subr.mxu0 0.0
    %1507 = vmatpush1.msra.mxu0 0.0
    %1508 = vmatprep.subr.mxu0 0.0
    %1509 = vmatpush1.msra.mxu0 0.0
    %1510 = vmatprep.subr.mxu0 0.0
    %1511 = vmatpush1.msra.mxu0 0.0
    %1512 = vmatprep.subr.mxu0 0.0
    %1513 = vmatpush1.msra.mxu0 0.0
    %1514 = vmatprep.subr.mxu0 0.0
    %1515 = vmatpush1.msra.mxu0 0.0
    %1516 = vmatprep.subr.mxu0 0.0
    %1517 = vmatpush1.msra.mxu0 0.0
    %1518 = vmatprep.subr.mxu0 0.0
    %1519 = vmatpush1.msra.mxu0 0.0
    %1520 = vmatprep.subr.mxu0 0.0
    %1521 = vmatpush1.msra.mxu0 0.0
    %1522 = vmatprep.subr.mxu0 0.0
    %1523 = vmatpush1.msra.mxu0 0.0
    %1524 = vmatprep.subr.mxu0 0.0
    %1525 = vmatpush1.msra.mxu0 0.0
    %1526 = vmatprep.subr.mxu0 0.0
    %1527 = vmatpush1.msra.mxu0 0.0
    %1528 = vmatprep.subr.mxu0 0.0
    %1529 = vmatpush1.msra.mxu0 0.0
    %1530 = vmatprep.subr.mxu0 0.0
    %1531 = vmatpush1.msra.mxu0 0.0
    %1532 = vmatprep.subr.mxu0 0.0
    %1533 = vmatpush1.msra.mxu0 0.0
    %1534 = vmatprep.subr.mxu0 0.0
    %1535 = vmatpush1.msra.mxu0 0.0
    %1536 = vmatprep.subr.mxu0 0.0
    %1537 = vmatpush1.msra.mxu0 0.0
    %1538 = vmatprep.subr.mxu0 0.0
    %1539 = vmatpush1.msra.mxu0 0.0
    %1540 = vmatprep.subr.mxu0 0.0
    %1541 = vmatpush1.msra.mxu0 0.0
    %1542 = vmatprep.subr.mxu0 0.0
    %1543 = vmatpush1.msra.mxu0 0.0
    %1544 = vmatprep.subr.mxu0 0.0
    %1545 = vmatpush1.msra.mxu0 0.0
    %1546 = vmatprep.subr.mxu0 0.0
    %1547 = vmatpush1.msra.mxu0 0.0
    %1548 = vmatprep.subr.mxu0 0.0
    %1549 = vmatpush1.msra.mxu0 0.0
    %1550 = vmatprep.subr.mxu0 0.0
    %1551 = vmatpush1.msra.mxu0 0.0
    %1552 = vmatprep.subr.mxu0 0.0
    %1553 = vmatpush1.msra.mxu0 0.0
    %1554 = vmatprep.subr.mxu0 0.0
    %1555 = vmatpush1.msra.mxu0 0.0
    %1556 = vmatprep.subr.mxu0 0.0
    %1557 = vmatpush1.msra.mxu0 0.0
    %1558 = vmatprep.subr.mxu0 0.0
    %1559 = vmatpush1.msra.mxu0 0.0
    %1560 = vmatprep.subr.mxu0 0.0
    %1561 = vmatpush1.msra.mxu0 0.0
    %1562 = vmatprep.subr.mxu0 0.0
    %1563 = vmatpush1.msra.mxu0 0.0
    %1564 = vmatprep.subr.mxu0 0.0
    %1565 = vmatpush1.msra.mxu0 0.0
    %1566 = vmatprep.mubr.f32.mxu0 0.0
    %v1567 = vand.u32 %v1151, 4294901760
    %1568 = vmatmul.mubr.f32.gmra.mrb[0].mxu0 %v1567
    %v1569 = vpop.f32.mrb[0].mxu0
    %v1570 = vadd.f32 %v1485, %v1569
    %v1571 = vpop.f32.mrb[0].mxu0
    %1572 = vmatprep.mubr.f32.mxu0 0.0
    %v1573 = vand.u32 %v1154, 4294901760
    %1574 = vmatmul.mubr.f32.gmra.mrb[0].mxu0 %v1573
    %v1575 = vpop.f32.mrb[0].mxu0
    %v1576 = vadd.f32 %v1493, %v1575
    %v1577 = vpop.f32.mrb[0].mxu0
    %1578 = vdwg.mxu0
    %1579 = vmatprep.subr.mxu0 0.0
    %v1580 = vand.u32 %v1090, 4294901760
    %1581 = vmatpush1.msra.mxu0 %v1580
    %1582 = vmatprep.subr.mxu0 0.0
    %v1583 = vand.u32 %v1096, 4294901760
    %1584 = vmatpush1.msra.mxu0 %v1583
    %1585 = vmatprep.subr.mxu0 0.0
    %1586 = vmatpush1.msra.mxu0 0.0
    %1587 = vmatprep.subr.mxu0 0.0
    %1588 = vmatpush1.msra.mxu0 0.0
    %1589 = vmatprep.subr.mxu0 0.0
    %1590 = vmatpush1.msra.mxu0 0.0
    %1591 = vmatprep.subr.mxu0 0.0
    %1592 = vmatpush1.msra.mxu0 0.0
    %1593 = vmatprep.subr.mxu0 0.0
    %1594 = vmatpush1.msra.mxu0 0.0
    %1595 = vmatprep.subr.mxu0 0.0
    %1596 = vmatpush1.msra.mxu0 0.0
    %1597 = vmatprep.subr.mxu0 0.0
    %1598 = vmatpush1.msra.mxu0 0.0
    %1599 = vmatprep.subr.mxu0 0.0
    %1600 = vmatpush1.msra.mxu0 0.0
    %1601 = vmatprep.subr.mxu0 0.0
    %1602 = vmatpush1.msra.mxu0 0.0
    %1603 = vmatprep.subr.mxu0 0.0
    %1604 = vmatpush1.msra.mxu0 0.0
    %1605 = vmatprep.subr.mxu0 0.0
    %1606 = vmatpush1.msra.mxu0 0.0
    %1607 = vmatprep.subr.mxu0 0.0
    %1608 = vmatpush1.msra.mxu0 0.0
    %1609 = vmatprep.subr.mxu0 0.0
    %1610 = vmatpush1.msra.mxu0 0.0
    %1611 = vmatprep.subr.mxu0 0.0
    %1612 = vmatpush1.msra.mxu0 0.0
    %1613 = vmatprep.subr.mxu0 0.0
    %1614 = vmatpush1.msra.mxu0 0.0
    %1615 = vmatprep.subr.mxu0 0.0
    %1616 = vmatpush1.msra.mxu0 0.0
    %1617 = vmatprep.subr.mxu0 0.0
    %1618 = vmatpush1.msra.mxu0 0.0
    %1619 = vmatprep.subr.mxu0 0.0
    %1620 = vmatpush1.msra.mxu0 0.0
    %1621 = vmatprep.subr.mxu0 0.0
    %1622 = vmatpush1.msra.mxu0 0.0
    %1623 = vmatprep.subr.mxu0 0.0
    %1624 = vmatpush1.msra.mxu0 0.0
    %1625 = vmatprep.subr.mxu0 0.0
    %1626 = vmatpush1.msra.mxu0 0.0
    %1627 = vmatprep.subr.mxu0 0.0
    %1628 = vmatpush1.msra.mxu0 0.0
    %1629 = vmatprep.subr.mxu0 0.0
    %1630 = vmatpush1.msra.mxu0 0.0
    %1631 = vmatprep.subr.mxu0 0.0
    %1632 = vmatpush1.msra.mxu0 0.0
    %1633 = vmatprep.subr.mxu0 0.0
    %1634 = vmatpush1.msra.mxu0 0.0
    %1635 = vmatprep.subr.mxu0 0.0
    %1636 = vmatpush1.msra.mxu0 0.0
    %1637 = vmatprep.subr.mxu0 0.0
    %1638 = vmatpush1.msra.mxu0 0.0
    %1639 = vmatprep.subr.mxu0 0.0
    %1640 = vmatpush1.msra.mxu0 0.0
    %1641 = vmatprep.subr.mxu0 0.0
    %1642 = vmatpush1.msra.mxu0 0.0
    %1643 = vmatprep.subr.mxu0 0.0
    %1644 = vmatpush1.msra.mxu0 0.0
    %1645 = vmatprep.mubr.f32.mxu0 0.0
    %v1646 = vand.u32 %v1151, 4294901760
    %1647 = vmatmul.mubr.f32.gmra.mrb[0].mxu0 %v1646
    %v1648 = vpop.f32.mrb[0].mxu0
    %v1649 = vadd.f32 %v1570, %v1648
    %v1650 = vpop.f32.mrb[0].mxu0
    %1651 = vmatprep.mubr.f32.mxu0 0.0
    %v1652 = vand.u32 %v1154, 4294901760
    %1653 = vmatmul.mubr.f32.gmra.mrb[0].mxu0 %v1652
    %v1654 = vpop.f32.mrb[0].mxu0
    %v1655 = vadd.f32 %v1576, %v1654
    %v1656 = vpop.f32.mrb[0].mxu0
    %1657 = vdwg.mxu0
    %1658 = vmatprep.subr.mxu0 0.0
    %v1659 = vand.u32 %v1102, 4294901760
    %1660 = vmatpush1.msra.mxu0 %v1659
    %1661 = vmatprep.subr.mxu0 0.0
    %v1662 = vand.u32 %v1108, 4294901760
    %1663 = vmatpush1.msra.mxu0 %v1662
    %1664 = vmatprep.subr.mxu0 0.0
    %1665 = vmatpush1.msra.mxu0 0.0
    %1666 = vmatprep.subr.mxu0 0.0
    %1667 = vmatpush1.msra.mxu0 0.0
    %1668 = vmatprep.subr.mxu0 0.0
    %1669 = vmatpush1.msra.mxu0 0.0
    %1670 = vmatprep.subr.mxu0 0.0
    %1671 = vmatpush1.msra.mxu0 0.0
    %1672 = vmatprep.subr.mxu0 0.0
    %1673 = vmatpush1.msra.mxu0 0.0
    %1674 = vmatprep.subr.mxu0 0.0
    %1675 = vmatpush1.msra.mxu0 0.0
    %1676 = vmatprep.subr.mxu0 0.0
    %1677 = vmatpush1.msra.mxu0 0.0
    %1678 = vmatprep.subr.mxu0 0.0
    %1679 = vmatpush1.msra.mxu0 0.0
    %1680 = vmatprep.subr.mxu0 0.0
    %1681 = vmatpush1.msra.mxu0 0.0
    %1682 = vmatprep.subr.mxu0 0.0
    %1683 = vmatpush1.msra.mxu0 0.0
    %1684 = vmatprep.subr.mxu0 0.0
    %1685 = vmatpush1.msra.mxu0 0.0
    %1686 = vmatprep.subr.mxu0 0.0
    %1687 = vmatpush1.msra.mxu0 0.0
    %1688 = vmatprep.subr.mxu0 0.0
    %1689 = vmatpush1.msra.mxu0 0.0
    %1690 = vmatprep.subr.mxu0 0.0
    %1691 = vmatpush1.msra.mxu0 0.0
    %1692 = vmatprep.subr.mxu0 0.0
    %1693 = vmatpush1.msra.mxu0 0.0
    %1694 = vmatprep.subr.mxu0 0.0
    %1695 = vmatpush1.msra.mxu0 0.0
    %1696 = vmatprep.subr.mxu0 0.0
    %1697 = vmatpush1.msra.mxu0 0.0
    %1698 = vmatprep.subr.mxu0 0.0
    %1699 = vmatpush1.msra.mxu0 0.0
    %1700 = vmatprep.subr.mxu0 0.0
    %1701 = vmatpush1.msra.mxu0 0.0
    %1702 = vmatprep.subr.mxu0 0.0
    %1703 = vmatpush1.msra.mxu0 0.0
    %1704 = vmatprep.subr.mxu0 0.0
    %1705 = vmatpush1.msra.mxu0 0.0
    %1706 = vmatprep.subr.mxu0 0.0
    %1707 = vmatpush1.msra.mxu0 0.0
    %1708 = vmatprep.subr.mxu0 0.0
    %1709 = vmatpush1.msra.mxu0 0.0
    %1710 = vmatprep.subr.mxu0 0.0
    %1711 = vmatpush1.msra.mxu0 0.0
    %1712 = vmatprep.subr.mxu0 0.0
    %1713 = vmatpush1.msra.mxu0 0.0
    %1714 = vmatprep.subr.mxu0 0.0
    %1715 = vmatpush1.msra.mxu0 0.0
    %1716 = vmatprep.subr.mxu0 0.0
    %1717 = vmatpush1.msra.mxu0 0.0
    %1718 = vmatprep.subr.mxu0 0.0
    %1719 = vmatpush1.msra.mxu0 0.0
    %1720 = vmatprep.subr.mxu0 0.0
    %1721 = vmatpush1.msra.mxu0 0.0
    %1722 = vmatprep.subr.mxu0 0.0
    %1723 = vmatpush1.msra.mxu0 0.0
    %1724 = vmatprep.mubr.f32.mxu0 0.0
    %v1725 = vand.u32 %v1151, 4294901760
    %v1726 = vsub.f32 %v1151, %v1725
    %v1727 = vand.u32 %v1726, 4294901760
    %v1728 = vsub.f32 %v1726, %v1727
    %v1729 = vand.u32 %v1728, 4294901760
    %1730 = vmatmul.mubr.f32.gmra.mrb[0].mxu0 %v1729
    %v1731 = vpop.f32.mrb[0].mxu0
    %v1732 = vadd.f32 0.0, %v1731
    %v1733 = vpop.f32.mrb[0].mxu0
    %1734 = vmatprep.mubr.f32.mxu0 0.0
    %v1735 = vand.u32 %v1154, 4294901760
    %v1736 = vsub.f32 %v1154, %v1735
    %v1737 = vand.u32 %v1736, 4294901760
    %v1738 = vsub.f32 %v1736, %v1737
    %v1739 = vand.u32 %v1738, 4294901760
    %1740 = vmatmul.mubr.f32.gmra.mrb[0].mxu0 %v1739
    %v1741 = vpop.f32.mrb[0].mxu0
    %v1742 = vadd.f32 0.0, %v1741
    %v1743 = vpop.f32.mrb[0].mxu0
    %1744 = vdwg.mxu0
    %1745 = vmatprep.subr.mxu0 0.0
    %v1746 = vand.u32 %v1102, 4294901760
    %v1747 = vsub.f32 %v1102, %v1746
    %v1748 = vand.u32 %v1747, 4294901760
    %v1749 = vsub.f32 %v1747, %v1748
    %v1750 = vand.u32 %v1749, 4294901760
    %1751 = vmatpush1.msra.mxu0 %v1750
    %1752 = vmatprep.subr.mxu0 0.0
    %v1753 = vand.u32 %v1108, 4294901760
    %v1754 = vsub.f32 %v1108, %v1753
    %v1755 = vand.u32 %v1754, 4294901760
    %v1756 = vsub.f32 %v1754, %v1755
    %v1757 = vand.u32 %v1756, 4294901760
    %1758 = vmatpush1.msra.mxu0 %v1757
    %1759 = vmatprep.subr.mxu0 0.0
    %1760 = vmatpush1.msra.mxu0 0.0
    %1761 = vmatprep.subr.mxu0 0.0
    %1762 = vmatpush1.msra.mxu0 0.0
    %1763 = vmatprep.subr.mxu0 0.0
    %1764 = vmatpush1.msra.mxu0 0.0
    %1765 = vmatprep.subr.mxu0 0.0
    %1766 = vmatpush1.msra.mxu0 0.0
    %1767 = vmatprep.subr.mxu0 0.0
    %1768 = vmatpush1.msra.mxu0 0.0
    %1769 = vmatprep.subr.mxu0 0.0
    %1770 = vmatpush1.msra.mxu0 0.0
    %1771 = vmatprep.subr.mxu0 0.0
    %1772 = vmatpush1.msra.mxu0 0.0
    %1773 = vmatprep.subr.mxu0 0.0
    %1774 = vmatpush1.msra.mxu0 0.0
    %1775 = vmatprep.subr.mxu0 0.0
    %1776 = vmatpush1.msra.mxu0 0.0
    %1777 = vmatprep.subr.mxu0 0.0
    %1778 = vmatpush1.msra.mxu0 0.0
    %1779 = vmatprep.subr.mxu0 0.0
    %1780 = vmatpush1.msra.mxu0 0.0
    %1781 = vmatprep.subr.mxu0 0.0
    %1782 = vmatpush1.msra.mxu0 0.0
    %1783 = vmatprep.subr.mxu0 0.0
    %1784 = vmatpush1.msra.mxu0 0.0
    %1785 = vmatprep.subr.mxu0 0.0
    %1786 = vmatpush1.msra.mxu0 0.0
    %1787 = vmatprep.subr.mxu0 0.0
    %1788 = vmatpush1.msra.mxu0 0.0
    %1789 = vmatprep.subr.mxu0 0.0
    %1790 = vmatpush1.msra.mxu0 0.0
    %1791 = vmatprep.subr.mxu0 0.0
    %1792 = vmatpush1.msra.mxu0 0.0
    %1793 = vmatprep.subr.mxu0 0.0
    %1794 = vmatpush1.msra.mxu0 0.0
    %1795 = vmatprep.subr.mxu0 0.0
    %1796 = vmatpush1.msra.mxu0 0.0
    %1797 = vmatprep.subr.mxu0 0.0
    %1798 = vmatpush1.msra.mxu0 0.0
    %1799 = vmatprep.subr.mxu0 0.0
    %1800 = vmatpush1.msra.mxu0 0.0
    %1801 = vmatprep.subr.mxu0 0.0
    %1802 = vmatpush1.msra.mxu0 0.0
    %1803 = vmatprep.subr.mxu0 0.0
    %1804 = vmatpush1.msra.mxu0 0.0
    %1805 = vmatprep.subr.mxu0 0.0
    %1806 = vmatpush1.msra.mxu0 0.0
    %1807 = vmatprep.subr.mxu0 0.0
    %1808 = vmatpush1.msra.mxu0 0.0
    %1809 = vmatprep.subr.mxu0 0.0
    %1810 = vmatpush1.msra.mxu0 0.0
    %1811 = vmatprep.subr.mxu0 0.0
    %1812 = vmatpush1.msra.mxu0 0.0
    %1813 = vmatprep.subr.mxu0 0.0
    %1814 = vmatpush1.msra.mxu0 0.0
    %1815 = vmatprep.subr.mxu0 0.0
    %1816 = vmatpush1.msra.mxu0 0.0
    %1817 = vmatprep.subr.mxu0 0.0
    %1818 = vmatpush1.msra.mxu0 0.0
    %1819 = vmatprep.mubr.f32.mxu0 0.0
    %v1820 = vand.u32 %v1151, 4294901760
    %1821 = vmatmul.mubr.f32.gmra.mrb[0].mxu0 %v1820
    %v1822 = vpop.f32.mrb[0].mxu0
    %v1823 = vadd.f32 %v1732, %v1822
    %v1824 = vpop.f32.mrb[0].mxu0
    %1825 = vmatprep.mubr.f32.mxu0 0.0
    %v1826 = vand.u32 %v1154, 4294901760
    %1827 = vmatmul.mubr.f32.gmra.mrb[0].mxu0 %v1826
    %v1828 = vpop.f32.mrb[0].mxu0
    %v1829 = vadd.f32 %v1742, %v1828
    %v1830 = vpop.f32.mrb[0].mxu0
    %1831 = vdwg.mxu0
    %1832 = vmatprep.subr.mxu0 0.0
    %v1833 = vand.u32 %v1102, 4294901760
    %v1834 = vsub.f32 %v1102, %v1833
    %1835 = vmatpush1.msra.mxu0 %v1834
    %1836 = vmatprep.subr.mxu0 0.0
    %v1837 = vand.u32 %v1108, 4294901760
    %v1838 = vsub.f32 %v1108, %v1837
    %1839 = vmatpush1.msra.mxu0 %v1838
    %1840 = vmatprep.subr.mxu0 0.0
    %1841 = vmatpush1.msra.mxu0 0.0
    %1842 = vmatprep.subr.mxu0 0.0
    %1843 = vmatpush1.msra.mxu0 0.0
    %1844 = vmatprep.subr.mxu0 0.0
    %1845 = vmatpush1.msra.mxu0 0.0
    %1846 = vmatprep.subr.mxu0 0.0
    %1847 = vmatpush1.msra.mxu0 0.0
    %1848 = vmatprep.subr.mxu0 0.0
    %1849 = vmatpush1.msra.mxu0 0.0
    %1850 = vmatprep.subr.mxu0 0.0
    %1851 = vmatpush1.msra.mxu0 0.0
    %1852 = vmatprep.subr.mxu0 0.0
    %1853 = vmatpush1.msra.mxu0 0.0
    %1854 = vmatprep.subr.mxu0 0.0
    %1855 = vmatpush1.msra.mxu0 0.0
    %1856 = vmatprep.subr.mxu0 0.0
    %1857 = vmatpush1.msra.mxu0 0.0
    %1858 = vmatprep.subr.mxu0 0.0
    %1859 = vmatpush1.msra.mxu0 0.0
    %1860 = vmatprep.subr.mxu0 0.0
    %1861 = vmatpush1.msra.mxu0 0.0
    %1862 = vmatprep.subr.mxu0 0.0
    %1863 = vmatpush1.msra.mxu0 0.0
    %1864 = vmatprep.subr.mxu0 0.0
    %1865 = vmatpush1.msra.mxu0 0.0
    %1866 = vmatprep.subr.mxu0 0.0
    %1867 = vmatpush1.msra.mxu0 0.0
    %1868 = vmatprep.subr.mxu0 0.0
    %1869 = vmatpush1.msra.mxu0 0.0
    %1870 = vmatprep.subr.mxu0 0.0
    %1871 = vmatpush1.msra.mxu0 0.0
    %1872 = vmatprep.subr.mxu0 0.0
    %1873 = vmatpush1.msra.mxu0 0.0
    %1874 = vmatprep.subr.mxu0 0.0
    %1875 = vmatpush1.msra.mxu0 0.0
    %1876 = vmatprep.subr.mxu0 0.0
    %1877 = vmatpush1.msra.mxu0 0.0
    %1878 = vmatprep.subr.mxu0 0.0
    %1879 = vmatpush1.msra.mxu0 0.0
    %1880 = vmatprep.subr.mxu0 0.0
    %1881 = vmatpush1.msra.mxu0 0.0
    %1882 = vmatprep.subr.mxu0 0.0
    %1883 = vmatpush1.msra.mxu0 0.0
    %1884 = vmatprep.subr.mxu0 0.0
    %1885 = vmatpush1.msra.mxu0 0.0
    %1886 = vmatprep.subr.mxu0 0.0
    %1887 = vmatpush1.msra.mxu0 0.0
    %1888 = vmatprep.subr.mxu0 0.0
    %1889 = vmatpush1.msra.mxu0 0.0
    %1890 = vmatprep.subr.mxu0 0.0
    %1891 = vmatpush1.msra.mxu0 0.0
    %1892 = vmatprep.subr.mxu0 0.0
    %1893 = vmatpush1.msra.mxu0 0.0
    %1894 = vmatprep.subr.mxu0 0.0
    %1895 = vmatpush1.msra.mxu0 0.0
    %1896 = vmatprep.subr.mxu0 0.0
    %1897 = vmatpush1.msra.mxu0 0.0
    %1898 = vmatprep.subr.mxu0 0.0
    %1899 = vmatpush1.msra.mxu0 0.0
    %1900 = vmatprep.mubr.f32.mxu0 0.0
    %v1901 = vand.u32 %v1151, 4294901760
    %v1902 = vsub.f32 %v1151, %v1901
    %1903 = vmatmul.mubr.f32.gmra.mrb[0].mxu0 %v1902
    %v1904 = vpop.f32.mrb[0].mxu0
    %v1905 = vadd.f32 %v1823, %v1904
    %v1906 = vpop.f32.mrb[0].mxu0
    %1907 = vmatprep.mubr.f32.mxu0 0.0
    %v1908 = vand.u32 %v1154, 4294901760
    %v1909 = vsub.f32 %v1154, %v1908
    %1910 = vmatmul.mubr.f32.gmra.mrb[0].mxu0 %v1909
    %v1911 = vpop.f32.mrb[0].mxu0
    %v1912 = vadd.f32 %v1829, %v1911
    %v1913 = vpop.f32.mrb[0].mxu0
    %1914 = vdwg.mxu0
    %1915 = vmatprep.subr.mxu0 0.0
    %v1916 = vand.u32 %v1102, 4294901760
    %1917 = vmatpush1.msra.mxu0 %v1916
    %1918 = vmatprep.subr.mxu0 0.0
    %v1919 = vand.u32 %v1108, 4294901760
    %1920 = vmatpush1.msra.mxu0 %v1919
    %1921 = vmatprep.subr.mxu0 0.0
    %1922 = vmatpush1.msra.mxu0 0.0
    %1923 = vmatprep.subr.mxu0 0.0
    %1924 = vmatpush1.msra.mxu0 0.0
    %1925 = vmatprep.subr.mxu0 0.0
    %1926 = vmatpush1.msra.mxu0 0.0
    %1927 = vmatprep.subr.mxu0 0.0
    %1928 = vmatpush1.msra.mxu0 0.0
    %1929 = vmatprep.subr.mxu0 0.0
    %1930 = vmatpush1.msra.mxu0 0.0
    %1931 = vmatprep.subr.mxu0 0.0
    %1932 = vmatpush1.msra.mxu0 0.0
    %1933 = vmatprep.subr.mxu0 0.0
    %1934 = vmatpush1.msra.mxu0 0.0
    %1935 = vmatprep.subr.mxu0 0.0
    %1936 = vmatpush1.msra.mxu0 0.0
    %1937 = vmatprep.subr.mxu0 0.0
    %1938 = vmatpush1.msra.mxu0 0.0
    %1939 = vmatprep.subr.mxu0 0.0
    %1940 = vmatpush1.msra.mxu0 0.0
    %1941 = vmatprep.subr.mxu0 0.0
    %1942 = vmatpush1.msra.mxu0 0.0
    %1943 = vmatprep.subr.mxu0 0.0
    %1944 = vmatpush1.msra.mxu0 0.0
    %1945 = vmatprep.subr.mxu0 0.0
    %1946 = vmatpush1.msra.mxu0 0.0
    %1947 = vmatprep.subr.mxu0 0.0
    %1948 = vmatpush1.msra.mxu0 0.0
    %1949 = vmatprep.subr.mxu0 0.0
    %1950 = vmatpush1.msra.mxu0 0.0
    %1951 = vmatprep.subr.mxu0 0.0
    %1952 = vmatpush1.msra.mxu0 0.0
    %1953 = vmatprep.subr.mxu0 0.0
    %1954 = vmatpush1.msra.mxu0 0.0
    %1955 = vmatprep.subr.mxu0 0.0
    %1956 = vmatpush1.msra.mxu0 0.0
    %1957 = vmatprep.subr.mxu0 0.0
    %1958 = vmatpush1.msra.mxu0 0.0
    %1959 = vmatprep.subr.mxu0 0.0
    %1960 = vmatpush1.msra.mxu0 0.0
    %1961 = vmatprep.subr.mxu0 0.0
    %1962 = vmatpush1.msra.mxu0 0.0
    %1963 = vmatprep.subr.mxu0 0.0
    %1964 = vmatpush1.msra.mxu0 0.0
    %1965 = vmatprep.subr.mxu0 0.0
    %1966 = vmatpush1.msra.mxu0 0.0
    %1967 = vmatprep.subr.mxu0 0.0
    %1968 = vmatpush1.msra.mxu0 0.0
    %1969 = vmatprep.subr.mxu0 0.0
    %1970 = vmatpush1.msra.mxu0 0.0
    %1971 = vmatprep.subr.mxu0 0.0
    %1972 = vmatpush1.msra.mxu0 0.0
    %1973 = vmatprep.subr.mxu0 0.0
    %1974 = vmatpush1.msra.mxu0 0.0
    %1975 = vmatprep.subr.mxu0 0.0
    %1976 = vmatpush1.msra.mxu0 0.0
    %1977 = vmatprep.subr.mxu0 0.0
    %1978 = vmatpush1.msra.mxu0 0.0
    %1979 = vmatprep.subr.mxu0 0.0
    %1980 = vmatpush1.msra.mxu0 0.0
    %1981 = vmatprep.mubr.f32.mxu0 0.0
    %v1982 = vand.u32 %v1151, 4294901760
    %v1983 = vsub.f32 %v1151, %v1982
    %v1984 = vand.u32 %v1983, 4294901760
    %1985 = vmatmul.mubr.f32.gmra.mrb[0].mxu0 %v1984
    %v1986 = vpop.f32.mrb[0].mxu0
    %v1987 = vadd.f32 %v1905, %v1986
    %v1988 = vpop.f32.mrb[0].mxu0
    %1989 = vmatprep.mubr.f32.mxu0 0.0
    %v1990 = vand.u32 %v1154, 4294901760
    %v1991 = vsub.f32 %v1154, %v1990
    %v1992 = vand.u32 %v1991, 4294901760
    %1993 = vmatmul.mubr.f32.gmra.mrb[0].mxu0 %v1992
    %v1994 = vpop.f32.mrb[0].mxu0
    %v1995 = vadd.f32 %v1912, %v1994
    %v1996 = vpop.f32.mrb[0].mxu0
    %1997 = vdwg.mxu0
    %1998 = vmatprep.subr.mxu0 0.0
    %v1999 = vand.u32 %v1102, 4294901760
    %v2000 = vsub.f32 %v1102, %v1999
    %v2001 = vand.u32 %v2000, 4294901760
    %2002 = vmatpush1.msra.mxu0 %v2001
    %2003 = vmatprep.subr.mxu0 0.0
    %v2004 = vand.u32 %v1108, 4294901760
    %v2005 = vsub.f32 %v1108, %v2004
    %v2006 = vand.u32 %v2005, 4294901760
    %2007 = vmatpush1.msra.mxu0 %v2006
    %2008 = vmatprep.subr.mxu0 0.0
    %2009 = vmatpush1.msra.mxu0 0.0
    %2010 = vmatprep.subr.mxu0 0.0
    %2011 = vmatpush1.msra.mxu0 0.0
    %2012 = vmatprep.subr.mxu0 0.0
    %2013 = vmatpush1.msra.mxu0 0.0
    %2014 = vmatprep.subr.mxu0 0.0
    %2015 = vmatpush1.msra.mxu0 0.0
    %2016 = vmatprep.subr.mxu0 0.0
    %2017 = vmatpush1.msra.mxu0 0.0
    %2018 = vmatprep.subr.mxu0 0.0
    %2019 = vmatpush1.msra.mxu0 0.0
    %2020 = vmatprep.subr.mxu0 0.0
    %2021 = vmatpush1.msra.mxu0 0.0
    %2022 = vmatprep.subr.mxu0 0.0
    %2023 = vmatpush1.msra.mxu0 0.0
    %2024 = vmatprep.subr.mxu0 0.0
    %2025 = vmatpush1.msra.mxu0 0.0
    %2026 = vmatprep.subr.mxu0 0.0
    %2027 = vmatpush1.msra.mxu0 0.0
    %2028 = vmatprep.subr.mxu0 0.0
    %2029 = vmatpush1.msra.mxu0 0.0
    %2030 = vmatprep.subr.mxu0 0.0
    %2031 = vmatpush1.msra.mxu0 0.0
    %2032 = vmatprep.subr.mxu0 0.0
    %2033 = vmatpush1.msra.mxu0 0.0
    %2034 = vmatprep.subr.mxu0 0.0
    %2035 = vmatpush1.msra.mxu0 0.0
    %2036 = vmatprep.subr.mxu0 0.0
    %2037 = vmatpush1.msra.mxu0 0.0
    %2038 = vmatprep.subr.mxu0 0.0
    %2039 = vmatpush1.msra.mxu0 0.0
    %2040 = vmatprep.subr.mxu0 0.0
    %2041 = vmatpush1.msra.mxu0 0.0
    %2042 = vmatprep.subr.mxu0 0.0
    %2043 = vmatpush1.msra.mxu0 0.0
    %2044 = vmatprep.subr.mxu0 0.0
    %2045 = vmatpush1.msra.mxu0 0.0
    %2046 = vmatprep.subr.mxu0 0.0
    %2047 = vmatpush1.msra.mxu0 0.0
    %2048 = vmatprep.subr.mxu0 0.0
    %2049 = vmatpush1.msra.mxu0 0.0
    %2050 = vmatprep.subr.mxu0 0.0
    %2051 = vmatpush1.msra.mxu0 0.0
    %2052 = vmatprep.subr.mxu0 0.0
    %2053 = vmatpush1.msra.mxu0 0.0
    %2054 = vmatprep.subr.mxu0 0.0
    %2055 = vmatpush1.msra.mxu0 0.0
    %2056 = vmatprep.subr.mxu0 0.0
    %2057 = vmatpush1.msra.mxu0 0.0
    %2058 = vmatprep.subr.mxu0 0.0
    %2059 = vmatpush1.msra.mxu0 0.0
    %2060 = vmatprep.subr.mxu0 0.0
    %2061 = vmatpush1.msra.mxu0 0.0
    %2062 = vmatprep.subr.mxu0 0.0
    %2063 = vmatpush1.msra.mxu0 0.0
    %2064 = vmatprep.subr.mxu0 0.0
    %2065 = vmatpush1.msra.mxu0 0.0
    %2066 = vmatprep.subr.mxu0 0.0
    %2067 = vmatpush1.msra.mxu0 0.0
    %2068 = vmatprep.mubr.f32.mxu0 0.0
    %v2069 = vand.u32 %v1151, 4294901760
    %2070 = vmatmul.mubr.f32.gmra.mrb[0].mxu0 %v2069
    %v2071 = vpop.f32.mrb[0].mxu0
    %v2072 = vadd.f32 %v1987, %v2071
    %v2073 = vpop.f32.mrb[0].mxu0
    %2074 = vmatprep.mubr.f32.mxu0 0.0
    %v2075 = vand.u32 %v1154, 4294901760
    %2076 = vmatmul.mubr.f32.gmra.mrb[0].mxu0 %v2075
    %v2077 = vpop.f32.mrb[0].mxu0
    %v2078 = vadd.f32 %v1995, %v2077
    %v2079 = vpop.f32.mrb[0].mxu0
    %2080 = vdwg.mxu0
    %2081 = vmatprep.subr.mxu0 0.0
    %v2082 = vand.u32 %v1102, 4294901760
    %2083 = vmatpush1.msra.mxu0 %v2082
    %2084 = vmatprep.subr.mxu0 0.0
    %v2085 = vand.u32 %v1108, 4294901760
    %2086 = vmatpush1.msra.mxu0 %v2085
    %2087 = vmatprep.subr.mxu0 0.0
    %2088 = vmatpush1.msra.mxu0 0.0
    %2089 = vmatprep.subr.mxu0 0.0
    %2090 = vmatpush1.msra.mxu0 0.0
    %2091 = vmatprep.subr.mxu0 0.0
    %2092 = vmatpush1.msra.mxu0 0.0
    %2093 = vmatprep.subr.mxu0 0.0
    %2094 = vmatpush1.msra.mxu0 0.0
    %2095 = vmatprep.subr.mxu0 0.0
    %2096 = vmatpush1.msra.mxu0 0.0
    %2097 = vmatprep.subr.mxu0 0.0
    %2098 = vmatpush1.msra.mxu0 0.0
    %2099 = vmatprep.subr.mxu0 0.0
    %2100 = vmatpush1.msra.mxu0 0.0
    %2101 = vmatprep.subr.mxu0 0.0
    %2102 = vmatpush1.msra.mxu0 0.0
    %2103 = vmatprep.subr.mxu0 0.0
    %2104 = vmatpush1.msra.mxu0 0.0
    %2105 = vmatprep.subr.mxu0 0.0
    %2106 = vmatpush1.msra.mxu0 0.0
    %2107 = vmatprep.subr.mxu0 0.0
    %2108 = vmatpush1.msra.mxu0 0.0
    %2109 = vmatprep.subr.mxu0 0.0
    %2110 = vmatpush1.msra.mxu0 0.0
    %2111 = vmatprep.subr.mxu0 0.0
    %2112 = vmatpush1.msra.mxu0 0.0
    %2113 = vmatprep.subr.mxu0 0.0
    %2114 = vmatpush1.msra.mxu0 0.0
    %2115 = vmatprep.subr.mxu0 0.0
    %2116 = vmatpush1.msra.mxu0 0.0
    %2117 = vmatprep.subr.mxu0 0.0
    %2118 = vmatpush1.msra.mxu0 0.0
    %2119 = vmatprep.subr.mxu0 0.0
    %2120 = vmatpush1.msra.mxu0 0.0
    %2121 = vmatprep.subr.mxu0 0.0
    %2122 = vmatpush1.msra.mxu0 0.0
    %2123 = vmatprep.subr.mxu0 0.0
    %2124 = vmatpush1.msra.mxu0 0.0
    %2125 = vmatprep.subr.mxu0 0.0
    %2126 = vmatpush1.msra.mxu0 0.0
    %2127 = vmatprep.subr.mxu0 0.0
    %2128 = vmatpush1.msra.mxu0 0.0
    %2129 = vmatprep.subr.mxu0 0.0
    %2130 = vmatpush1.msra.mxu0 0.0
    %2131 = vmatprep.subr.mxu0 0.0
    %2132 = vmatpush1.msra.mxu0 0.0
    %2133 = vmatprep.subr.mxu0 0.0
    %2134 = vmatpush1.msra.mxu0 0.0
    %2135 = vmatprep.subr.mxu0 0.0
    %2136 = vmatpush1.msra.mxu0 0.0
    %2137 = vmatprep.subr.mxu0 0.0
    %2138 = vmatpush1.msra.mxu0 0.0
    %2139 = vmatprep.subr.mxu0 0.0
    %2140 = vmatpush1.msra.mxu0 0.0
    %2141 = vmatprep.subr.mxu0 0.0
    %2142 = vmatpush1.msra.mxu0 0.0
    %2143 = vmatprep.subr.mxu0 0.0
    %2144 = vmatpush1.msra.mxu0 0.0
    %2145 = vmatprep.subr.mxu0 0.0
    %2146 = vmatpush1.msra.mxu0 0.0
    %2147 = vmatprep.mubr.f32.mxu0 0.0
    %v2148 = vand.u32 %v1151, 4294901760
    %2149 = vmatmul.mubr.f32.gmra.mrb[0].mxu0 %v2148
    %v2150 = vpop.f32.mrb[0].mxu0
    %v2151 = vadd.f32 %v2072, %v2150
    %v2152 = vpop.f32.mrb[0].mxu0
    %2153 = vmatprep.mubr.f32.mxu0 0.0
    %v2154 = vand.u32 %v1154, 4294901760
    %2155 = vmatmul.mubr.f32.gmra.mrb[0].mxu0 %v2154
    %v2156 = vpop.f32.mrb[0].mxu0
    %v2157 = vadd.f32 %v2078, %v2156
    %v2158 = vpop.f32.mrb[0].mxu0
    %2159 = vdwg.mxu0
    %2160 = vmatprep.subr.mxu0 0.0
    %v2161 = vand.u32 %v1114, 4294901760
    %2162 = vmatpush1.msra.mxu0 %v2161
    %2163 = vmatprep.subr.mxu0 0.0
    %v2164 = vand.u32 %v1120, 4294901760
    %2165 = vmatpush1.msra.mxu0 %v2164
    %2166 = vmatprep.subr.mxu0 0.0
    %2167 = vmatpush1.msra.mxu0 0.0
    %2168 = vmatprep.subr.mxu0 0.0
    %2169 = vmatpush1.msra.mxu0 0.0
    %2170 = vmatprep.subr.mxu0 0.0
    %2171 = vmatpush1.msra.mxu0 0.0
    %2172 = vmatprep.subr.mxu0 0.0
    %2173 = vmatpush1.msra.mxu0 0.0
    %2174 = vmatprep.subr.mxu0 0.0
    %2175 = vmatpush1.msra.mxu0 0.0
    %2176 = vmatprep.subr.mxu0 0.0
    %2177 = vmatpush1.msra.mxu0 0.0
    %2178 = vmatprep.subr.mxu0 0.0
    %2179 = vmatpush1.msra.mxu0 0.0
    %2180 = vmatprep.subr.mxu0 0.0
    %2181 = vmatpush1.msra.mxu0 0.0
    %2182 = vmatprep.subr.mxu0 0.0
    %2183 = vmatpush1.msra.mxu0 0.0
    %2184 = vmatprep.subr.mxu0 0.0
    %2185 = vmatpush1.msra.mxu0 0.0
    %2186 = vmatprep.subr.mxu0 0.0
    %2187 = vmatpush1.msra.mxu0 0.0
    %2188 = vmatprep.subr.mxu0 0.0
    %2189 = vmatpush1.msra.mxu0 0.0
    %2190 = vmatprep.subr.mxu0 0.0
    %2191 = vmatpush1.msra.mxu0 0.0
    %2192 = vmatprep.subr.mxu0 0.0
    %2193 = vmatpush1.msra.mxu0 0.0
    %2194 = vmatprep.subr.mxu0 0.0
    %2195 = vmatpush1.msra.mxu0 0.0
    %2196 = vmatprep.subr.mxu0 0.0
    %2197 = vmatpush1.msra.mxu0 0.0
    %2198 = vmatprep.subr.mxu0 0.0
    %2199 = vmatpush1.msra.mxu0 0.0
    %2200 = vmatprep.subr.mxu0 0.0
    %2201 = vmatpush1.msra.mxu0 0.0
    %2202 = vmatprep.subr.mxu0 0.0
    %2203 = vmatpush1.msra.mxu0 0.0
    %2204 = vmatprep.subr.mxu0 0.0
    %2205 = vmatpush1.msra.mxu0 0.0
    %2206 = vmatprep.subr.mxu0 0.0
    %2207 = vmatpush1.msra.mxu0 0.0
    %2208 = vmatprep.subr.mxu0 0.0
    %2209 = vmatpush1.msra.mxu0 0.0
    %2210 = vmatprep.subr.mxu0 0.0
    %2211 = vmatpush1.msra.mxu0 0.0
    %2212 = vmatprep.subr.mxu0 0.0
    %2213 = vmatpush1.msra.mxu0 0.0
    %2214 = vmatprep.subr.mxu0 0.0
    %2215 = vmatpush1.msra.mxu0 0.0
    %2216 = vmatprep.subr.mxu0 0.0
    %2217 = vmatpush1.msra.mxu0 0.0
    %2218 = vmatprep.subr.mxu0 0.0
    %2219 = vmatpush1.msra.mxu0 0.0
    %2220 = vmatprep.subr.mxu0 0.0
    %2221 = vmatpush1.msra.mxu0 0.0
    %2222 = vmatprep.subr.mxu0 0.0
    %2223 = vmatpush1.msra.mxu0 0.0
    %2224 = vmatprep.subr.mxu0 0.0
    %2225 = vmatpush1.msra.mxu0 0.0
    %2226 = vmatprep.mubr.f32.mxu0 0.0
    %v2227 = vand.u32 %v1151, 4294901760
    %v2228 = vsub.f32 %v1151, %v2227
    %v2229 = vand.u32 %v2228, 4294901760
    %v2230 = vsub.f32 %v2228, %v2229
    %v2231 = vand.u32 %v2230, 4294901760
    %2232 = vmatmul.mubr.f32.gmra.mrb[0].mxu0 %v2231
    %v2233 = vpop.f32.mrb[0].mxu0
    %v2234 = vadd.f32 0.0, %v2233
    %v2235 = vpop.f32.mrb[0].mxu0
    %2236 = vmatprep.mubr.f32.mxu0 0.0
    %v2237 = vand.u32 %v1154, 4294901760
    %v2238 = vsub.f32 %v1154, %v2237
    %v2239 = vand.u32 %v2238, 4294901760
    %v2240 = vsub.f32 %v2238, %v2239
    %v2241 = vand.u32 %v2240, 4294901760
    %2242 = vmatmul.mubr.f32.gmra.mrb[0].mxu0 %v2241
    %v2243 = vpop.f32.mrb[0].mxu0
    %v2244 = vadd.f32 0.0, %v2243
    %v2245 = vpop.f32.mrb[0].mxu0
    %2246 = vdwg.mxu0
    %2247 = vmatprep.subr.mxu0 0.0
    %v2248 = vand.u32 %v1114, 4294901760
    %v2249 = vsub.f32 %v1114, %v2248
    %v2250 = vand.u32 %v2249, 4294901760
    %v2251 = vsub.f32 %v2249, %v2250
    %v2252 = vand.u32 %v2251, 4294901760
    %2253 = vmatpush1.msra.mxu0 %v2252
    %2254 = vmatprep.subr.mxu0 0.0
    %v2255 = vand.u32 %v1120, 4294901760
    %v2256 = vsub.f32 %v1120, %v2255
    %v2257 = vand.u32 %v2256, 4294901760
    %v2258 = vsub.f32 %v2256, %v2257
    %v2259 = vand.u32 %v2258, 4294901760
    %2260 = vmatpush1.msra.mxu0 %v2259
    %2261 = vmatprep.subr.mxu0 0.0
    %2262 = vmatpush1.msra.mxu0 0.0
    %2263 = vmatprep.subr.mxu0 0.0
    %2264 = vmatpush1.msra.mxu0 0.0
    %2265 = vmatprep.subr.mxu0 0.0
    %2266 = vmatpush1.msra.mxu0 0.0
    %2267 = vmatprep.subr.mxu0 0.0
    %2268 = vmatpush1.msra.mxu0 0.0
    %2269 = vmatprep.subr.mxu0 0.0
    %2270 = vmatpush1.msra.mxu0 0.0
    %2271 = vmatprep.subr.mxu0 0.0
    %2272 = vmatpush1.msra.mxu0 0.0
    %2273 = vmatprep.subr.mxu0 0.0
    %2274 = vmatpush1.msra.mxu0 0.0
    %2275 = vmatprep.subr.mxu0 0.0
    %2276 = vmatpush1.msra.mxu0 0.0
    %2277 = vmatprep.subr.mxu0 0.0
    %2278 = vmatpush1.msra.mxu0 0.0
    %2279 = vmatprep.subr.mxu0 0.0
    %2280 = vmatpush1.msra.mxu0 0.0
    %2281 = vmatprep.subr.mxu0 0.0
    %2282 = vmatpush1.msra.mxu0 0.0
    %2283 = vmatprep.subr.mxu0 0.0
    %2284 = vmatpush1.msra.mxu0 0.0
    %2285 = vmatprep.subr.mxu0 0.0
    %2286 = vmatpush1.msra.mxu0 0.0
    %2287 = vmatprep.subr.mxu0 0.0
    %2288 = vmatpush1.msra.mxu0 0.0
    %2289 = vmatprep.subr.mxu0 0.0
    %2290 = vmatpush1.msra.mxu0 0.0
    %2291 = vmatprep.subr.mxu0 0.0
    %2292 = vmatpush1.msra.mxu0 0.0
    %2293 = vmatprep.subr.mxu0 0.0
    %2294 = vmatpush1.msra.mxu0 0.0
    %2295 = vmatprep.subr.mxu0 0.0
    %2296 = vmatpush1.msra.mxu0 0.0
    %2297 = vmatprep.subr.mxu0 0.0
    %2298 = vmatpush1.msra.mxu0 0.0
    %2299 = vmatprep.subr.mxu0 0.0
    %2300 = vmatpush1.msra.mxu0 0.0
    %2301 = vmatprep.subr.mxu0 0.0
    %2302 = vmatpush1.msra.mxu0 0.0
    %2303 = vmatprep.subr.mxu0 0.0
    %2304 = vmatpush1.msra.mxu0 0.0
    %2305 = vmatprep.subr.mxu0 0.0
    %2306 = vmatpush1.msra.mxu0 0.0
    %2307 = vmatprep.subr.mxu0 0.0
    %2308 = vmatpush1.msra.mxu0 0.0
    %2309 = vmatprep.subr.mxu0 0.0
    %2310 = vmatpush1.msra.mxu0 0.0
    %2311 = vmatprep.subr.mxu0 0.0
    %2312 = vmatpush1.msra.mxu0 0.0
    %2313 = vmatprep.subr.mxu0 0.0
    %2314 = vmatpush1.msra.mxu0 0.0
    %2315 = vmatprep.subr.mxu0 0.0
    %2316 = vmatpush1.msra.mxu0 0.0
    %2317 = vmatprep.subr.mxu0 0.0
    %2318 = vmatpush1.msra.mxu0 0.0
    %2319 = vmatprep.subr.mxu0 0.0
    %2320 = vmatpush1.msra.mxu0 0.0
    %2321 = vmatprep.mubr.f32.mxu0 0.0
    %v2322 = vand.u32 %v1151, 4294901760
    %2323 = vmatmul.mubr.f32.gmra.mrb[0].mxu0 %v2322
    %v2324 = vpop.f32.mrb[0].mxu0
    %v2325 = vadd.f32 %v2234, %v2324
    %v2326 = vpop.f32.mrb[0].mxu0
    %2327 = vmatprep.mubr.f32.mxu0 0.0
    %v2328 = vand.u32 %v1154, 4294901760
    %2329 = vmatmul.mubr.f32.gmra.mrb[0].mxu0 %v2328
    %v2330 = vpop.f32.mrb[0].mxu0
    %v2331 = vadd.f32 %v2244, %v2330
    %v2332 = vpop.f32.mrb[0].mxu0
    %2333 = vdwg.mxu0
    %2334 = vmatprep.subr.mxu0 0.0
    %v2335 = vand.u32 %v1114, 4294901760
    %v2336 = vsub.f32 %v1114, %v2335
    %2337 = vmatpush1.msra.mxu0 %v2336
    %2338 = vmatprep.subr.mxu0 0.0
    %v2339 = vand.u32 %v1120, 4294901760
    %v2340 = vsub.f32 %v1120, %v2339
    %2341 = vmatpush1.msra.mxu0 %v2340
    %2342 = vmatprep.subr.mxu0 0.0
    %2343 = vmatpush1.msra.mxu0 0.0
    %2344 = vmatprep.subr.mxu0 0.0
    %2345 = vmatpush1.msra.mxu0 0.0
    %2346 = vmatprep.subr.mxu0 0.0
    %2347 = vmatpush1.msra.mxu0 0.0
    %2348 = vmatprep.subr.mxu0 0.0
    %2349 = vmatpush1.msra.mxu0 0.0
    %2350 = vmatprep.subr.mxu0 0.0
    %2351 = vmatpush1.msra.mxu0 0.0
    %2352 = vmatprep.subr.mxu0 0.0
    %2353 = vmatpush1.msra.mxu0 0.0
    %2354 = vmatprep.subr.mxu0 0.0
    %2355 = vmatpush1.msra.mxu0 0.0
    %2356 = vmatprep.subr.mxu0 0.0
    %2357 = vmatpush1.msra.mxu0 0.0
    %2358 = vmatprep.subr.mxu0 0.0
    %2359 = vmatpush1.msra.mxu0 0.0
    %2360 = vmatprep.subr.mxu0 0.0
    %2361 = vmatpush1.msra.mxu0 0.0
    %2362 = vmatprep.subr.mxu0 0.0
    %2363 = vmatpush1.msra.mxu0 0.0
    %2364 = vmatprep.subr.mxu0 0.0
    %2365 = vmatpush1.msra.mxu0 0.0
    %2366 = vmatprep.subr.mxu0 0.0
    %2367 = vmatpush1.msra.mxu0 0.0
    %2368 = vmatprep.subr.mxu0 0.0
    %2369 = vmatpush1.msra.mxu0 0.0
    %2370 = vmatprep.subr.mxu0 0.0
    %2371 = vmatpush1.msra.mxu0 0.0
    %2372 = vmatprep.subr.mxu0 0.0
    %2373 = vmatpush1.msra.mxu0 0.0
    %2374 = vmatprep.subr.mxu0 0.0
    %2375 = vmatpush1.msra.mxu0 0.0
    %2376 = vmatprep.subr.mxu0 0.0
    %2377 = vmatpush1.msra.mxu0 0.0
    %2378 = vmatprep.subr.mxu0 0.0
    %2379 = vmatpush1.msra.mxu0 0.0
    %2380 = vmatprep.subr.mxu0 0.0
    %2381 = vmatpush1.msra.mxu0 0.0
    %2382 = vmatprep.subr.mxu0 0.0
    %2383 = vmatpush1.msra.mxu0 0.0
    %2384 = vmatprep.subr.mxu0 0.0
    %2385 = vmatpush1.msra.mxu0 0.0
    %2386 = vmatprep.subr.mxu0 0.0
    %2387 = vmatpush1.msra.mxu0 0.0
    %2388 = vmatprep.subr.mxu0 0.0
    %2389 = vmatpush1.msra.mxu0 0.0
    %2390 = vmatprep.subr.mxu0 0.0
    %2391 = vmatpush1.msra.mxu0 0.0
    %2392 = vmatprep.subr.mxu0 0.0
    %2393 = vmatpush1.msra.mxu0 0.0
    %2394 = vmatprep.subr.mxu0 0.0
    %2395 = vmatpush1.msra.mxu0 0.0
    %2396 = vmatprep.subr.mxu0 0.0
    %2397 = vmatpush1.msra.mxu0 0.0
    %2398 = vmatprep.subr.mxu0 0.0
    %2399 = vmatpush1.msra.mxu0 0.0
    %2400 = vmatprep.subr.mxu0 0.0
    %2401 = vmatpush1.msra.mxu0 0.0
    %2402 = vmatprep.mubr.f32.mxu0 0.0
    %v2403 = vand.u32 %v1151, 4294901760
    %v2404 = vsub.f32 %v1151, %v2403
    %2405 = vmatmul.mubr.f32.gmra.mrb[0].mxu0 %v2404
    %v2406 = vpop.f32.mrb[0].mxu0
    %v2407 = vadd.f32 %v2325, %v2406
    %v2408 = vpop.f32.mrb[0].mxu0
    %2409 = vmatprep.mubr.f32.mxu0 0.0
    %v2410 = vand.u32 %v1154, 4294901760
    %v2411 = vsub.f32 %v1154, %v2410
    %2412 = vmatmul.mubr.f32.gmra.mrb[0].mxu0 %v2411
    %v2413 = vpop.f32.mrb[0].mxu0
    %v2414 = vadd.f32 %v2331, %v2413
    %v2415 = vpop.f32.mrb[0].mxu0
    %2416 = vdwg.mxu0
    %2417 = vmatprep.subr.mxu0 0.0
    %v2418 = vand.u32 %v1114, 4294901760
    %2419 = vmatpush1.msra.mxu0 %v2418
    %2420 = vmatprep.subr.mxu0 0.0
    %v2421 = vand.u32 %v1120, 4294901760
    %2422 = vmatpush1.msra.mxu0 %v2421
    %2423 = vmatprep.subr.mxu0 0.0
    %2424 = vmatpush1.msra.mxu0 0.0
    %2425 = vmatprep.subr.mxu0 0.0
    %2426 = vmatpush1.msra.mxu0 0.0
    %2427 = vmatprep.subr.mxu0 0.0
    %2428 = vmatpush1.msra.mxu0 0.0
    %2429 = vmatprep.subr.mxu0 0.0
    %2430 = vmatpush1.msra.mxu0 0.0
    %2431 = vmatprep.subr.mxu0 0.0
    %2432 = vmatpush1.msra.mxu0 0.0
    %2433 = vmatprep.subr.mxu0 0.0
    %2434 = vmatpush1.msra.mxu0 0.0
    %2435 = vmatprep.subr.mxu0 0.0
    %2436 = vmatpush1.msra.mxu0 0.0
    %2437 = vmatprep.subr.mxu0 0.0
    %2438 = vmatpush1.msra.mxu0 0.0
    %2439 = vmatprep.subr.mxu0 0.0
    %2440 = vmatpush1.msra.mxu0 0.0
    %2441 = vmatprep.subr.mxu0 0.0
    %2442 = vmatpush1.msra.mxu0 0.0
    %2443 = vmatprep.subr.mxu0 0.0
    %2444 = vmatpush1.msra.mxu0 0.0
    %2445 = vmatprep.subr.mxu0 0.0
    %2446 = vmatpush1.msra.mxu0 0.0
    %2447 = vmatprep.subr.mxu0 0.0
    %2448 = vmatpush1.msra.mxu0 0.0
    %2449 = vmatprep.subr.mxu0 0.0
    %2450 = vmatpush1.msra.mxu0 0.0
    %2451 = vmatprep.subr.mxu0 0.0
    %2452 = vmatpush1.msra.mxu0 0.0
    %2453 = vmatprep.subr.mxu0 0.0
    %2454 = vmatpush1.msra.mxu0 0.0
    %2455 = vmatprep.subr.mxu0 0.0
    %2456 = vmatpush1.msra.mxu0 0.0
    %2457 = vmatprep.subr.mxu0 0.0
    %2458 = vmatpush1.msra.mxu0 0.0
    %2459 = vmatprep.subr.mxu0 0.0
    %2460 = vmatpush1.msra.mxu0 0.0
    %2461 = vmatprep.subr.mxu0 0.0
    %2462 = vmatpush1.msra.mxu0 0.0
    %2463 = vmatprep.subr.mxu0 0.0
    %2464 = vmatpush1.msra.mxu0 0.0
    %2465 = vmatprep.subr.mxu0 0.0
    %2466 = vmatpush1.msra.mxu0 0.0
    %2467 = vmatprep.subr.mxu0 0.0
    %2468 = vmatpush1.msra.mxu0 0.0
    %2469 = vmatprep.subr.mxu0 0.0
    %2470 = vmatpush1.msra.mxu0 0.0
    %2471 = vmatprep.subr.mxu0 0.0
    %2472 = vmatpush1.msra.mxu0 0.0
    %2473 = vmatprep.subr.mxu0 0.0
    %2474 = vmatpush1.msra.mxu0 0.0
    %2475 = vmatprep.subr.mxu0 0.0
    %2476 = vmatpush1.msra.mxu0 0.0
    %2477 = vmatprep.subr.mxu0 0.0
    %2478 = vmatpush1.msra.mxu0 0.0
    %2479 = vmatprep.subr.mxu0 0.0
    %2480 = vmatpush1.msra.mxu0 0.0
    %2481 = vmatprep.subr.mxu0 0.0
    %2482 = vmatpush1.msra.mxu0 0.0
    %2483 = vmatprep.mubr.f32.mxu0 0.0
    %v2484 = vand.u32 %v1151, 4294901760
    %v2485 = vsub.f32 %v1151, %v2484
    %v2486 = vand.u32 %v2485, 4294901760
    %2487 = vmatmul.mubr.f32.gmra.mrb[0].mxu0 %v2486
    %v2488 = vpop.f32.mrb[0].mxu0
    %v2489 = vadd.f32 %v2407, %v2488
    %v2490 = vpop.f32.mrb[0].mxu0
    %2491 = vmatprep.mubr.f32.mxu0 0.0
    %v2492 = vand.u32 %v1154, 4294901760
    %v2493 = vsub.f32 %v1154, %v2492
    %v2494 = vand.u32 %v2493, 4294901760
    %2495 = vmatmul.mubr.f32.gmra.mrb[0].mxu0 %v2494
    %v2496 = vpop.f32.mrb[0].mxu0
    %v2497 = vadd.f32 %v2414, %v2496
    %v2498 = vpop.f32.mrb[0].mxu0
    %2499 = vdwg.mxu0
    %2500 = vmatprep.subr.mxu0 0.0
    %v2501 = vand.u32 %v1114, 4294901760
    %v2502 = vsub.f32 %v1114, %v2501
    %v2503 = vand.u32 %v2502, 4294901760
    %2504 = vmatpush1.msra.mxu0 %v2503
    %2505 = vmatprep.subr.mxu0 0.0
    %v2506 = vand.u32 %v1120, 4294901760
    %v2507 = vsub.f32 %v1120, %v2506
    %v2508 = vand.u32 %v2507, 4294901760
    %2509 = vmatpush1.msra.mxu0 %v2508
    %2510 = vmatprep.subr.mxu0 0.0
    %2511 = vmatpush1.msra.mxu0 0.0
    %2512 = vmatprep.subr.mxu0 0.0
    %2513 = vmatpush1.msra.mxu0 0.0
    %2514 = vmatprep.subr.mxu0 0.0
    %2515 = vmatpush1.msra.mxu0 0.0
    %2516 = vmatprep.subr.mxu0 0.0
    %2517 = vmatpush1.msra.mxu0 0.0
    %2518 = vmatprep.subr.mxu0 0.0
    %2519 = vmatpush1.msra.mxu0 0.0
    %2520 = vmatprep.subr.mxu0 0.0
    %2521 = vmatpush1.msra.mxu0 0.0
    %2522 = vmatprep.subr.mxu0 0.0
    %2523 = vmatpush1.msra.mxu0 0.0
    %2524 = vmatprep.subr.mxu0 0.0
    %2525 = vmatpush1.msra.mxu0 0.0
    %2526 = vmatprep.subr.mxu0 0.0
    %2527 = vmatpush1.msra.mxu0 0.0
    %2528 = vmatprep.subr.mxu0 0.0
    %2529 = vmatpush1.msra.mxu0 0.0
    %2530 = vmatprep.subr.mxu0 0.0
    %2531 = vmatpush1.msra.mxu0 0.0
    %2532 = vmatprep.subr.mxu0 0.0
    %2533 = vmatpush1.msra.mxu0 0.0
    %2534 = vmatprep.subr.mxu0 0.0
    %2535 = vmatpush1.msra.mxu0 0.0
    %2536 = vmatprep.subr.mxu0 0.0
    %2537 = vmatpush1.msra.mxu0 0.0
    %2538 = vmatprep.subr.mxu0 0.0
    %2539 = vmatpush1.msra.mxu0 0.0
    %2540 = vmatprep.subr.mxu0 0.0
    %2541 = vmatpush1.msra.mxu0 0.0
    %2542 = vmatprep.subr.mxu0 0.0
    %2543 = vmatpush1.msra.mxu0 0.0
    %2544 = vmatprep.subr.mxu0 0.0
    %2545 = vmatpush1.msra.mxu0 0.0
    %2546 = vmatprep.subr.mxu0 0.0
    %2547 = vmatpush1.msra.mxu0 0.0
    %2548 = vmatprep.subr.mxu0 0.0
    %2549 = vmatpush1.msra.mxu0 0.0
    %2550 = vmatprep.subr.mxu0 0.0
    %2551 = vmatpush1.msra.mxu0 0.0
    %2552 = vmatprep.subr.mxu0 0.0
    %2553 = vmatpush1.msra.mxu0 0.0
    %2554 = vmatprep.subr.mxu0 0.0
    %2555 = vmatpush1.msra.mxu0 0.0
    %2556 = vmatprep.subr.mxu0 0.0
    %2557 = vmatpush1.msra.mxu0 0.0
    %2558 = vmatprep.subr.mxu0 0.0
    %2559 = vmatpush1.msra.mxu0 0.0
    %2560 = vmatprep.subr.mxu0 0.0
    %2561 = vmatpush1.msra.mxu0 0.0
    %2562 = vmatprep.subr.mxu0 0.0
    %2563 = vmatpush1.msra.mxu0 0.0
    %2564 = vmatprep.subr.mxu0 0.0
    %2565 = vmatpush1.msra.mxu0 0.0
    %2566 = vmatprep.subr.mxu0 0.0
    %2567 = vmatpush1.msra.mxu0 0.0
    %2568 = vmatprep.subr.mxu0 0.0
    %2569 = vmatpush1.msra.mxu0 0.0
    %2570 = vmatprep.mubr.f32.mxu0 0.0
    %v2571 = vand.u32 %v1151, 4294901760
    %2572 = vmatmul.mubr.f32.gmra.mrb[0].mxu0 %v2571
    %v2573 = vpop.f32.mrb[0].mxu0
    %v2574 = vadd.f32 %v2489, %v2573
    %v2575 = vpop.f32.mrb[0].mxu0
    %2576 = vmatprep.mubr.f32.mxu0 0.0
    %v2577 = vand.u32 %v1154, 4294901760
    %2578 = vmatmul.mubr.f32.gmra.mrb[0].mxu0 %v2577
    %v2579 = vpop.f32.mrb[0].mxu0
    %v2580 = vadd.f32 %v2497, %v2579
    %v2581 = vpop.f32.mrb[0].mxu0
    %2582 = vdwg.mxu0
    %2583 = vmatprep.subr.mxu0 0.0
    %v2584 = vand.u32 %v1114, 4294901760
    %2585 = vmatpush1.msra.mxu0 %v2584
    %2586 = vmatprep.subr.mxu0 0.0
    %v2587 = vand.u32 %v1120, 4294901760
    %2588 = vmatpush1.msra.mxu0 %v2587
    %2589 = vmatprep.subr.mxu0 0.0
    %2590 = vmatpush1.msra.mxu0 0.0
    %2591 = vmatprep.subr.mxu0 0.0
    %2592 = vmatpush1.msra.mxu0 0.0
    %2593 = vmatprep.subr.mxu0 0.0
    %2594 = vmatpush1.msra.mxu0 0.0
    %2595 = vmatprep.subr.mxu0 0.0
    %2596 = vmatpush1.msra.mxu0 0.0
    %2597 = vmatprep.subr.mxu0 0.0
    %2598 = vmatpush1.msra.mxu0 0.0
    %2599 = vmatprep.subr.mxu0 0.0
    %2600 = vmatpush1.msra.mxu0 0.0
    %2601 = vmatprep.subr.mxu0 0.0
    %2602 = vmatpush1.msra.mxu0 0.0
    %2603 = vmatprep.subr.mxu0 0.0
    %2604 = vmatpush1.msra.mxu0 0.0
    %2605 = vmatprep.subr.mxu0 0.0
    %2606 = vmatpush1.msra.mxu0 0.0
    %2607 = vmatprep.subr.mxu0 0.0
    %2608 = vmatpush1.msra.mxu0 0.0
    %2609 = vmatprep.subr.mxu0 0.0
    %2610 = vmatpush1.msra.mxu0 0.0
    %2611 = vmatprep.subr.mxu0 0.0
    %2612 = vmatpush1.msra.mxu0 0.0
    %2613 = vmatprep.subr.mxu0 0.0
    %2614 = vmatpush1.msra.mxu0 0.0
    %2615 = vmatprep.subr.mxu0 0.0
    %2616 = vmatpush1.msra.mxu0 0.0
    %2617 = vmatprep.subr.mxu0 0.0
    %2618 = vmatpush1.msra.mxu0 0.0
    %2619 = vmatprep.subr.mxu0 0.0
    %2620 = vmatpush1.msra.mxu0 0.0
    %2621 = vmatprep.subr.mxu0 0.0
    %2622 = vmatpush1.msra.mxu0 0.0
    %2623 = vmatprep.subr.mxu0 0.0
    %2624 = vmatpush1.msra.mxu0 0.0
    %2625 = vmatprep.subr.mxu0 0.0
    %2626 = vmatpush1.msra.mxu0 0.0
    %2627 = vmatprep.subr.mxu0 0.0
    %2628 = vmatpush1.msra.mxu0 0.0
    %2629 = vmatprep.subr.mxu0 0.0
    %2630 = vmatpush1.msra.mxu0 0.0
    %2631 = vmatprep.subr.mxu0 0.0
    %2632 = vmatpush1.msra.mxu0 0.0
    %2633 = vmatprep.subr.mxu0 0.0
    %2634 = vmatpush1.msra.mxu0 0.0
    %2635 = vmatprep.subr.mxu0 0.0
    %2636 = vmatpush1.msra.mxu0 0.0
    %2637 = vmatprep.subr.mxu0 0.0
    %2638 = vmatpush1.msra.mxu0 0.0
    %2639 = vmatprep.subr.mxu0 0.0
    %2640 = vmatpush1.msra.mxu0 0.0
    %2641 = vmatprep.subr.mxu0 0.0
    %2642 = vmatpush1.msra.mxu0 0.0
    %2643 = vmatprep.subr.mxu0 0.0
    %2644 = vmatpush1.msra.mxu0 0.0
    %2645 = vmatprep.subr.mxu0 0.0
    %2646 = vmatpush1.msra.mxu0 0.0
    %2647 = vmatprep.subr.mxu0 0.0
    %2648 = vmatpush1.msra.mxu0 0.0
    %2649 = vmatprep.mubr.f32.mxu0 0.0
    %v2650 = vand.u32 %v1151, 4294901760
    %2651 = vmatmul.mubr.f32.gmra.mrb[0].mxu0 %v2650
    %v2652 = vpop.f32.mrb[0].mxu0
    %v2653 = vadd.f32 %v2574, %v2652
    %v2654 = vpop.f32.mrb[0].mxu0
    %2655 = vmatprep.mubr.f32.mxu0 0.0
    %v2656 = vand.u32 %v1154, 4294901760
    %2657 = vmatmul.mubr.f32.gmra.mrb[0].mxu0 %v2656
    %v2658 = vpop.f32.mrb[0].mxu0
    %v2659 = vadd.f32 %v2580, %v2658
    %v2660 = vpop.f32.mrb[0].mxu0
    %2661 = vdwg.mxu0
    %2662 = vmatprep.subr.mxu0 0.0
    %v2663 = vand.u32 %v1126, 4294901760
    %2664 = vmatpush1.msra.mxu0 %v2663
    %2665 = vmatprep.subr.mxu0 0.0
    %v2666 = vand.u32 %v1132, 4294901760
    %2667 = vmatpush1.msra.mxu0 %v2666
    %2668 = vmatprep.subr.mxu0 0.0
    %2669 = vmatpush1.msra.mxu0 0.0
    %2670 = vmatprep.subr.mxu0 0.0
    %2671 = vmatpush1.msra.mxu0 0.0
    %2672 = vmatprep.subr.mxu0 0.0
    %2673 = vmatpush1.msra.mxu0 0.0
    %2674 = vmatprep.subr.mxu0 0.0
    %2675 = vmatpush1.msra.mxu0 0.0
    %2676 = vmatprep.subr.mxu0 0.0
    %2677 = vmatpush1.msra.mxu0 0.0
    %2678 = vmatprep.subr.mxu0 0.0
    %2679 = vmatpush1.msra.mxu0 0.0
    %2680 = vmatprep.subr.mxu0 0.0
    %2681 = vmatpush1.msra.mxu0 0.0
    %2682 = vmatprep.subr.mxu0 0.0
    %2683 = vmatpush1.msra.mxu0 0.0
    %2684 = vmatprep.subr.mxu0 0.0
    %2685 = vmatpush1.msra.mxu0 0.0
    %2686 = vmatprep.subr.mxu0 0.0
    %2687 = vmatpush1.msra.mxu0 0.0
    %2688 = vmatprep.subr.mxu0 0.0
    %2689 = vmatpush1.msra.mxu0 0.0
    %2690 = vmatprep.subr.mxu0 0.0
    %2691 = vmatpush1.msra.mxu0 0.0
    %2692 = vmatprep.subr.mxu0 0.0
    %2693 = vmatpush1.msra.mxu0 0.0
    %2694 = vmatprep.subr.mxu0 0.0
    %2695 = vmatpush1.msra.mxu0 0.0
    %2696 = vmatprep.subr.mxu0 0.0
    %2697 = vmatpush1.msra.mxu0 0.0
    %2698 = vmatprep.subr.mxu0 0.0
    %2699 = vmatpush1.msra.mxu0 0.0
    %2700 = vmatprep.subr.mxu0 0.0
    %2701 = vmatpush1.msra.mxu0 0.0
    %2702 = vmatprep.subr.mxu0 0.0
    %2703 = vmatpush1.msra.mxu0 0.0
    %2704 = vmatprep.subr.mxu0 0.0
    %2705 = vmatpush1.msra.mxu0 0.0
    %2706 = vmatprep.subr.mxu0 0.0
    %2707 = vmatpush1.msra.mxu0 0.0
    %2708 = vmatprep.subr.mxu0 0.0
    %2709 = vmatpush1.msra.mxu0 0.0
    %2710 = vmatprep.subr.mxu0 0.0
    %2711 = vmatpush1.msra.mxu0 0.0
    %2712 = vmatprep.subr.mxu0 0.0
    %2713 = vmatpush1.msra.mxu0 0.0
    %2714 = vmatprep.subr.mxu0 0.0
    %2715 = vmatpush1.msra.mxu0 0.0
    %2716 = vmatprep.subr.mxu0 0.0
    %2717 = vmatpush1.msra.mxu0 0.0
    %2718 = vmatprep.subr.mxu0 0.0
    %2719 = vmatpush1.msra.mxu0 0.0
    %2720 = vmatprep.subr.mxu0 0.0
    %2721 = vmatpush1.msra.mxu0 0.0
    %2722 = vmatprep.subr.mxu0 0.0
    %2723 = vmatpush1.msra.mxu0 0.0
    %2724 = vmatprep.subr.mxu0 0.0
    %2725 = vmatpush1.msra.mxu0 0.0
    %2726 = vmatprep.subr.mxu0 0.0
    %2727 = vmatpush1.msra.mxu0 0.0
    %2728 = vmatprep.mubr.f32.mxu0 0.0
    %v2729 = vand.u32 %v1151, 4294901760
    %v2730 = vsub.f32 %v1151, %v2729
    %v2731 = vand.u32 %v2730, 4294901760
    %v2732 = vsub.f32 %v2730, %v2731
    %v2733 = vand.u32 %v2732, 4294901760
    %2734 = vmatmul.mubr.f32.gmra.mrb[0].mxu0 %v2733
    %v2735 = vpop.f32.mrb[0].mxu0
    %v2736 = vadd.f32 0.0, %v2735
    %v2737 = vpop.f32.mrb[0].mxu0
    %2738 = vmatprep.mubr.f32.mxu0 0.0
    %v2739 = vand.u32 %v1154, 4294901760
    %v2740 = vsub.f32 %v1154, %v2739
    %v2741 = vand.u32 %v2740, 4294901760
    %v2742 = vsub.f32 %v2740, %v2741
    %v2743 = vand.u32 %v2742, 4294901760
    %2744 = vmatmul.mubr.f32.gmra.mrb[0].mxu0 %v2743
    %v2745 = vpop.f32.mrb[0].mxu0
    %v2746 = vadd.f32 0.0, %v2745
    %v2747 = vpop.f32.mrb[0].mxu0
    %2748 = vdwg.mxu0
    %2749 = vmatprep.subr.mxu0 0.0
    %v2750 = vand.u32 %v1126, 4294901760
    %v2751 = vsub.f32 %v1126, %v2750
    %v2752 = vand.u32 %v2751, 4294901760
    %v2753 = vsub.f32 %v2751, %v2752
    %v2754 = vand.u32 %v2753, 4294901760
    %2755 = vmatpush1.msra.mxu0 %v2754
    %2756 = vmatprep.subr.mxu0 0.0
    %v2757 = vand.u32 %v1132, 4294901760
    %v2758 = vsub.f32 %v1132, %v2757
    %v2759 = vand.u32 %v2758, 4294901760
    %v2760 = vsub.f32 %v2758, %v2759
    %v2761 = vand.u32 %v2760, 4294901760
    %2762 = vmatpush1.msra.mxu0 %v2761
    %2763 = vmatprep.subr.mxu0 0.0
    %2764 = vmatpush1.msra.mxu0 0.0
    %2765 = vmatprep.subr.mxu0 0.0
    %2766 = vmatpush1.msra.mxu0 0.0
    %2767 = vmatprep.subr.mxu0 0.0
    %2768 = vmatpush1.msra.mxu0 0.0
    %2769 = vmatprep.subr.mxu0 0.0
    %2770 = vmatpush1.msra.mxu0 0.0
    %2771 = vmatprep.subr.mxu0 0.0
    %2772 = vmatpush1.msra.mxu0 0.0
    %2773 = vmatprep.subr.mxu0 0.0
    %2774 = vmatpush1.msra.mxu0 0.0
    %2775 = vmatprep.subr.mxu0 0.0
    %2776 = vmatpush1.msra.mxu0 0.0
    %2777 = vmatprep.subr.mxu0 0.0
    %2778 = vmatpush1.msra.mxu0 0.0
    %2779 = vmatprep.subr.mxu0 0.0
    %2780 = vmatpush1.msra.mxu0 0.0
    %2781 = vmatprep.subr.mxu0 0.0
    %2782 = vmatpush1.msra.mxu0 0.0
    %2783 = vmatprep.subr.mxu0 0.0
    %2784 = vmatpush1.msra.mxu0 0.0
    %2785 = vmatprep.subr.mxu0 0.0
    %2786 = vmatpush1.msra.mxu0 0.0
    %2787 = vmatprep.subr.mxu0 0.0
    %2788 = vmatpush1.msra.mxu0 0.0
    %2789 = vmatprep.subr.mxu0 0.0
    %2790 = vmatpush1.msra.mxu0 0.0
    %2791 = vmatprep.subr.mxu0 0.0
    %2792 = vmatpush1.msra.mxu0 0.0
    %2793 = vmatprep.subr.mxu0 0.0
    %2794 = vmatpush1.msra.mxu0 0.0
    %2795 = vmatprep.subr.mxu0 0.0
    %2796 = vmatpush1.msra.mxu0 0.0
    %2797 = vmatprep.subr.mxu0 0.0
    %2798 = vmatpush1.msra.mxu0 0.0
    %2799 = vmatprep.subr.mxu0 0.0
    %2800 = vmatpush1.msra.mxu0 0.0
    %2801 = vmatprep.subr.mxu0 0.0
    %2802 = vmatpush1.msra.mxu0 0.0
    %2803 = vmatprep.subr.mxu0 0.0
    %2804 = vmatpush1.msra.mxu0 0.0
    %2805 = vmatprep.subr.mxu0 0.0
    %2806 = vmatpush1.msra.mxu0 0.0
    %2807 = vmatprep.subr.mxu0 0.0
    %2808 = vmatpush1.msra.mxu0 0.0
    %2809 = vmatprep.subr.mxu0 0.0
    %2810 = vmatpush1.msra.mxu0 0.0
    %2811 = vmatprep.subr.mxu0 0.0
    %2812 = vmatpush1.msra.mxu0 0.0
    %2813 = vmatprep.subr.mxu0 0.0
    %2814 = vmatpush1.msra.mxu0 0.0
    %2815 = vmatprep.subr.mxu0 0.0
    %2816 = vmatpush1.msra.mxu0 0.0
    %2817 = vmatprep.subr.mxu0 0.0
    %2818 = vmatpush1.msra.mxu0 0.0
    %2819 = vmatprep.subr.mxu0 0.0
    %2820 = vmatpush1.msra.mxu0 0.0
    %2821 = vmatprep.subr.mxu0 0.0
    %2822 = vmatpush1.msra.mxu0 0.0
    %2823 = vmatprep.mubr.f32.mxu0 0.0
    %v2824 = vand.u32 %v1151, 4294901760
    %2825 = vmatmul.mubr.f32.gmra.mrb[0].mxu0 %v2824
    %v2826 = vpop.f32.mrb[0].mxu0
    %v2827 = vadd.f32 %v2736, %v2826
    %v2828 = vpop.f32.mrb[0].mxu0
    %2829 = vmatprep.mubr.f32.mxu0 0.0
    %v2830 = vand.u32 %v1154, 4294901760
    %2831 = vmatmul.mubr.f32.gmra.mrb[0].mxu0 %v2830
    %v2832 = vpop.f32.mrb[0].mxu0
    %v2833 = vadd.f32 %v2746, %v2832
    %v2834 = vpop.f32.mrb[0].mxu0
    %2835 = vdwg.mxu0
    %2836 = vmatprep.subr.mxu0 0.0
    %v2837 = vand.u32 %v1126, 4294901760
    %v2838 = vsub.f32 %v1126, %v2837
    %2839 = vmatpush1.msra.mxu0 %v2838
    %2840 = vmatprep.subr.mxu0 0.0
    %v2841 = vand.u32 %v1132, 4294901760
    %v2842 = vsub.f32 %v1132, %v2841
    %2843 = vmatpush1.msra.mxu0 %v2842
    %2844 = vmatprep.subr.mxu0 0.0
    %2845 = vmatpush1.msra.mxu0 0.0
    %2846 = vmatprep.subr.mxu0 0.0
    %2847 = vmatpush1.msra.mxu0 0.0
    %2848 = vmatprep.subr.mxu0 0.0
    %2849 = vmatpush1.msra.mxu0 0.0
    %2850 = vmatprep.subr.mxu0 0.0
    %2851 = vmatpush1.msra.mxu0 0.0
    %2852 = vmatprep.subr.mxu0 0.0
    %2853 = vmatpush1.msra.mxu0 0.0
    %2854 = vmatprep.subr.mxu0 0.0
    %2855 = vmatpush1.msra.mxu0 0.0
    %2856 = vmatprep.subr.mxu0 0.0
    %2857 = vmatpush1.msra.mxu0 0.0
    %2858 = vmatprep.subr.mxu0 0.0
    %2859 = vmatpush1.msra.mxu0 0.0
    %2860 = vmatprep.subr.mxu0 0.0
    %2861 = vmatpush1.msra.mxu0 0.0
    %2862 = vmatprep.subr.mxu0 0.0
    %2863 = vmatpush1.msra.mxu0 0.0
    %2864 = vmatprep.subr.mxu0 0.0
    %2865 = vmatpush1.msra.mxu0 0.0
    %2866 = vmatprep.subr.mxu0 0.0
    %2867 = vmatpush1.msra.mxu0 0.0
    %2868 = vmatprep.subr.mxu0 0.0
    %2869 = vmatpush1.msra.mxu0 0.0
    %2870 = vmatprep.subr.mxu0 0.0
    %2871 = vmatpush1.msra.mxu0 0.0
    %2872 = vmatprep.subr.mxu0 0.0
    %2873 = vmatpush1.msra.mxu0 0.0
    %2874 = vmatprep.subr.mxu0 0.0
    %2875 = vmatpush1.msra.mxu0 0.0
    %2876 = vmatprep.subr.mxu0 0.0
    %2877 = vmatpush1.msra.mxu0 0.0
    %2878 = vmatprep.subr.mxu0 0.0
    %2879 = vmatpush1.msra.mxu0 0.0
    %2880 = vmatprep.subr.mxu0 0.0
    %2881 = vmatpush1.msra.mxu0 0.0
    %2882 = vmatprep.subr.mxu0 0.0
    %2883 = vmatpush1.msra.mxu0 0.0
    %2884 = vmatprep.subr.mxu0 0.0
    %2885 = vmatpush1.msra.mxu0 0.0
    %2886 = vmatprep.subr.mxu0 0.0
    %2887 = vmatpush1.msra.mxu0 0.0
    %2888 = vmatprep.subr.mxu0 0.0
    %2889 = vmatpush1.msra.mxu0 0.0
    %2890 = vmatprep.subr.mxu0 0.0
    %2891 = vmatpush1.msra.mxu0 0.0
    %2892 = vmatprep.subr.mxu0 0.0
    %2893 = vmatpush1.msra.mxu0 0.0
    %2894 = vmatprep.subr.mxu0 0.0
    %2895 = vmatpush1.msra.mxu0 0.0
    %2896 = vmatprep.subr.mxu0 0.0
    %2897 = vmatpush1.msra.mxu0 0.0
    %2898 = vmatprep.subr.mxu0 0.0
    %2899 = vmatpush1.msra.mxu0 0.0
    %2900 = vmatprep.subr.mxu0 0.0
    %2901 = vmatpush1.msra.mxu0 0.0
    %2902 = vmatprep.subr.mxu0 0.0
    %2903 = vmatpush1.msra.mxu0 0.0
    %2904 = vmatprep.mubr.f32.mxu0 0.0
    %v2905 = vand.u32 %v1151, 4294901760
    %v2906 = vsub.f32 %v1151, %v2905
    %2907 = vmatmul.mubr.f32.gmra.mrb[0].mxu0 %v2906
    %v2908 = vpop.f32.mrb[0].mxu0
    %v2909 = vadd.f32 %v2827, %v2908
    %v2910 = vpop.f32.mrb[0].mxu0
    %2911 = vmatprep.mubr.f32.mxu0 0.0
    %v2912 = vand.u32 %v1154, 4294901760
    %v2913 = vsub.f32 %v1154, %v2912
    %2914 = vmatmul.mubr.f32.gmra.mrb[0].mxu0 %v2913
    %v2915 = vpop.f32.mrb[0].mxu0
    %v2916 = vadd.f32 %v2833, %v2915
    %v2917 = vpop.f32.mrb[0].mxu0
    %2918 = vdwg.mxu0
    %2919 = vmatprep.subr.mxu0 0.0
    %v2920 = vand.u32 %v1126, 4294901760
    %2921 = vmatpush1.msra.mxu0 %v2920
    %2922 = vmatprep.subr.mxu0 0.0
    %v2923 = vand.u32 %v1132, 4294901760
    %2924 = vmatpush1.msra.mxu0 %v2923
    %2925 = vmatprep.subr.mxu0 0.0
    %2926 = vmatpush1.msra.mxu0 0.0
    %2927 = vmatprep.subr.mxu0 0.0
    %2928 = vmatpush1.msra.mxu0 0.0
    %2929 = vmatprep.subr.mxu0 0.0
    %2930 = vmatpush1.msra.mxu0 0.0
    %2931 = vmatprep.subr.mxu0 0.0
    %2932 = vmatpush1.msra.mxu0 0.0
    %2933 = vmatprep.subr.mxu0 0.0
    %2934 = vmatpush1.msra.mxu0 0.0
    %2935 = vmatprep.subr.mxu0 0.0
    %2936 = vmatpush1.msra.mxu0 0.0
    %2937 = vmatprep.subr.mxu0 0.0
    %2938 = vmatpush1.msra.mxu0 0.0
    %2939 = vmatprep.subr.mxu0 0.0
    %2940 = vmatpush1.msra.mxu0 0.0
    %2941 = vmatprep.subr.mxu0 0.0
    %2942 = vmatpush1.msra.mxu0 0.0
    %2943 = vmatprep.subr.mxu0 0.0
    %2944 = vmatpush1.msra.mxu0 0.0
    %2945 = vmatprep.subr.mxu0 0.0
    %2946 = vmatpush1.msra.mxu0 0.0
    %2947 = vmatprep.subr.mxu0 0.0
    %2948 = vmatpush1.msra.mxu0 0.0
    %2949 = vmatprep.subr.mxu0 0.0
    %2950 = vmatpush1.msra.mxu0 0.0
    %2951 = vmatprep.subr.mxu0 0.0
    %2952 = vmatpush1.msra.mxu0 0.0
    %2953 = vmatprep.subr.mxu0 0.0
    %2954 = vmatpush1.msra.mxu0 0.0
    %2955 = vmatprep.subr.mxu0 0.0
    %2956 = vmatpush1.msra.mxu0 0.0
    %2957 = vmatprep.subr.mxu0 0.0
    %2958 = vmatpush1.msra.mxu0 0.0
    %2959 = vmatprep.subr.mxu0 0.0
    %2960 = vmatpush1.msra.mxu0 0.0
    %2961 = vmatprep.subr.mxu0 0.0
    %2962 = vmatpush1.msra.mxu0 0.0
    %2963 = vmatprep.subr.mxu0 0.0
    %2964 = vmatpush1.msra.mxu0 0.0
    %2965 = vmatprep.subr.mxu0 0.0
    %2966 = vmatpush1.msra.mxu0 0.0
    %2967 = vmatprep.subr.mxu0 0.0
    %2968 = vmatpush1.msra.mxu0 0.0
    %2969 = vmatprep.subr.mxu0 0.0
    %2970 = vmatpush1.msra.mxu0 0.0
    %2971 = vmatprep.subr.mxu0 0.0
    %2972 = vmatpush1.msra.mxu0 0.0
    %2973 = vmatprep.subr.mxu0 0.0
    %2974 = vmatpush1.msra.mxu0 0.0
    %2975 = vmatprep.subr.mxu0 0.0
    %2976 = vmatpush1.msra.mxu0 0.0
    %2977 = vmatprep.subr.mxu0 0.0
    %2978 = vmatpush1.msra.mxu0 0.0
    %2979 = vmatprep.subr.mxu0 0.0
    %2980 = vmatpush1.msra.mxu0 0.0
    %2981 = vmatprep.subr.mxu0 0.0
    %2982 = vmatpush1.msra.mxu0 0.0
    %2983 = vmatprep.subr.mxu0 0.0
    %2984 = vmatpush1.msra.mxu0 0.0
    %2985 = vmatprep.mubr.f32.mxu0 0.0
    %v2986 = vand.u32 %v1151, 4294901760
    %v2987 = vsub.f32 %v1151, %v2986
    %v2988 = vand.u32 %v2987, 4294901760
    %2989 = vmatmul.mubr.f32.gmra.mrb[0].mxu0 %v2988
    %v2990 = vpop.f32.mrb[0].mxu0
    %v2991 = vadd.f32 %v2909, %v2990
    %v2992 = vpop.f32.mrb[0].mxu0
    %2993 = vmatprep.mubr.f32.mxu0 0.0
    %v2994 = vand.u32 %v1154, 4294901760
    %v2995 = vsub.f32 %v1154, %v2994
    %v2996 = vand.u32 %v2995, 4294901760
    %2997 = vmatmul.mubr.f32.gmra.mrb[0].mxu0 %v2996
    %v2998 = vpop.f32.mrb[0].mxu0
    %v2999 = vadd.f32 %v2916, %v2998
    %v3000 = vpop.f32.mrb[0].mxu0
    %3001 = vdwg.mxu0
    %3002 = vmatprep.subr.mxu0 0.0
    %v3003 = vand.u32 %v1126, 4294901760
    %v3004 = vsub.f32 %v1126, %v3003
    %v3005 = vand.u32 %v3004, 4294901760
    %3006 = vmatpush1.msra.mxu0 %v3005
    %3007 = vmatprep.subr.mxu0 0.0
    %v3008 = vand.u32 %v1132, 4294901760
    %v3009 = vsub.f32 %v1132, %v3008
    %v3010 = vand.u32 %v3009, 4294901760
    %3011 = vmatpush1.msra.mxu0 %v3010
    %3012 = vmatprep.subr.mxu0 0.0
    %3013 = vmatpush1.msra.mxu0 0.0
    %3014 = vmatprep.subr.mxu0 0.0
    %3015 = vmatpush1.msra.mxu0 0.0
    %3016 = vmatprep.subr.mxu0 0.0
    %3017 = vmatpush1.msra.mxu0 0.0
    %3018 = vmatprep.subr.mxu0 0.0
    %3019 = vmatpush1.msra.mxu0 0.0
    %3020 = vmatprep.subr.mxu0 0.0
    %3021 = vmatpush1.msra.mxu0 0.0
    %3022 = vmatprep.subr.mxu0 0.0
    %3023 = vmatpush1.msra.mxu0 0.0
    %3024 = vmatprep.subr.mxu0 0.0
    %3025 = vmatpush1.msra.mxu0 0.0
    %3026 = vmatprep.subr.mxu0 0.0
    %3027 = vmatpush1.msra.mxu0 0.0
    %3028 = vmatprep.subr.mxu0 0.0
    %3029 = vmatpush1.msra.mxu0 0.0
    %3030 = vmatprep.subr.mxu0 0.0
    %3031 = vmatpush1.msra.mxu0 0.0
    %3032 = vmatprep.subr.mxu0 0.0
    %3033 = vmatpush1.msra.mxu0 0.0
    %3034 = vmatprep.subr.mxu0 0.0
    %3035 = vmatpush1.msra.mxu0 0.0
    %3036 = vmatprep.subr.mxu0 0.0
    %3037 = vmatpush1.msra.mxu0 0.0
    %3038 = vmatprep.subr.mxu0 0.0
    %3039 = vmatpush1.msra.mxu0 0.0
    %3040 = vmatprep.subr.mxu0 0.0
    %3041 = vmatpush1.msra.mxu0 0.0
    %3042 = vmatprep.subr.mxu0 0.0
    %3043 = vmatpush1.msra.mxu0 0.0
    %3044 = vmatprep.subr.mxu0 0.0
    %3045 = vmatpush1.msra.mxu0 0.0
    %3046 = vmatprep.subr.mxu0 0.0
    %3047 = vmatpush1.msra.mxu0 0.0
    %3048 = vmatprep.subr.mxu0 0.0
    %3049 = vmatpush1.msra.mxu0 0.0
    %3050 = vmatprep.subr.mxu0 0.0
    %3051 = vmatpush1.msra.mxu0 0.0
    %3052 = vmatprep.subr.mxu0 0.0
    %3053 = vmatpush1.msra.mxu0 0.0
    %3054 = vmatprep.subr.mxu0 0.0
    %3055 = vmatpush1.msra.mxu0 0.0
    %3056 = vmatprep.subr.mxu0 0.0
    %3057 = vmatpush1.msra.mxu0 0.0
    %3058 = vmatprep.subr.mxu0 0.0
    %3059 = vmatpush1.msra.mxu0 0.0
    %3060 = vmatprep.subr.mxu0 0.0
    %3061 = vmatpush1.msra.mxu0 0.0
    %3062 = vmatprep.subr.mxu0 0.0
    %3063 = vmatpush1.msra.mxu0 0.0
    %3064 = vmatprep.subr.mxu0 0.0
    %3065 = vmatpush1.msra.mxu0 0.0
    %3066 = vmatprep.subr.mxu0 0.0
    %3067 = vmatpush1.msra.mxu0 0.0
    %3068 = vmatprep.subr.mxu0 0.0
    %3069 = vmatpush1.msra.mxu0 0.0
    %3070 = vmatprep.subr.mxu0 0.0
    %3071 = vmatpush1.msra.mxu0 0.0
    %3072 = vmatprep.mubr.f32.mxu0 0.0
    %v3073 = vand.u32 %v1151, 4294901760
    %3074 = vmatmul.mubr.f32.gmra.mrb[0].mxu0 %v3073
    %v3075 = vpop.f32.mrb[0].mxu0
    %v3076 = vadd.f32 %v2991, %v3075
    %v3077 = vpop.f32.mrb[0].mxu0
    %3078 = vmatprep.mubr.f32.mxu0 0.0
    %v3079 = vand.u32 %v1154, 4294901760
    %3080 = vmatmul.mubr.f32.gmra.mrb[0].mxu0 %v3079
    %v3081 = vpop.f32.mrb[0].mxu0
    %v3082 = vadd.f32 %v2999, %v3081
    %v3083 = vpop.f32.mrb[0].mxu0
    %3084 = vdwg.mxu0
    %3085 = vmatprep.subr.mxu0 0.0
    %v3086 = vand.u32 %v1126, 4294901760
    %3087 = vmatpush1.msra.mxu0 %v3086
    %3088 = vmatprep.subr.mxu0 0.0
    %v3089 = vand.u32 %v1132, 4294901760
    %3090 = vmatpush1.msra.mxu0 %v3089
    %3091 = vmatprep.subr.mxu0 0.0
    %3092 = vmatpush1.msra.mxu0 0.0
    %3093 = vmatprep.subr.mxu0 0.0
    %3094 = vmatpush1.msra.mxu0 0.0
    %3095 = vmatprep.subr.mxu0 0.0
    %3096 = vmatpush1.msra.mxu0 0.0
    %3097 = vmatprep.subr.mxu0 0.0
    %3098 = vmatpush1.msra.mxu0 0.0
    %3099 = vmatprep.subr.mxu0 0.0
    %3100 = vmatpush1.msra.mxu0 0.0
    %3101 = vmatprep.subr.mxu0 0.0
    %3102 = vmatpush1.msra.mxu0 0.0
    %3103 = vmatprep.subr.mxu0 0.0
    %3104 = vmatpush1.msra.mxu0 0.0
    %3105 = vmatprep.subr.mxu0 0.0
    %3106 = vmatpush1.msra.mxu0 0.0
    %3107 = vmatprep.subr.mxu0 0.0
    %3108 = vmatpush1.msra.mxu0 0.0
    %3109 = vmatprep.subr.mxu0 0.0
    %3110 = vmatpush1.msra.mxu0 0.0
    %3111 = vmatprep.subr.mxu0 0.0
    %3112 = vmatpush1.msra.mxu0 0.0
    %3113 = vmatprep.subr.mxu0 0.0
    %3114 = vmatpush1.msra.mxu0 0.0
    %3115 = vmatprep.subr.mxu0 0.0
    %3116 = vmatpush1.msra.mxu0 0.0
    %3117 = vmatprep.subr.mxu0 0.0
    %3118 = vmatpush1.msra.mxu0 0.0
    %3119 = vmatprep.subr.mxu0 0.0
    %3120 = vmatpush1.msra.mxu0 0.0
    %3121 = vmatprep.subr.mxu0 0.0
    %3122 = vmatpush1.msra.mxu0 0.0
    %3123 = vmatprep.subr.mxu0 0.0
    %3124 = vmatpush1.msra.mxu0 0.0
    %3125 = vmatprep.subr.mxu0 0.0
    %3126 = vmatpush1.msra.mxu0 0.0
    %3127 = vmatprep.subr.mxu0 0.0
    %3128 = vmatpush1.msra.mxu0 0.0
    %3129 = vmatprep.subr.mxu0 0.0
    %3130 = vmatpush1.msra.mxu0 0.0
    %3131 = vmatprep.subr.mxu0 0.0
    %3132 = vmatpush1.msra.mxu0 0.0
    %3133 = vmatprep.subr.mxu0 0.0
    %3134 = vmatpush1.msra.mxu0 0.0
    %3135 = vmatprep.subr.mxu0 0.0
    %3136 = vmatpush1.msra.mxu0 0.0
    %3137 = vmatprep.subr.mxu0 0.0
    %3138 = vmatpush1.msra.mxu0 0.0
    %3139 = vmatprep.subr.mxu0 0.0
    %3140 = vmatpush1.msra.mxu0 0.0
    %3141 = vmatprep.subr.mxu0 0.0
    %3142 = vmatpush1.msra.mxu0 0.0
    %3143 = vmatprep.subr.mxu0 0.0
    %3144 = vmatpush1.msra.mxu0 0.0
    %3145 = vmatprep.subr.mxu0 0.0
    %3146 = vmatpush1.msra.mxu0 0.0
    %3147 = vmatprep.subr.mxu0 0.0
    %3148 = vmatpush1.msra.mxu0 0.0
    %3149 = vmatprep.subr.mxu0 0.0
    %3150 = vmatpush1.msra.mxu0 0.0
    %3151 = vmatprep.mubr.f32.mxu0 0.0
    %v3152 = vand.u32 %v1151, 4294901760
    %3153 = vmatmul.mubr.f32.gmra.mrb[0].mxu0 %v3152
    %v3154 = vpop.f32.mrb[0].mxu0
    %v3155 = vadd.f32 %v3076, %v3154
    %v3156 = vpop.f32.mrb[0].mxu0
    %3157 = vmatprep.mubr.f32.mxu0 0.0
    %v3158 = vand.u32 %v1154, 4294901760
    %3159 = vmatmul.mubr.f32.gmra.mrb[0].mxu0 %v3158
    %v3160 = vpop.f32.mrb[0].mxu0
    %v3161 = vadd.f32 %v3082, %v3160
    %v3162 = vpop.f32.mrb[0].mxu0
    %3163 = vdwg.mxu0
    %3164 = vmatprep.subr.mxu0 0.0
    %v3165 = vand.u32 %v1138, 4294901760
    %3166 = vmatpush1.msra.mxu0 %v3165
    %3167 = vmatprep.subr.mxu0 0.0
    %v3168 = vand.u32 %v1144, 4294901760
    %3169 = vmatpush1.msra.mxu0 %v3168
    %3170 = vmatprep.subr.mxu0 0.0
    %3171 = vmatpush1.msra.mxu0 0.0
    %3172 = vmatprep.subr.mxu0 0.0
    %3173 = vmatpush1.msra.mxu0 0.0
    %3174 = vmatprep.subr.mxu0 0.0
    %3175 = vmatpush1.msra.mxu0 0.0
    %3176 = vmatprep.subr.mxu0 0.0
    %3177 = vmatpush1.msra.mxu0 0.0
    %3178 = vmatprep.subr.mxu0 0.0
    %3179 = vmatpush1.msra.mxu0 0.0
    %3180 = vmatprep.subr.mxu0 0.0
    %3181 = vmatpush1.msra.mxu0 0.0
    %3182 = vmatprep.subr.mxu0 0.0
    %3183 = vmatpush1.msra.mxu0 0.0
    %3184 = vmatprep.subr.mxu0 0.0
    %3185 = vmatpush1.msra.mxu0 0.0
    %3186 = vmatprep.subr.mxu0 0.0
    %3187 = vmatpush1.msra.mxu0 0.0
    %3188 = vmatprep.subr.mxu0 0.0
    %3189 = vmatpush1.msra.mxu0 0.0
    %3190 = vmatprep.subr.mxu0 0.0
    %3191 = vmatpush1.msra.mxu0 0.0
    %3192 = vmatprep.subr.mxu0 0.0
    %3193 = vmatpush1.msra.mxu0 0.0
    %3194 = vmatprep.subr.mxu0 0.0
    %3195 = vmatpush1.msra.mxu0 0.0
    %3196 = vmatprep.subr.mxu0 0.0
    %3197 = vmatpush1.msra.mxu0 0.0
    %3198 = vmatprep.subr.mxu0 0.0
    %3199 = vmatpush1.msra.mxu0 0.0
    %3200 = vmatprep.subr.mxu0 0.0
    %3201 = vmatpush1.msra.mxu0 0.0
    %3202 = vmatprep.subr.mxu0 0.0
    %3203 = vmatpush1.msra.mxu0 0.0
    %3204 = vmatprep.subr.mxu0 0.0
    %3205 = vmatpush1.msra.mxu0 0.0
    %3206 = vmatprep.subr.mxu0 0.0
    %3207 = vmatpush1.msra.mxu0 0.0
    %3208 = vmatprep.subr.mxu0 0.0
    %3209 = vmatpush1.msra.mxu0 0.0
    %3210 = vmatprep.subr.mxu0 0.0
    %3211 = vmatpush1.msra.mxu0 0.0
    %3212 = vmatprep.subr.mxu0 0.0
    %3213 = vmatpush1.msra.mxu0 0.0
    %3214 = vmatprep.subr.mxu0 0.0
    %3215 = vmatpush1.msra.mxu0 0.0
    %3216 = vmatprep.subr.mxu0 0.0
    %3217 = vmatpush1.msra.mxu0 0.0
    %3218 = vmatprep.subr.mxu0 0.0
    %3219 = vmatpush1.msra.mxu0 0.0
    %3220 = vmatprep.subr.mxu0 0.0
    %3221 = vmatpush1.msra.mxu0 0.0
    %3222 = vmatprep.subr.mxu0 0.0
    %3223 = vmatpush1.msra.mxu0 0.0
    %3224 = vmatprep.subr.mxu0 0.0
    %3225 = vmatpush1.msra.mxu0 0.0
    %3226 = vmatprep.subr.mxu0 0.0
    %3227 = vmatpush1.msra.mxu0 0.0
    %3228 = vmatprep.subr.mxu0 0.0
    %3229 = vmatpush1.msra.mxu0 0.0
    %3230 = vmatprep.mubr.f32.mxu0 0.0
    %v3231 = vand.u32 %v1151, 4294901760
    %v3232 = vsub.f32 %v1151, %v3231
    %v3233 = vand.u32 %v3232, 4294901760
    %v3234 = vsub.f32 %v3232, %v3233
    %v3235 = vand.u32 %v3234, 4294901760
    %3236 = vmatmul.mubr.f32.gmra.mrb[0].mxu0 %v3235
    %v3237 = vpop.f32.mrb[0].mxu0
    %v3238 = vadd.f32 0.0, %v3237
    %v3239 = vpop.f32.mrb[0].mxu0
    %3240 = vmatprep.mubr.f32.mxu0 0.0
    %v3241 = vand.u32 %v1154, 4294901760
    %v3242 = vsub.f32 %v1154, %v3241
    %v3243 = vand.u32 %v3242, 4294901760
    %v3244 = vsub.f32 %v3242, %v3243
    %v3245 = vand.u32 %v3244, 4294901760
    %3246 = vmatmul.mubr.f32.gmra.mrb[0].mxu0 %v3245
    %v3247 = vpop.f32.mrb[0].mxu0
    %v3248 = vadd.f32 0.0, %v3247
    %v3249 = vpop.f32.mrb[0].mxu0
    %3250 = vdwg.mxu0
    %3251 = vmatprep.subr.mxu0 0.0
    %v3252 = vand.u32 %v1138, 4294901760
    %v3253 = vsub.f32 %v1138, %v3252
    %v3254 = vand.u32 %v3253, 4294901760
    %v3255 = vsub.f32 %v3253, %v3254
    %v3256 = vand.u32 %v3255, 4294901760
    %3257 = vmatpush1.msra.mxu0 %v3256
    %3258 = vmatprep.subr.mxu0 0.0
    %v3259 = vand.u32 %v1144, 4294901760
    %v3260 = vsub.f32 %v1144, %v3259
    %v3261 = vand.u32 %v3260, 4294901760
    %v3262 = vsub.f32 %v3260, %v3261
    %v3263 = vand.u32 %v3262, 4294901760
    %3264 = vmatpush1.msra.mxu0 %v3263
    %3265 = vmatprep.subr.mxu0 0.0
    %3266 = vmatpush1.msra.mxu0 0.0
    %3267 = vmatprep.subr.mxu0 0.0
    %3268 = vmatpush1.msra.mxu0 0.0
    %3269 = vmatprep.subr.mxu0 0.0
    %3270 = vmatpush1.msra.mxu0 0.0
    %3271 = vmatprep.subr.mxu0 0.0
    %3272 = vmatpush1.msra.mxu0 0.0
    %3273 = vmatprep.subr.mxu0 0.0
    %3274 = vmatpush1.msra.mxu0 0.0
    %3275 = vmatprep.subr.mxu0 0.0
    %3276 = vmatpush1.msra.mxu0 0.0
    %3277 = vmatprep.subr.mxu0 0.0
    %3278 = vmatpush1.msra.mxu0 0.0
    %3279 = vmatprep.subr.mxu0 0.0
    %3280 = vmatpush1.msra.mxu0 0.0
    %3281 = vmatprep.subr.mxu0 0.0
    %3282 = vmatpush1.msra.mxu0 0.0
    %3283 = vmatprep.subr.mxu0 0.0
    %3284 = vmatpush1.msra.mxu0 0.0
    %3285 = vmatprep.subr.mxu0 0.0
    %3286 = vmatpush1.msra.mxu0 0.0
    %3287 = vmatprep.subr.mxu0 0.0
    %3288 = vmatpush1.msra.mxu0 0.0
    %3289 = vmatprep.subr.mxu0 0.0
    %3290 = vmatpush1.msra.mxu0 0.0
    %3291 = vmatprep.subr.mxu0 0.0
    %3292 = vmatpush1.msra.mxu0 0.0
    %3293 = vmatprep.subr.mxu0 0.0
    %3294 = vmatpush1.msra.mxu0 0.0
    %3295 = vmatprep.subr.mxu0 0.0
    %3296 = vmatpush1.msra.mxu0 0.0
    %3297 = vmatprep.subr.mxu0 0.0
    %3298 = vmatpush1.msra.mxu0 0.0
    %3299 = vmatprep.subr.mxu0 0.0
    %3300 = vmatpush1.msra.mxu0 0.0
    %3301 = vmatprep.subr.mxu0 0.0
    %3302 = vmatpush1.msra.mxu0 0.0
    %3303 = vmatprep.subr.mxu0 0.0
    %3304 = vmatpush1.msra.mxu0 0.0
    %3305 = vmatprep.subr.mxu0 0.0
    %3306 = vmatpush1.msra.mxu0 0.0
    %3307 = vmatprep.subr.mxu0 0.0
    %3308 = vmatpush1.msra.mxu0 0.0
    %3309 = vmatprep.subr.mxu0 0.0
    %3310 = vmatpush1.msra.mxu0 0.0
    %3311 = vmatprep.subr.mxu0 0.0
    %3312 = vmatpush1.msra.mxu0 0.0
    %3313 = vmatprep.subr.mxu0 0.0
    %3314 = vmatpush1.msra.mxu0 0.0
    %3315 = vmatprep.subr.mxu0 0.0
    %3316 = vmatpush1.msra.mxu0 0.0
    %3317 = vmatprep.subr.mxu0 0.0
    %3318 = vmatpush1.msra.mxu0 0.0
    %3319 = vmatprep.subr.mxu0 0.0
    %3320 = vmatpush1.msra.mxu0 0.0
    %3321 = vmatprep.subr.mxu0 0.0
    %3322 = vmatpush1.msra.mxu0 0.0
    %3323 = vmatprep.subr.mxu0 0.0
    %3324 = vmatpush1.msra.mxu0 0.0
    %3325 = vmatprep.mubr.f32.mxu0 0.0
    %v3326 = vand.u32 %v1151, 4294901760
    %3327 = vmatmul.mubr.f32.gmra.mrb[0].mxu0 %v3326
    %v3328 = vpop.f32.mrb[0].mxu0
    %v3329 = vadd.f32 %v3238, %v3328
    %v3330 = vpop.f32.mrb[0].mxu0
    %3331 = vmatprep.mubr.f32.mxu0 0.0
    %v3332 = vand.u32 %v1154, 4294901760
    %3333 = vmatmul.mubr.f32.gmra.mrb[0].mxu0 %v3332
    %v3334 = vpop.f32.mrb[0].mxu0
    %v3335 = vadd.f32 %v3248, %v3334
    %v3336 = vpop.f32.mrb[0].mxu0
    %3337 = vdwg.mxu0
    %3338 = vmatprep.subr.mxu0 0.0
    %v3339 = vand.u32 %v1138, 4294901760
    %v3340 = vsub.f32 %v1138, %v3339
    %3341 = vmatpush1.msra.mxu0 %v3340
    %3342 = vmatprep.subr.mxu0 0.0
    %v3343 = vand.u32 %v1144, 4294901760
    %v3344 = vsub.f32 %v1144, %v3343
    %3345 = vmatpush1.msra.mxu0 %v3344
    %3346 = vmatprep.subr.mxu0 0.0
    %3347 = vmatpush1.msra.mxu0 0.0
    %3348 = vmatprep.subr.mxu0 0.0
    %3349 = vmatpush1.msra.mxu0 0.0
    %3350 = vmatprep.subr.mxu0 0.0
    %3351 = vmatpush1.msra.mxu0 0.0
    %3352 = vmatprep.subr.mxu0 0.0
    %3353 = vmatpush1.msra.mxu0 0.0
    %3354 = vmatprep.subr.mxu0 0.0
    %3355 = vmatpush1.msra.mxu0 0.0
    %3356 = vmatprep.subr.mxu0 0.0
    %3357 = vmatpush1.msra.mxu0 0.0
    %3358 = vmatprep.subr.mxu0 0.0
    %3359 = vmatpush1.msra.mxu0 0.0
    %3360 = vmatprep.subr.mxu0 0.0
    %3361 = vmatpush1.msra.mxu0 0.0
    %3362 = vmatprep.subr.mxu0 0.0
    %3363 = vmatpush1.msra.mxu0 0.0
    %3364 = vmatprep.subr.mxu0 0.0
    %3365 = vmatpush1.msra.mxu0 0.0
    %3366 = vmatprep.subr.mxu0 0.0
    %3367 = vmatpush1.msra.mxu0 0.0
    %3368 = vmatprep.subr.mxu0 0.0
    %3369 = vmatpush1.msra.mxu0 0.0
    %3370 = vmatprep.subr.mxu0 0.0
    %3371 = vmatpush1.msra.mxu0 0.0
    %3372 = vmatprep.subr.mxu0 0.0
    %3373 = vmatpush1.msra.mxu0 0.0
    %3374 = vmatprep.subr.mxu0 0.0
    %3375 = vmatpush1.msra.mxu0 0.0
    %3376 = vmatprep.subr.mxu0 0.0
    %3377 = vmatpush1.msra.mxu0 0.0
    %3378 = vmatprep.subr.mxu0 0.0
    %3379 = vmatpush1.msra.mxu0 0.0
    %3380 = vmatprep.subr.mxu0 0.0
    %3381 = vmatpush1.msra.mxu0 0.0
    %3382 = vmatprep.subr.mxu0 0.0
    %3383 = vmatpush1.msra.mxu0 0.0
    %3384 = vmatprep.subr.mxu0 0.0
    %3385 = vmatpush1.msra.mxu0 0.0
    %3386 = vmatprep.subr.mxu0 0.0
    %3387 = vmatpush1.msra.mxu0 0.0
    %3388 = vmatprep.subr.mxu0 0.0
    %3389 = vmatpush1.msra.mxu0 0.0
    %3390 = vmatprep.subr.mxu0 0.0
    %3391 = vmatpush1.msra.mxu0 0.0
    %3392 = vmatprep.subr.mxu0 0.0
    %3393 = vmatpush1.msra.mxu0 0.0
    %3394 = vmatprep.subr.mxu0 0.0
    %3395 = vmatpush1.msra.mxu0 0.0
    %3396 = vmatprep.subr.mxu0 0.0
    %3397 = vmatpush1.msra.mxu0 0.0
    %3398 = vmatprep.subr.mxu0 0.0
    %3399 = vmatpush1.msra.mxu0 0.0
    %3400 = vmatprep.subr.mxu0 0.0
    %3401 = vmatpush1.msra.mxu0 0.0
    %3402 = vmatprep.subr.mxu0 0.0
    %3403 = vmatpush1.msra.mxu0 0.0
    %3404 = vmatprep.subr.mxu0 0.0
    %3405 = vmatpush1.msra.mxu0 0.0
    %3406 = vmatprep.mubr.f32.mxu0 0.0
    %v3407 = vand.u32 %v1151, 4294901760
    %v3408 = vsub.f32 %v1151, %v3407
    %3409 = vmatmul.mubr.f32.gmra.mrb[0].mxu0 %v3408
    %v3410 = vpop.f32.mrb[0].mxu0
    %v3411 = vadd.f32 %v3329, %v3410
    %v3412 = vpop.f32.mrb[0].mxu0
    %3413 = vmatprep.mubr.f32.mxu0 0.0
    %v3414 = vand.u32 %v1154, 4294901760
    %v3415 = vsub.f32 %v1154, %v3414
    %3416 = vmatmul.mubr.f32.gmra.mrb[0].mxu0 %v3415
    %v3417 = vpop.f32.mrb[0].mxu0
    %v3418 = vadd.f32 %v3335, %v3417
    %v3419 = vpop.f32.mrb[0].mxu0
    %3420 = vdwg.mxu0
    %3421 = vmatprep.subr.mxu0 0.0
    %v3422 = vand.u32 %v1138, 4294901760
    %3423 = vmatpush1.msra.mxu0 %v3422
    %3424 = vmatprep.subr.mxu0 0.0
    %v3425 = vand.u32 %v1144, 4294901760
    %3426 = vmatpush1.msra.mxu0 %v3425
    %3427 = vmatprep.subr.mxu0 0.0
    %3428 = vmatpush1.msra.mxu0 0.0
    %3429 = vmatprep.subr.mxu0 0.0
    %3430 = vmatpush1.msra.mxu0 0.0
    %3431 = vmatprep.subr.mxu0 0.0
    %3432 = vmatpush1.msra.mxu0 0.0
    %3433 = vmatprep.subr.mxu0 0.0
    %3434 = vmatpush1.msra.mxu0 0.0
    %3435 = vmatprep.subr.mxu0 0.0
    %3436 = vmatpush1.msra.mxu0 0.0
    %3437 = vmatprep.subr.mxu0 0.0
    %3438 = vmatpush1.msra.mxu0 0.0
    %3439 = vmatprep.subr.mxu0 0.0
    %3440 = vmatpush1.msra.mxu0 0.0
    %3441 = vmatprep.subr.mxu0 0.0
    %3442 = vmatpush1.msra.mxu0 0.0
    %3443 = vmatprep.subr.mxu0 0.0
    %3444 = vmatpush1.msra.mxu0 0.0
    %3445 = vmatprep.subr.mxu0 0.0
    %3446 = vmatpush1.msra.mxu0 0.0
    %3447 = vmatprep.subr.mxu0 0.0
    %3448 = vmatpush1.msra.mxu0 0.0
    %3449 = vmatprep.subr.mxu0 0.0
    %3450 = vmatpush1.msra.mxu0 0.0
    %3451 = vmatprep.subr.mxu0 0.0
    %3452 = vmatpush1.msra.mxu0 0.0
    %3453 = vmatprep.subr.mxu0 0.0
    %3454 = vmatpush1.msra.mxu0 0.0
    %3455 = vmatprep.subr.mxu0 0.0
    %3456 = vmatpush1.msra.mxu0 0.0
    %3457 = vmatprep.subr.mxu0 0.0
    %3458 = vmatpush1.msra.mxu0 0.0
    %3459 = vmatprep.subr.mxu0 0.0
    %3460 = vmatpush1.msra.mxu0 0.0
    %3461 = vmatprep.subr.mxu0 0.0
    %3462 = vmatpush1.msra.mxu0 0.0
    %3463 = vmatprep.subr.mxu0 0.0
    %3464 = vmatpush1.msra.mxu0 0.0
    %3465 = vmatprep.subr.mxu0 0.0
    %3466 = vmatpush1.msra.mxu0 0.0
    %3467 = vmatprep.subr.mxu0 0.0
    %3468 = vmatpush1.msra.mxu0 0.0
    %3469 = vmatprep.subr.mxu0 0.0
    %3470 = vmatpush1.msra.mxu0 0.0
    %3471 = vmatprep.subr.mxu0 0.0
    %3472 = vmatpush1.msra.mxu0 0.0
    %3473 = vmatprep.subr.mxu0 0.0
    %3474 = vmatpush1.msra.mxu0 0.0
    %3475 = vmatprep.subr.mxu0 0.0
    %3476 = vmatpush1.msra.mxu0 0.0
    %3477 = vmatprep.subr.mxu0 0.0
    %3478 = vmatpush1.msra.mxu0 0.0
    %3479 = vmatprep.subr.mxu0 0.0
    %3480 = vmatpush1.msra.mxu0 0.0
    %3481 = vmatprep.subr.mxu0 0.0
    %3482 = vmatpush1.msra.mxu0 0.0
    %3483 = vmatprep.subr.mxu0 0.0
    %3484 = vmatpush1.msra.mxu0 0.0
    %3485 = vmatprep.subr.mxu0 0.0
    %3486 = vmatpush1.msra.mxu0 0.0
    %3487 = vmatprep.mubr.f32.mxu0 0.0
    %v3488 = vand.u32 %v1151, 4294901760
    %v3489 = vsub.f32 %v1151, %v3488
    %v3490 = vand.u32 %v3489, 4294901760
    %3491 = vmatmul.mubr.f32.gmra.mrb[0].mxu0 %v3490
    %v3492 = vpop.f32.mrb[0].mxu0
    %v3493 = vadd.f32 %v3411, %v3492
    %v3494 = vpop.f32.mrb[0].mxu0
    %3495 = vmatprep.mubr.f32.mxu0 0.0
    %v3496 = vand.u32 %v1154, 4294901760
    %v3497 = vsub.f32 %v1154, %v3496
    %v3498 = vand.u32 %v3497, 4294901760
    %3499 = vmatmul.mubr.f32.gmra.mrb[0].mxu0 %v3498
    %v3500 = vpop.f32.mrb[0].mxu0
    %v3501 = vadd.f32 %v3418, %v3500
    %v3502 = vpop.f32.mrb[0].mxu0
    %3503 = vdwg.mxu0
    %3504 = vmatprep.subr.mxu0 0.0
    %v3505 = vand.u32 %v1138, 4294901760
    %v3506 = vsub.f32 %v1138, %v3505
    %v3507 = vand.u32 %v3506, 4294901760
    %3508 = vmatpush1.msra.mxu0 %v3507
    %3509 = vmatprep.subr.mxu0 0.0
    %v3510 = vand.u32 %v1144, 4294901760
    %v3511 = vsub.f32 %v1144, %v3510
    %v3512 = vand.u32 %v3511, 4294901760
    %3513 = vmatpush1.msra.mxu0 %v3512
    %3514 = vmatprep.subr.mxu0 0.0
    %3515 = vmatpush1.msra.mxu0 0.0
    %3516 = vmatprep.subr.mxu0 0.0
    %3517 = vmatpush1.msra.mxu0 0.0
    %3518 = vmatprep.subr.mxu0 0.0
    %3519 = vmatpush1.msra.mxu0 0.0
    %3520 = vmatprep.subr.mxu0 0.0
    %3521 = vmatpush1.msra.mxu0 0.0
    %3522 = vmatprep.subr.mxu0 0.0
    %3523 = vmatpush1.msra.mxu0 0.0
    %3524 = vmatprep.subr.mxu0 0.0
    %3525 = vmatpush1.msra.mxu0 0.0
    %3526 = vmatprep.subr.mxu0 0.0
    %3527 = vmatpush1.msra.mxu0 0.0
    %3528 = vmatprep.subr.mxu0 0.0
    %3529 = vmatpush1.msra.mxu0 0.0
    %3530 = vmatprep.subr.mxu0 0.0
    %3531 = vmatpush1.msra.mxu0 0.0
    %3532 = vmatprep.subr.mxu0 0.0
    %3533 = vmatpush1.msra.mxu0 0.0
    %3534 = vmatprep.subr.mxu0 0.0
    %3535 = vmatpush1.msra.mxu0 0.0
    %3536 = vmatprep.subr.mxu0 0.0
    %3537 = vmatpush1.msra.mxu0 0.0
    %3538 = vmatprep.subr.mxu0 0.0
    %3539 = vmatpush1.msra.mxu0 0.0
    %3540 = vmatprep.subr.mxu0 0.0
    %3541 = vmatpush1.msra.mxu0 0.0
    %3542 = vmatprep.subr.mxu0 0.0
    %3543 = vmatpush1.msra.mxu0 0.0
    %3544 = vmatprep.subr.mxu0 0.0
    %3545 = vmatpush1.msra.mxu0 0.0
    %3546 = vmatprep.subr.mxu0 0.0
    %3547 = vmatpush1.msra.mxu0 0.0
    %3548 = vmatprep.subr.mxu0 0.0
    %3549 = vmatpush1.msra.mxu0 0.0
    %3550 = vmatprep.subr.mxu0 0.0
    %3551 = vmatpush1.msra.mxu0 0.0
    %3552 = vmatprep.subr.mxu0 0.0
    %3553 = vmatpush1.msra.mxu0 0.0
    %3554 = vmatprep.subr.mxu0 0.0
    %3555 = vmatpush1.msra.mxu0 0.0
    %3556 = vmatprep.subr.mxu0 0.0
    %3557 = vmatpush1.msra.mxu0 0.0
    %3558 = vmatprep.subr.mxu0 0.0
    %3559 = vmatpush1.msra.mxu0 0.0
    %3560 = vmatprep.subr.mxu0 0.0
    %3561 = vmatpush1.msra.mxu0 0.0
    %3562 = vmatprep.subr.mxu0 0.0
    %3563 = vmatpush1.msra.mxu0 0.0
    %3564 = vmatprep.subr.mxu0 0.0
    %3565 = vmatpush1.msra.mxu0 0.0
    %3566 = vmatprep.subr.mxu0 0.0
    %3567 = vmatpush1.msra.mxu0 0.0
    %3568 = vmatprep.subr.mxu0 0.0
    %3569 = vmatpush1.msra.mxu0 0.0
    %3570 = vmatprep.subr.mxu0 0.0
    %3571 = vmatpush1.msra.mxu0 0.0
    %3572 = vmatprep.subr.mxu0 0.0
    %3573 = vmatpush1.msra.mxu0 0.0
    %3574 = vmatprep.mubr.f32.mxu0 0.0
    %v3575 = vand.u32 %v1151, 4294901760
    %3576 = vmatmul.mubr.f32.gmra.mrb[0].mxu0 %v3575
    %v3577 = vpop.f32.mrb[0].mxu0
    %v3578 = vadd.f32 %v3493, %v3577
    %v3579 = vpop.f32.mrb[0].mxu0
    %3580 = vmatprep.mubr.f32.mxu0 0.0
    %v3581 = vand.u32 %v1154, 4294901760
    %3582 = vmatmul.mubr.f32.gmra.mrb[0].mxu0 %v3581
    %v3583 = vpop.f32.mrb[0].mxu0
    %v3584 = vadd.f32 %v3501, %v3583
    %v3585 = vpop.f32.mrb[0].mxu0
    %3586 = vdwg.mxu0
    %3587 = vmatprep.subr.mxu0 0.0
    %v3588 = vand.u32 %v1138, 4294901760
    %3589 = vmatpush1.msra.mxu0 %v3588
    %3590 = vmatprep.subr.mxu0 0.0
    %v3591 = vand.u32 %v1144, 4294901760
    %3592 = vmatpush1.msra.mxu0 %v3591
    %3593 = vmatprep.subr.mxu0 0.0
    %3594 = vmatpush1.msra.mxu0 0.0
    %3595 = vmatprep.subr.mxu0 0.0
    %3596 = vmatpush1.msra.mxu0 0.0
    %3597 = vmatprep.subr.mxu0 0.0
    %3598 = vmatpush1.msra.mxu0 0.0
    %3599 = vmatprep.subr.mxu0 0.0
    %3600 = vmatpush1.msra.mxu0 0.0
    %3601 = vmatprep.subr.mxu0 0.0
    %3602 = vmatpush1.msra.mxu0 0.0
    %3603 = vmatprep.subr.mxu0 0.0
    %3604 = vmatpush1.msra.mxu0 0.0
    %3605 = vmatprep.subr.mxu0 0.0
    %3606 = vmatpush1.msra.mxu0 0.0
    %3607 = vmatprep.subr.mxu0 0.0
    %3608 = vmatpush1.msra.mxu0 0.0
    %3609 = vmatprep.subr.mxu0 0.0
    %3610 = vmatpush1.msra.mxu0 0.0
    %3611 = vmatprep.subr.mxu0 0.0
    %3612 = vmatpush1.msra.mxu0 0.0
    %3613 = vmatprep.subr.mxu0 0.0
    %3614 = vmatpush1.msra.mxu0 0.0
    %3615 = vmatprep.subr.mxu0 0.0
    %3616 = vmatpush1.msra.mxu0 0.0
    %3617 = vmatprep.subr.mxu0 0.0
    %3618 = vmatpush1.msra.mxu0 0.0
    %3619 = vmatprep.subr.mxu0 0.0
    %3620 = vmatpush1.msra.mxu0 0.0
    %3621 = vmatprep.subr.mxu0 0.0
    %3622 = vmatpush1.msra.mxu0 0.0
    %3623 = vmatprep.subr.mxu0 0.0
    %3624 = vmatpush1.msra.mxu0 0.0
    %3625 = vmatprep.subr.mxu0 0.0
    %3626 = vmatpush1.msra.mxu0 0.0
    %3627 = vmatprep.subr.mxu0 0.0
    %3628 = vmatpush1.msra.mxu0 0.0
    %3629 = vmatprep.subr.mxu0 0.0
    %3630 = vmatpush1.msra.mxu0 0.0
    %3631 = vmatprep.subr.mxu0 0.0
    %3632 = vmatpush1.msra.mxu0 0.0
    %3633 = vmatprep.subr.mxu0 0.0
    %3634 = vmatpush1.msra.mxu0 0.0
    %3635 = vmatprep.subr.mxu0 0.0
    %3636 = vmatpush1.msra.mxu0 0.0
    %3637 = vmatprep.subr.mxu0 0.0
    %3638 = vmatpush1.msra.mxu0 0.0
    %3639 = vmatprep.subr.mxu0 0.0
    %3640 = vmatpush1.msra.mxu0 0.0
    %3641 = vmatprep.subr.mxu0 0.0
    %3642 = vmatpush1.msra.mxu0 0.0
    %3643 = vmatprep.subr.mxu0 0.0
    %3644 = vmatpush1.msra.mxu0 0.0
    %3645 = vmatprep.subr.mxu0 0.0
    %3646 = vmatpush1.msra.mxu0 0.0
    %3647 = vmatprep.subr.mxu0 0.0
    %3648 = vmatpush1.msra.mxu0 0.0
    %3649 = vmatprep.subr.mxu0 0.0
    %3650 = vmatpush1.msra.mxu0 0.0
    %3651 = vmatprep.subr.mxu0 0.0
    %3652 = vmatpush1.msra.mxu0 0.0
    %3653 = vmatprep.mubr.f32.mxu0 0.0
    %v3654 = vand.u32 %v1151, 4294901760
    %3655 = vmatmul.mubr.f32.gmra.mrb[0].mxu0 %v3654
    %v3656 = vpop.f32.mrb[0].mxu0
    %v3657 = vadd.f32 %v3578, %v3656
    %v3658 = vpop.f32.mrb[0].mxu0
    %3659 = vmatprep.mubr.f32.mxu0 0.0
    %v3660 = vand.u32 %v1154, 4294901760
    %3661 = vmatmul.mubr.f32.gmra.mrb[0].mxu0 %v3660
    %v3662 = vpop.f32.mrb[0].mxu0
    %v3663 = vadd.f32 %v3584, %v3662
    %v3664 = vpop.f32.mrb[0].mxu0
    %3665 = vdwg.mxu0
    %v3666 = vmul.f32 %v1649, %v1649
    %v3667 = vmul.f32 %v1655, %v1655
    %v3668 = vmul.f32 %v2151, %v2151
    %v3669 = vmul.f32 %v2157, %v2157
    %v3670 = vmul.f32 %v1649, %v2151
    %v3671 = vmul.f32 %v1655, %v2157
    %v3672 = vsub.f32 %v2653, %v3666
    %v3673 = vsub.f32 %v2659, %v3667
    %v3674 = vsub.f32 %v3155, %v3668
    %v3675 = vsub.f32 %v3161, %v3669
    %v3676 = vsub.f32 %v3657, %v3670
    %v3677 = vsub.f32 %v3663, %v3671
    %v3678 = vmul.f32 %v3670, 2.0
    %v3679 = vmul.f32 %v3671, 2.0
    %v3680 = vadd.f32 %v3678, 0.0001
    %v3681 = vadd.f32 %v3679, 0.0001
    %v3682 = vmul.f32 %v3676, 2.0
    %v3683 = vmul.f32 %v3677, 2.0
    %v3684 = vadd.f32 %v3682, 0.0009
    %v3685 = vadd.f32 %v3683, 0.0009
    %v3686 = vmul.f32 %v3680, %v3684
    %v3687 = vmul.f32 %v3681, %v3685
    %v3688 = vadd.f32 %v3666, %v3668
    %v3689 = vadd.f32 %v3667, %v3669
    %v3690 = vadd.f32 %v3688, 0.0001
    %v3691 = vadd.f32 %v3689, 0.0001
    %v3692 = vadd.f32 %v3672, %v3674
    %v3693 = vadd.f32 %v3673, %v3675
    %v3694 = vadd.f32 %v3692, 0.0009
    %v3695 = vadd.f32 %v3693, 0.0009
    %v3696 = vmul.f32 %v3690, %v3694
    %v3697 = vmul.f32 %v3691, %v3695
    %v3698 = vrcp.pop %v3696
    %v3699 = vmul.f32 %v3686, %v3698
    %v3700 = vrcp.pop %v3697
    %v3701 = vmul.f32 %v3687, %v3700
    %v3702 = vadd.f32 %v3699, %v3701
    %3703 = vst [vmem:[#allocation11] sm:$0xff] %v3702
    // Predicated region
    $region34: #{tpu_custom_call.1} parent=1 // pred_check
      _
    $region35: #{tpu_custom_call.1} parent=1 // pred_check_branch
      %3705 = sbr.rel (0) target = $region37
    $region36: #{tpu_custom_call.1} parent=1 // pred_region
      %s3707 = ssub.s32 128, 128
      %3708 = vsyncadd [#allocation5], %s3707
      %s3710 = sshll.u32 [#allocation11], 4
      %s3711 = int_to_ptr.vmem [resolvable:$true] %s3710
      %3713 = dma.vmem_to_hbm [thread:$0]  %s3711, 128, %s4, [#allocation5]
    $region37: #{tpu_custom_call.1} parent=1 // pred_fallthru
      _
    // Predicated region
    $region38: #{tpu_custom_call.1} parent=1 // pred_check
      _
    $region39: #{tpu_custom_call.1} parent=1 // pred_check_branch
      %3715 = sbr.rel (0) target = $region41
    $region40: #{tpu_custom_call.1} parent=1 // pred_region
      %3716 = dma.done [#allocation5], 128
    $region41: #{tpu_custom_call.1} parent=1 // pred_fallthru
      _
    %3717 = vsyncpa [#allocation4], 1
    %3718 = vsyncpa [#allocation7], 1
    %3719 = vsyncpa [#allocation10], 1
    %3720 = vsyncpa [#allocation5], 1

</llo_original>
